<compile_context>
chip_gen: v5e
topology: v5e:2x2
jax: 0.10.0
libtpu: 0.0.40
codegen_flags: <defaults>
</compile_context>

<pallas_src>
import functools

import jax
import jax.numpy as jnp
from jax.experimental import pallas as pl
from jax.experimental.pallas import tpu as pltpu


# ----------------------------------------------------------------------------
# Fused Conv2d(k=3, pad=1) + BatchNorm(eval) + LeakyReLU(0.01)
# Layout: rows = channels, lanes = flattened padded spatial (NCHW).
# ----------------------------------------------------------------------------
def conv_bn_lrelu_kernel(x_ref, w_ref, s_ref, b_ref, o_ref, *, K, Wp, H,
                         slope=0.01):
    # x_ref: (Cin, (Hp+1)*Wp) bf16 zero-padded input (1 extra zero row at the bottom
    #        so the kw-shift slices of length Hp*Wp always stay in bounds)
    # w_ref: (K, Cout, K*Cin) bf16 with w_ref[kh][co, kw*Cin + ci] = W[kh, kw, ci, co]
    # s_ref, b_ref: (Cout, 1) f32 folded BN scale / bias (conv bias included)
    # o_ref: (Cout, H*Wp) bf16  -- lane-dense output (last dim a multiple of 128)
    L = (H + K - 1) * Wp                 # = Hp * Wp, matmul output length
    Lout = H * Wp

    x = x_ref[...]
    # Fold the kw taps into the contraction (depth K*Cin): lane-offset slices of the
    # full-width slab, concatenated along the (aligned) sublane/channel axis.
    p = jnp.concatenate([x[:, kw:kw + L] for kw in range(K)], axis=0)  # (K*Cin, L)

    acc = None
    for kh in range(K):                  # K matmuls, contraction depth K*Cin
        y = jnp.dot(w_ref[kh], p, preferred_element_type=jnp.float32)  # (Cout, L)
        y = y[:, kh * Wp: kh * Wp + Lout]                              # row shift
        acc = y if acc is None else acc + y

    acc = acc * s_ref[...] + b_ref[...]          # folded BatchNorm + conv bias
    acc = jnp.where(acc >= 0, acc, slope * acc)  # LeakyReLU(0.01)
    o_ref[...] = acc.astype(o_ref.dtype)


def conv_bn_lrelu(x_nchw, w3, scale, bias, *, ksize=3):
    N, Cin, H, W = x_nchw.shape
    K = ksize
    pad = (K - 1) // 2                            # 1
    Wp = ((W + 2 * pad + 7) // 8) * 8             # padded width, rounded to 8
    Hp = H + 2 * pad
    Cout = w3.shape[1]
    Lin = (Hp + 1) * Wp                           # +1 extra zero row (see kernel)
    Lout = H * Wp

    xp = jnp.pad(x_nchw, ((0, 0), (0, 0), (pad, pad + 1), (pad, Wp - W - pad)))
    xp = xp.reshape(N, Cin, Lin).astype(jnp.bfloat16)

    kern = functools.partial(conv_bn_lrelu_kernel, K=K, Wp=Wp, H=H)
    out = pl.pallas_call(
        kern,
        out_shape=jax.ShapeDtypeStruct((N, Cout, Lout), jnp.bfloat16),
        grid=(N,),
        in_specs=[
            pl.BlockSpec((None, Cin, Lin), lambda n: (n, 0, 0)),
            pl.BlockSpec((K, Cout, K * Cin), lambda n: (0, 0, 0)),
            pl.BlockSpec((Cout, 1), lambda n: (0, 0)),
            pl.BlockSpec((Cout, 1), lambda n: (0, 0)),
        ],
        out_specs=pl.BlockSpec((None, Cout, Lout), lambda n: (n, 0, 0)),
        compiler_params=pltpu.CompilerParams(
            dimension_semantics=("parallel",)),
    )(xp, w3, scale, bias)

    # (N, Cout, H*Wp) -> crop the width padding -> (N, Cout, H, W)
    return out.reshape(N, Cout, H, Wp)[:, :, :, :W]


def maxpool2x2(x):
    # MaxPool2d(kernel=2, stride=2) via reshape+max (XLA, fuses with pad of next layer)
    N, C, H, W = x.shape
    return x.reshape(N, C, H // 2, 2, W // 2, 2).max(axis=(3, 5))


# ----------------------------------------------------------------------------
# Linear (+ optional ReLU): K-tiled matmul, f32 VMEM accumulator, bf16 streaming
# ----------------------------------------------------------------------------
def linear_kernel(x_ref, w_ref, b_ref, o_ref, acc_ref, *, act):
    k = pl.program_id(0)

    @pl.when(k == 0)
    def _():
        acc_ref[...] = jnp.zeros_like(acc_ref)

    acc_ref[...] += jnp.dot(x_ref[...], w_ref[...],
                            preferred_element_type=jnp.float32)

    @pl.when(k == pl.num_programs(0) - 1)
    def _():
        y = acc_ref[...] + b_ref[...]
        if act:
            y = jnp.maximum(y, 0.0)
        o_ref[...] = y.astype(o_ref.dtype)


def linear(x, w, b, *, act, tk=512):
    M, K = x.shape
    Nout = w.shape[1]
    tk = min(tk, K)
    Kp = ((K + tk - 1) // tk) * tk        # pad K so the tile always divides
    if Kp != K:
        x = jnp.pad(x, ((0, 0), (0, Kp - K)))
        w = jnp.pad(w, ((0, Kp - K), (0, 0)))
    x = x.astype(jnp.bfloat16)
    w = w.astype(jnp.bfloat16)
    nk = Kp // tk

    kern = functools.partial(linear_kernel, act=act)
    return pl.pallas_call(
        kern,
        out_shape=jax.ShapeDtypeStruct((M, Nout), jnp.float32),
        grid=(nk,),
        in_specs=[
            pl.BlockSpec((M, tk), lambda k: (0, k)),
            pl.BlockSpec((tk, Nout), lambda k: (k, 0)),
            pl.BlockSpec((1, Nout), lambda k: (0, 0)),
        ],
        out_specs=pl.BlockSpec((M, Nout), lambda k: (0, 0)),
        scratch_shapes=[pltpu.VMEM((M, Nout), jnp.float32)],
        compiler_params=pltpu.CompilerParams(
            dimension_semantics=("arbitrary",)),
    )(x, w, b)


# ----------------------------------------------------------------------------
# Parameter construction (deterministic, synthetic; BN folded at init)
# ----------------------------------------------------------------------------
def conv_block_params(key, cin, cout, ksize=3, eps=1e-5):
    k1, k2, k3, k4, k5, k6 = jax.random.split(key, 6)
    fan_in = ksize * ksize * cin
    w = jax.random.normal(k1, (ksize, ksize, cin, cout), jnp.float32)
    w = w / jnp.sqrt(jnp.float32(fan_in))
    conv_b = 0.01 * jax.random.normal(k2, (cout,), jnp.float32)
    gamma = 1.0 + 0.1 * jax.random.normal(k3, (cout,), jnp.float32)
    beta = 0.1 * jax.random.normal(k4, (cout,), jnp.float32)
    mean = 0.1 * jax.random.normal(k5, (cout,), jnp.float32)
    var = 1.0 + 0.1 * jnp.abs(jax.random.normal(k6, (cout,), jnp.float32))
    scale = gamma / jnp.sqrt(var + eps)              # folded BN scale
    bias = beta + (conv_b - mean) * scale            # folded BN bias (+conv bias)
    # (kh, kw, ci, co) -> (kh, co, kw*Cin + ci): matches the in-kernel im2col layout.
    w3 = jnp.transpose(w, (0, 3, 1, 2)).reshape(ksize, cout, ksize * cin)
    return (w3.astype(jnp.bfloat16),
            scale.reshape(cout, 1).astype(jnp.float32),
            bias.reshape(cout, 1).astype(jnp.float32))


def linear_params(key, fin, fout):
    k1, k2 = jax.random.split(key)
    w = jax.random.normal(k1, (fin, fout), jnp.float32) / jnp.sqrt(jnp.float32(fin))
    b = 0.01 * jax.random.normal(k2, (1, fout), jnp.float32)
    return w.astype(jnp.bfloat16), b


def init_params(key, spatial):
    ks = jax.random.split(key, 6)
    p = {}
    p["c1"] = conv_block_params(ks[0], 3, 32)
    p["c2"] = conv_block_params(ks[1], 32, 32)
    p["c3"] = conv_block_params(ks[2], 32, 64)
    flat = 64 * (spatial // 4) ** 2       # 64*56*56 for the original 224x224 input
    p["f1"] = linear_params(ks[3], flat, 1000)
    p["f2"] = linear_params(ks[4], 1000, 512)
    p["f3"] = linear_params(ks[5], 512, 4)
    return p


# ----------------------------------------------------------------------------
# Forward pass (matches the PyTorch Sequential ordering)
# ----------------------------------------------------------------------------
@jax.jit
def forward(params, x_nchw):
    x = conv_bn_lrelu(x_nchw, *params["c1"])     # Conv(3,32)+BN+LReLU
    x = conv_bn_lrelu(x, *params["c2"])          # Conv(32,32)+BN+LReLU
    x = maxpool2x2(x)                            # MaxPool2d(2,2)
    x = conv_bn_lrelu(x, *params["c3"])          # Conv(32,64)+BN+LReLU
    x = maxpool2x2(x)                            # MaxPool2d(2,2)

    N = x.shape[0]
    x = x.reshape(N, -1)                         # NCHW flatten == torch .view(N, -1)

    # fc: Dropout(id) -> Linear -> ReLU -> Dropout -> Linear -> ReLU -> Dropout -> Linear
    w, b = params["f1"]
    x = linear(x, w, b, act=True)
    w, b = params["f2"]
    x = linear(x, w, b, act=True)
    w, b = params["f3"]
    x = linear(x, w, b, act=False)
    return x


if __name__ == "__main__":
    key = jax.random.PRNGKey(0)
    kp, kx = jax.random.split(key)

    SPATIAL = 16                                 # small stand-in for 224x224
    params = init_params(kp, SPATIAL)
    x = jax.random.normal(kx, (2, 3, SPATIAL, SPATIAL), jnp.float32)

    out = forward(params, x)
    jax.block_until_ready(out)
    assert out.shape == (2, 4), out.shape
    print("KERNEL_OK")
</pallas_src>

<mosaic_0001>
module attributes {stable_mosaic.version = 11 : i64} {
  func.func @conv_bn_lrelu_kernel(%arg0: i32, %arg1: memref<1x3x456xbf16, #tpu.memory_space<vmem>>, %arg2: memref<3x32x9xbf16, #tpu.memory_space<vmem>>, %arg3: memref<32x1xf32, #tpu.memory_space<vmem>>, %arg4: memref<32x1xf32, #tpu.memory_space<vmem>>, %arg5: memref<1x32x384xbf16, #tpu.memory_space<vmem>>) attributes {dimension_semantics = [#tpu.dimension_semantics<parallel>], iteration_bounds = array<i64: 2>, scalar_prefetch = 0 : i64, scratch_operands = 0 : i64, tpu.core_type = #tpu.core_type<tc>, window_params = [{transform_indices = @transform_0, window_bounds = array<i64: 1, 3, 456>}, {pipeline_mode = #tpu.pipeline_mode<synchronous>, transform_indices = @transform_1, window_bounds = array<i64: 3, 32, 9>}, {pipeline_mode = #tpu.pipeline_mode<synchronous>, transform_indices = @transform_2, window_bounds = array<i64: 32, 1>}, {pipeline_mode = #tpu.pipeline_mode<synchronous>, transform_indices = @transform_3, window_bounds = array<i64: 32, 1>}, {transform_indices = @transform_4, window_bounds = array<i64: 1, 32, 384>}]} {
    %c0 = arith.constant 0 : index
    %c0_0 = arith.constant 0 : index
    %c0_1 = arith.constant 0 : index
    %0 = vector.load %arg1[%c0, %c0_0, %c0_1] : memref<1x3x456xbf16, #tpu.memory_space<vmem>>, vector<1x3x456xbf16>
    %1 = vector.shape_cast %0 : vector<1x3x456xbf16> to vector<3x456xbf16>
    %2 = vector.extract_strided_slice %1 {offsets = [0, 0], sizes = [3, 432], strides = [1, 1]} : vector<3x456xbf16> to vector<3x432xbf16>
    %3 = vector.extract_strided_slice %1 {offsets = [0, 1], sizes = [3, 432], strides = [1, 1]} : vector<3x456xbf16> to vector<3x432xbf16>
    %4 = vector.extract_strided_slice %1 {offsets = [0, 2], sizes = [3, 432], strides = [1, 1]} : vector<3x456xbf16> to vector<3x432xbf16>
    %5 = tpu.concatenate %2, %3, %4 in 0 : vector<3x432xbf16>, vector<3x432xbf16>, vector<3x432xbf16> -> vector<9x432xbf16>
    %c0_2 = arith.constant 0 : index
    %c0_3 = arith.constant 0 : index
    %c0_4 = arith.constant 0 : index
    %6 = vector.load %arg2[%c0_2, %c0_3, %c0_4] : memref<3x32x9xbf16, #tpu.memory_space<vmem>>, vector<1x32x9xbf16>
    %7 = vector.shape_cast %6 : vector<1x32x9xbf16> to vector<32x9xbf16>
    %cst = arith.constant dense<0.000000e+00> : vector<32x432xf32>
    %8 = tpu.matmul %7, %5, %cst {dimension_numbers = #tpu.dot_dimension_numbers<[1], [0], [0], [1], [0, 0, 1, 1], [], []>} : vector<32x9xbf16>, vector<9x432xbf16>, vector<32x432xf32> -> vector<32x432xf32>
    %9 = vector.extract_strided_slice %8 {offsets = [0, 0], sizes = [32, 384], strides = [1, 1]} : vector<32x432xf32> to vector<32x384xf32>
    %c1 = arith.constant 1 : index
    %c0_5 = arith.constant 0 : index
    %c0_6 = arith.constant 0 : index
    %10 = vector.load %arg2[%c1, %c0_5, %c0_6] : memref<3x32x9xbf16, #tpu.memory_space<vmem>>, vector<1x32x9xbf16>
    %11 = vector.shape_cast %10 : vector<1x32x9xbf16> to vector<32x9xbf16>
    %cst_7 = arith.constant dense<0.000000e+00> : vector<32x432xf32>
    %12 = tpu.matmul %11, %5, %cst_7 {dimension_numbers = #tpu.dot_dimension_numbers<[1], [0], [0], [1], [0, 0, 1, 1], [], []>} : vector<32x9xbf16>, vector<9x432xbf16>, vector<32x432xf32> -> vector<32x432xf32>
    %13 = vector.extract_strided_slice %12 {offsets = [0, 24], sizes = [32, 384], strides = [1, 1]} : vector<32x432xf32> to vector<32x384xf32>
    %14 = arith.addf %9, %13 : vector<32x384xf32>
    %c2 = arith.constant 2 : index
    %c0_8 = arith.constant 0 : index
    %c0_9 = arith.constant 0 : index
    %15 = vector.load %arg2[%c2, %c0_8, %c0_9] : memref<3x32x9xbf16, #tpu.memory_space<vmem>>, vector<1x32x9xbf16>
    %16 = vector.shape_cast %15 : vector<1x32x9xbf16> to vector<32x9xbf16>
    %cst_10 = arith.constant dense<0.000000e+00> : vector<32x432xf32>
    %17 = tpu.matmul %16, %5, %cst_10 {dimension_numbers = #tpu.dot_dimension_numbers<[1], [0], [0], [1], [0, 0, 1, 1], [], []>} : vector<32x9xbf16>, vector<9x432xbf16>, vector<32x432xf32> -> vector<32x432xf32>
    %18 = vector.extract_strided_slice %17 {offsets = [0, 48], sizes = [32, 384], strides = [1, 1]} : vector<32x432xf32> to vector<32x384xf32>
    %19 = arith.addf %14, %18 : vector<32x384xf32>
    %c0_11 = arith.constant 0 : index
    %c0_12 = arith.constant 0 : index
    %20 = vector.load %arg3[%c0_11, %c0_12] : memref<32x1xf32, #tpu.memory_space<vmem>>, vector<32x1xf32>
    %21 = vector.broadcast %20 : vector<32x1xf32> to vector<32x384xf32>
    %22 = arith.mulf %19, %21 : vector<32x384xf32>
    %c0_13 = arith.constant 0 : index
    %c0_14 = arith.constant 0 : index
    %23 = vector.load %arg4[%c0_13, %c0_14] : memref<32x1xf32, #tpu.memory_space<vmem>>, vector<32x1xf32>
    %24 = vector.broadcast %23 : vector<32x1xf32> to vector<32x384xf32>
    %25 = arith.addf %22, %24 : vector<32x384xf32>
    %cst_15 = arith.constant 0.000000e+00 : f32
    %26 = vector.broadcast %cst_15 : f32 to vector<32x384xf32>
    %27 = arith.cmpf oge, %25, %26 : vector<32x384xf32>
    %cst_16 = arith.constant 0.00999999977 : f32
    %28 = vector.broadcast %cst_16 : f32 to vector<32x384xf32>
    %29 = arith.mulf %28, %25 : vector<32x384xf32>
    %30 = arith.select %27, %25, %29 : vector<32x384xi1>, vector<32x384xf32>
    %31 = arith.truncf %30 : vector<32x384xf32> to vector<32x384xbf16>
    %c0_17 = arith.constant 0 : index
    %c0_18 = arith.constant 0 : index
    %c0_19 = arith.constant 0 : index
    %32 = vector.load %arg5[%c0_17, %c0_18, %c0_19] : memref<1x32x384xbf16, #tpu.memory_space<vmem>>, vector<1x32x384xbf16>
    %33 = vector.shape_cast %32 : vector<1x32x384xbf16> to vector<32x384xbf16>
    %34 = vector.shape_cast %31 : vector<32x384xbf16> to vector<1x32x384xbf16>
    tpu.vector_store %arg5[%c0_17, %c0_18, %c0_19], %34 {strides = array<i32>} : memref<1x32x384xbf16, #tpu.memory_space<vmem>>, vector<1x32x384xbf16>,
    return
  }
  func.func @transform_0(%arg0: i32) -> (i32, i32, i32) {
    %c0_i32 = arith.constant 0 : i32
    %c0_i32_0 = arith.constant 0 : i32
    %c0_i32_1 = arith.constant 0 : i32
    return %arg0, %c0_i32, %c0_i32_0 : i32, i32, i32
  }
  func.func @transform_1(%arg0: i32) -> (i32, i32, i32) {
    %c0_i32 = arith.constant 0 : i32
    %c0_i32_0 = arith.constant 0 : i32
    %c0_i32_1 = arith.constant 0 : i32
    %c0_i32_2 = arith.constant 0 : i32
    return %c0_i32, %c0_i32_0, %c0_i32_1 : i32, i32, i32
  }
  func.func @transform_2(%arg0: i32) -> (i32, i32) {
    %c0_i32 = arith.constant 0 : i32
    %c0_i32_0 = arith.constant 0 : i32
    %c0_i32_1 = arith.constant 0 : i32
    return %c0_i32, %c0_i32_0 : i32, i32
  }
  func.func @transform_3(%arg0: i32) -> (i32, i32) {
    %c0_i32 = arith.constant 0 : i32
    %c0_i32_0 = arith.constant 0 : i32
    %c0_i32_1 = arith.constant 0 : i32
    return %c0_i32, %c0_i32_0 : i32, i32
  }
  func.func @transform_4(%arg0: i32) -> (i32, i32, i32) {
    %c0_i32 = arith.constant 0 : i32
    %c0_i32_0 = arith.constant 0 : i32
    %c0_i32_1 = arith.constant 0 : i32
    return %arg0, %c0_i32, %c0_i32_0 : i32, i32, i32
  }
}

module attributes {stable_mosaic.version = 11 : i64} {
  func.func @conv_bn_lrelu_kernel(%arg0: i32, %arg1: memref<1x32x456xbf16, #tpu.memory_space<vmem>>, %arg2: memref<3x32x96xbf16, #tpu.memory_space<vmem>>, %arg3: memref<32x1xf32, #tpu.memory_space<vmem>>, %arg4: memref<32x1xf32, #tpu.memory_space<vmem>>, %arg5: memref<1x32x384xbf16, #tpu.memory_space<vmem>>) attributes {dimension_semantics = [#tpu.dimension_semantics<parallel>], iteration_bounds = array<i64: 2>, scalar_prefetch = 0 : i64, scratch_operands = 0 : i64, tpu.core_type = #tpu.core_type<tc>, window_params = [{transform_indices = @transform_0, window_bounds = array<i64: 1, 32, 456>}, {pipeline_mode = #tpu.pipeline_mode<synchronous>, transform_indices = @transform_1, window_bounds = array<i64: 3, 32, 96>}, {pipeline_mode = #tpu.pipeline_mode<synchronous>, transform_indices = @transform_2, window_bounds = array<i64: 32, 1>}, {pipeline_mode = #tpu.pipeline_mode<synchronous>, transform_indices = @transform_3, window_bounds = array<i64: 32, 1>}, {transform_indices = @transform_4, window_bounds = array<i64: 1, 32, 384>}]} {
    %c0 = arith.constant 0 : index
    %c0_0 = arith.constant 0 : index
    %c0_1 = arith.constant 0 : index
    %0 = vector.load %arg1[%c0, %c0_0, %c0_1] : memref<1x32x456xbf16, #tpu.memory_space<vmem>>, vector<1x32x456xbf16>
    %1 = vector.shape_cast %0 : vector<1x32x456xbf16> to vector<32x456xbf16>
    %2 = vector.extract_strided_slice %1 {offsets = [0, 0], sizes = [32, 432], strides = [1, 1]} : vector<32x456xbf16> to vector<32x432xbf16>
    %3 = vector.extract_strided_slice %1 {offsets = [0, 1], sizes = [32, 432], strides = [1, 1]} : vector<32x456xbf16> to vector<32x432xbf16>
    %4 = vector.extract_strided_slice %1 {offsets = [0, 2], sizes = [32, 432], strides = [1, 1]} : vector<32x456xbf16> to vector<32x432xbf16>
    %5 = tpu.concatenate %2, %3, %4 in 0 : vector<32x432xbf16>, vector<32x432xbf16>, vector<32x432xbf16> -> vector<96x432xbf16>
    %c0_2 = arith.constant 0 : index
    %c0_3 = arith.constant 0 : index
    %c0_4 = arith.constant 0 : index
    %6 = vector.load %arg2[%c0_2, %c0_3, %c0_4] : memref<3x32x96xbf16, #tpu.memory_space<vmem>>, vector<1x32x96xbf16>
    %7 = vector.shape_cast %6 : vector<1x32x96xbf16> to vector<32x96xbf16>
    %cst = arith.constant dense<0.000000e+00> : vector<32x432xf32>
    %8 = tpu.matmul %7, %5, %cst {dimension_numbers = #tpu.dot_dimension_numbers<[1], [0], [0], [1], [0, 0, 1, 1], [], []>} : vector<32x96xbf16>, vector<96x432xbf16>, vector<32x432xf32> -> vector<32x432xf32>
    %9 = vector.extract_strided_slice %8 {offsets = [0, 0], sizes = [32, 384], strides = [1, 1]} : vector<32x432xf32> to vector<32x384xf32>
    %c1 = arith.constant 1 : index
    %c0_5 = arith.constant 0 : index
    %c0_6 = arith.constant 0 : index
    %10 = vector.load %arg2[%c1, %c0_5, %c0_6] : memref<3x32x96xbf16, #tpu.memory_space<vmem>>, vector<1x32x96xbf16>
    %11 = vector.shape_cast %10 : vector<1x32x96xbf16> to vector<32x96xbf16>
    %cst_7 = arith.constant dense<0.000000e+00> : vector<32x432xf32>
    %12 = tpu.matmul %11, %5, %cst_7 {dimension_numbers = #tpu.dot_dimension_numbers<[1], [0], [0], [1], [0, 0, 1, 1], [], []>} : vector<32x96xbf16>, vector<96x432xbf16>, vector<32x432xf32> -> vector<32x432xf32>
    %13 = vector.extract_strided_slice %12 {offsets = [0, 24], sizes = [32, 384], strides = [1, 1]} : vector<32x432xf32> to vector<32x384xf32>
    %14 = arith.addf %9, %13 : vector<32x384xf32>
    %c2 = arith.constant 2 : index
    %c0_8 = arith.constant 0 : index
    %c0_9 = arith.constant 0 : index
    %15 = vector.load %arg2[%c2, %c0_8, %c0_9] : memref<3x32x96xbf16, #tpu.memory_space<vmem>>, vector<1x32x96xbf16>
    %16 = vector.shape_cast %15 : vector<1x32x96xbf16> to vector<32x96xbf16>
    %cst_10 = arith.constant dense<0.000000e+00> : vector<32x432xf32>
    %17 = tpu.matmul %16, %5, %cst_10 {dimension_numbers = #tpu.dot_dimension_numbers<[1], [0], [0], [1], [0, 0, 1, 1], [], []>} : vector<32x96xbf16>, vector<96x432xbf16>, vector<32x432xf32> -> vector<32x432xf32>
    %18 = vector.extract_strided_slice %17 {offsets = [0, 48], sizes = [32, 384], strides = [1, 1]} : vector<32x432xf32> to vector<32x384xf32>
    %19 = arith.addf %14, %18 : vector<32x384xf32>
    %c0_11 = arith.constant 0 : index
    %c0_12 = arith.constant 0 : index
    %20 = vector.load %arg3[%c0_11, %c0_12] : memref<32x1xf32, #tpu.memory_space<vmem>>, vector<32x1xf32>
    %21 = vector.broadcast %20 : vector<32x1xf32> to vector<32x384xf32>
    %22 = arith.mulf %19, %21 : vector<32x384xf32>
    %c0_13 = arith.constant 0 : index
    %c0_14 = arith.constant 0 : index
    %23 = vector.load %arg4[%c0_13, %c0_14] : memref<32x1xf32, #tpu.memory_space<vmem>>, vector<32x1xf32>
    %24 = vector.broadcast %23 : vector<32x1xf32> to vector<32x384xf32>
    %25 = arith.addf %22, %24 : vector<32x384xf32>
    %cst_15 = arith.constant 0.000000e+00 : f32
    %26 = vector.broadcast %cst_15 : f32 to vector<32x384xf32>
    %27 = arith.cmpf oge, %25, %26 : vector<32x384xf32>
    %cst_16 = arith.constant 0.00999999977 : f32
    %28 = vector.broadcast %cst_16 : f32 to vector<32x384xf32>
    %29 = arith.mulf %28, %25 : vector<32x384xf32>
    %30 = arith.select %27, %25, %29 : vector<32x384xi1>, vector<32x384xf32>
    %31 = arith.truncf %30 : vector<32x384xf32> to vector<32x384xbf16>
    %c0_17 = arith.constant 0 : index
    %c0_18 = arith.constant 0 : index
    %c0_19 = arith.constant 0 : index
    %32 = vector.load %arg5[%c0_17, %c0_18, %c0_19] : memref<1x32x384xbf16, #tpu.memory_space<vmem>>, vector<1x32x384xbf16>
    %33 = vector.shape_cast %32 : vector<1x32x384xbf16> to vector<32x384xbf16>
    %34 = vector.shape_cast %31 : vector<32x384xbf16> to vector<1x32x384xbf16>
    tpu.vector_store %arg5[%c0_17, %c0_18, %c0_19], %34 {strides = array<i32>} : memref<1x32x384xbf16, #tpu.memory_space<vmem>>, vector<1x32x384xbf16>,
    return
  }
  func.func @transform_0(%arg0: i32) -> (i32, i32, i32) {
    %c0_i32 = arith.constant 0 : i32
    %c0_i32_0 = arith.constant 0 : i32
    %c0_i32_1 = arith.constant 0 : i32
    return %arg0, %c0_i32, %c0_i32_0 : i32, i32, i32
  }
  func.func @transform_1(%arg0: i32) -> (i32, i32, i32) {
    %c0_i32 = arith.constant 0 : i32
    %c0_i32_0 = arith.constant 0 : i32
    %c0_i32_1 = arith.constant 0 : i32
    %c0_i32_2 = arith.constant 0 : i32
    return %c0_i32, %c0_i32_0, %c0_i32_1 : i32, i32, i32
  }
  func.func @transform_2(%arg0: i32) -> (i32, i32) {
    %c0_i32 = arith.constant 0 : i32
    %c0_i32_0 = arith.constant 0 : i32
    %c0_i32_1 = arith.constant 0 : i32
    return %c0_i32, %c0_i32_0 : i32, i32
  }
  func.func @transform_3(%arg0: i32) -> (i32, i32) {
    %c0_i32 = arith.constant 0 : i32
    %c0_i32_0 = arith.constant 0 : i32
    %c0_i32_1 = arith.constant 0 : i32
    return %c0_i32, %c0_i32_0 : i32, i32
  }
  func.func @transform_4(%arg0: i32) -> (i32, i32, i32) {
    %c0_i32 = arith.constant 0 : i32
    %c0_i32_0 = arith.constant 0 : i32
    %c0_i32_1 = arith.constant 0 : i32
    return %arg0, %c0_i32, %c0_i32_0 : i32, i32, i32
  }
}

module attributes {stable_mosaic.version = 11 : i64} {
  func.func @conv_bn_lrelu_kernel(%arg0: i32, %arg1: memref<1x32x176xbf16, #tpu.memory_space<vmem>>, %arg2: memref<3x64x96xbf16, #tpu.memory_space<vmem>>, %arg3: memref<64x1xf32, #tpu.memory_space<vmem>>, %arg4: memref<64x1xf32, #tpu.memory_space<vmem>>, %arg5: memref<1x64x128xbf16, #tpu.memory_space<vmem>>) attributes {dimension_semantics = [#tpu.dimension_semantics<parallel>], iteration_bounds = array<i64: 2>, scalar_prefetch = 0 : i64, scratch_operands = 0 : i64, tpu.core_type = #tpu.core_type<tc>, window_params = [{transform_indices = @transform_0, window_bounds = array<i64: 1, 32, 176>}, {pipeline_mode = #tpu.pipeline_mode<synchronous>, transform_indices = @transform_1, window_bounds = array<i64: 3, 64, 96>}, {pipeline_mode = #tpu.pipeline_mode<synchronous>, transform_indices = @transform_2, window_bounds = array<i64: 64, 1>}, {pipeline_mode = #tpu.pipeline_mode<synchronous>, transform_indices = @transform_3, window_bounds = array<i64: 64, 1>}, {transform_indices = @transform_4, window_bounds = array<i64: 1, 64, 128>}]} {
    %c0 = arith.constant 0 : index
    %c0_0 = arith.constant 0 : index
    %c0_1 = arith.constant 0 : index
    %0 = vector.load %arg1[%c0, %c0_0, %c0_1] : memref<1x32x176xbf16, #tpu.memory_space<vmem>>, vector<1x32x176xbf16>
    %1 = vector.shape_cast %0 : vector<1x32x176xbf16> to vector<32x176xbf16>
    %2 = vector.extract_strided_slice %1 {offsets = [0, 0], sizes = [32, 160], strides = [1, 1]} : vector<32x176xbf16> to vector<32x160xbf16>
    %3 = vector.extract_strided_slice %1 {offsets = [0, 1], sizes = [32, 160], strides = [1, 1]} : vector<32x176xbf16> to vector<32x160xbf16>
    %4 = vector.extract_strided_slice %1 {offsets = [0, 2], sizes = [32, 160], strides = [1, 1]} : vector<32x176xbf16> to vector<32x160xbf16>
    %5 = tpu.concatenate %2, %3, %4 in 0 : vector<32x160xbf16>, vector<32x160xbf16>, vector<32x160xbf16> -> vector<96x160xbf16>
    %c0_2 = arith.constant 0 : index
    %c0_3 = arith.constant 0 : index
    %c0_4 = arith.constant 0 : index
    %6 = vector.load %arg2[%c0_2, %c0_3, %c0_4] : memref<3x64x96xbf16, #tpu.memory_space<vmem>>, vector<1x64x96xbf16>
    %7 = vector.shape_cast %6 : vector<1x64x96xbf16> to vector<64x96xbf16>
    %cst = arith.constant dense<0.000000e+00> : vector<64x160xf32>
    %8 = tpu.matmul %7, %5, %cst {dimension_numbers = #tpu.dot_dimension_numbers<[1], [0], [0], [1], [0, 0, 1, 1], [], []>} : vector<64x96xbf16>, vector<96x160xbf16>, vector<64x160xf32> -> vector<64x160xf32>
    %9 = vector.extract_strided_slice %8 {offsets = [0, 0], sizes = [64, 128], strides = [1, 1]} : vector<64x160xf32> to vector<64x128xf32>
    %c1 = arith.constant 1 : index
    %c0_5 = arith.constant 0 : index
    %c0_6 = arith.constant 0 : index
    %10 = vector.load %arg2[%c1, %c0_5, %c0_6] : memref<3x64x96xbf16, #tpu.memory_space<vmem>>, vector<1x64x96xbf16>
    %11 = vector.shape_cast %10 : vector<1x64x96xbf16> to vector<64x96xbf16>
    %cst_7 = arith.constant dense<0.000000e+00> : vector<64x160xf32>
    %12 = tpu.matmul %11, %5, %cst_7 {dimension_numbers = #tpu.dot_dimension_numbers<[1], [0], [0], [1], [0, 0, 1, 1], [], []>} : vector<64x96xbf16>, vector<96x160xbf16>, vector<64x160xf32> -> vector<64x160xf32>
    %13 = vector.extract_strided_slice %12 {offsets = [0, 16], sizes = [64, 128], strides = [1, 1]} : vector<64x160xf32> to vector<64x128xf32>
    %14 = arith.addf %9, %13 : vector<64x128xf32>
    %c2 = arith.constant 2 : index
    %c0_8 = arith.constant 0 : index
    %c0_9 = arith.constant 0 : index
    %15 = vector.load %arg2[%c2, %c0_8, %c0_9] : memref<3x64x96xbf16, #tpu.memory_space<vmem>>, vector<1x64x96xbf16>
    %16 = vector.shape_cast %15 : vector<1x64x96xbf16> to vector<64x96xbf16>
    %cst_10 = arith.constant dense<0.000000e+00> : vector<64x160xf32>
    %17 = tpu.matmul %16, %5, %cst_10 {dimension_numbers = #tpu.dot_dimension_numbers<[1], [0], [0], [1], [0, 0, 1, 1], [], []>} : vector<64x96xbf16>, vector<96x160xbf16>, vector<64x160xf32> -> vector<64x160xf32>
    %18 = vector.extract_strided_slice %17 {offsets = [0, 32], sizes = [64, 128], strides = [1, 1]} : vector<64x160xf32> to vector<64x128xf32>
    %19 = arith.addf %14, %18 : vector<64x128xf32>
    %c0_11 = arith.constant 0 : index
    %c0_12 = arith.constant 0 : index
    %20 = vector.load %arg3[%c0_11, %c0_12] : memref<64x1xf32, #tpu.memory_space<vmem>>, vector<64x1xf32>
    %21 = vector.broadcast %20 : vector<64x1xf32> to vector<64x128xf32>
    %22 = arith.mulf %19, %21 : vector<64x128xf32>
    %c0_13 = arith.constant 0 : index
    %c0_14 = arith.constant 0 : index
    %23 = vector.load %arg4[%c0_13, %c0_14] : memref<64x1xf32, #tpu.memory_space<vmem>>, vector<64x1xf32>
    %24 = vector.broadcast %23 : vector<64x1xf32> to vector<64x128xf32>
    %25 = arith.addf %22, %24 : vector<64x128xf32>
    %cst_15 = arith.constant 0.000000e+00 : f32
    %26 = vector.broadcast %cst_15 : f32 to vector<64x128xf32>
    %27 = arith.cmpf oge, %25, %26 : vector<64x128xf32>
    %cst_16 = arith.constant 0.00999999977 : f32
    %28 = vector.broadcast %cst_16 : f32 to vector<64x128xf32>
    %29 = arith.mulf %28, %25 : vector<64x128xf32>
    %30 = arith.select %27, %25, %29 : vector<64x128xi1>, vector<64x128xf32>
    %31 = arith.truncf %30 : vector<64x128xf32> to vector<64x128xbf16>
    %c0_17 = arith.constant 0 : index
    %c0_18 = arith.constant 0 : index
    %c0_19 = arith.constant 0 : index
    %32 = vector.load %arg5[%c0_17, %c0_18, %c0_19] : memref<1x64x128xbf16, #tpu.memory_space<vmem>>, vector<1x64x128xbf16>
    %33 = vector.shape_cast %32 : vector<1x64x128xbf16> to vector<64x128xbf16>
    %34 = vector.shape_cast %31 : vector<64x128xbf16> to vector<1x64x128xbf16>
    tpu.vector_store %arg5[%c0_17, %c0_18, %c0_19], %34 {strides = array<i32>} : memref<1x64x128xbf16, #tpu.memory_space<vmem>>, vector<1x64x128xbf16>,
    return
  }
  func.func @transform_0(%arg0: i32) -> (i32, i32, i32) {
    %c0_i32 = arith.constant 0 : i32
    %c0_i32_0 = arith.constant 0 : i32
    %c0_i32_1 = arith.constant 0 : i32
    return %arg0, %c0_i32, %c0_i32_0 : i32, i32, i32
  }
  func.func @transform_1(%arg0: i32) -> (i32, i32, i32) {
    %c0_i32 = arith.constant 0 : i32
    %c0_i32_0 = arith.constant 0 : i32
    %c0_i32_1 = arith.constant 0 : i32
    %c0_i32_2 = arith.constant 0 : i32
    return %c0_i32, %c0_i32_0, %c0_i32_1 : i32, i32, i32
  }
  func.func @transform_2(%arg0: i32) -> (i32, i32) {
    %c0_i32 = arith.constant 0 : i32
    %c0_i32_0 = arith.constant 0 : i32
    %c0_i32_1 = arith.constant 0 : i32
    return %c0_i32, %c0_i32_0 : i32, i32
  }
  func.func @transform_3(%arg0: i32) -> (i32, i32) {
    %c0_i32 = arith.constant 0 : i32
    %c0_i32_0 = arith.constant 0 : i32
    %c0_i32_1 = arith.constant 0 : i32
    return %c0_i32, %c0_i32_0 : i32, i32
  }
  func.func @transform_4(%arg0: i32) -> (i32, i32, i32) {
    %c0_i32 = arith.constant 0 : i32
    %c0_i32_0 = arith.constant 0 : i32
    %c0_i32_1 = arith.constant 0 : i32
    return %arg0, %c0_i32, %c0_i32_0 : i32, i32, i32
  }
}

module attributes {stable_mosaic.version = 11 : i64} {
  func.func @linear_kernel(%arg0: i32, %arg1: memref<2x512xbf16, #tpu.memory_space<vmem>>, %arg2: memref<512x1000xbf16, #tpu.memory_space<vmem>>, %arg3: memref<1x1000xf32, #tpu.memory_space<vmem>>, %arg4: memref<2x1000xf32, #tpu.memory_space<vmem>>, %arg5: memref<2x1000xf32, #tpu.memory_space<vmem>>) attributes {dimension_semantics = [#tpu.dimension_semantics<arbitrary>], iteration_bounds = array<i64: 2>, scalar_prefetch = 0 : i64, scratch_operands = 1 : i64, tpu.core_type = #tpu.core_type<tc>, window_params = [{transform_indices = @transform_0, window_bounds = array<i64: 2, 512>}, {transform_indices = @transform_1, window_bounds = array<i64: 512, 1000>}, {pipeline_mode = #tpu.pipeline_mode<synchronous>, transform_indices = @transform_2, window_bounds = array<i64: 1, 1000>}, {pipeline_mode = #tpu.pipeline_mode<synchronous>, transform_indices = @transform_3, window_bounds = array<i64: 2, 1000>}]} {
    %c0_i32 = arith.constant 0 : i32
    %0 = arith.cmpi eq, %arg0, %c0_i32 : i32
    %1 = arith.extui %0 : i1 to i32
    %c0_i32_0 = arith.constant 0 : i32
    %2 = arith.cmpi ne, %1, %c0_i32_0 : i32
    scf.if %2 {
      %cst_9 = arith.constant 0.000000e+00 : f32
      %12 = vector.broadcast %cst_9 : f32 to vector<2x1000xf32>
      %c0_10 = arith.constant 0 : index
      %c0_11 = arith.constant 0 : index
      %13 = vector.load %arg5[%c0_10, %c0_11] : memref<2x1000xf32, #tpu.memory_space<vmem>>, vector<2x1000xf32>
      tpu.vector_store %arg5[%c0_10, %c0_11], %12 {strides = array<i32>} : memref<2x1000xf32, #tpu.memory_space<vmem>>, vector<2x1000xf32>,
    } else {
    }
    %c0 = arith.constant 0 : index
    %c0_1 = arith.constant 0 : index
    %3 = vector.load %arg5[%c0, %c0_1] : memref<2x1000xf32, #tpu.memory_space<vmem>>, vector<2x1000xf32>
    %c0_2 = arith.constant 0 : index
    %c0_3 = arith.constant 0 : index
    %4 = vector.load %arg1[%c0_2, %c0_3] : memref<2x512xbf16, #tpu.memory_space<vmem>>, vector<2x512xbf16>
    %c0_4 = arith.constant 0 : index
    %c0_5 = arith.constant 0 : index
    %5 = vector.load %arg2[%c0_4, %c0_5] : memref<512x1000xbf16, #tpu.memory_space<vmem>>, vector<512x1000xbf16>
    %cst = arith.constant dense<0.000000e+00> : vector<2x1000xf32>
    %6 = tpu.matmul %4, %5, %cst {dimension_numbers = #tpu.dot_dimension_numbers<[1], [0], [0], [1], [0, 0, 1, 1], [], []>} : vector<2x512xbf16>, vector<512x1000xbf16>, vector<2x1000xf32> -> vector<2x1000xf32>
    %7 = arith.addf %3, %6 : vector<2x1000xf32>
    %c0_6 = arith.constant 0 : index
    %c0_7 = arith.constant 0 : index
    %8 = vector.load %arg5[%c0_6, %c0_7] : memref<2x1000xf32, #tpu.memory_space<vmem>>, vector<2x1000xf32>
    tpu.vector_store %arg5[%c0_6, %c0_7], %7 {strides = array<i32>} : memref<2x1000xf32, #tpu.memory_space<vmem>>, vector<2x1000xf32>,
    %c1_i32 = arith.constant 1 : i32
    %9 = arith.cmpi eq, %arg0, %c1_i32 : i32
    %10 = arith.extui %9 : i1 to i32
    %c0_i32_8 = arith.constant 0 : i32
    %11 = arith.cmpi ne, %10, %c0_i32_8 : i32
    scf.if %11 {
      %c0_9 = arith.constant 0 : index
      %c0_10 = arith.constant 0 : index
      %12 = vector.load %arg5[%c0_9, %c0_10] : memref<2x1000xf32, #tpu.memory_space<vmem>>, vector<2x1000xf32>
      %c0_11 = arith.constant 0 : index
      %c0_12 = arith.constant 0 : index
      %13 = vector.load %arg3[%c0_11, %c0_12] : memref<1x1000xf32, #tpu.memory_space<vmem>>, vector<1x1000xf32>
      %14 = vector.broadcast %13 : vector<1x1000xf32> to vector<2x1000xf32>
      %15 = arith.addf %12, %14 : vector<2x1000xf32>
      %cst_13 = arith.constant 0.000000e+00 : f32
      %16 = vector.broadcast %cst_13 : f32 to vector<2x1000xf32>
      %17 = arith.maximumf %15, %16 : vector<2x1000xf32>
      %c0_14 = arith.constant 0 : index
      %c0_15 = arith.constant 0 : index
      %18 = vector.load %arg4[%c0_14, %c0_15] : memref<2x1000xf32, #tpu.memory_space<vmem>>, vector<2x1000xf32>
      tpu.vector_store %arg4[%c0_14, %c0_15], %17 {strides = array<i32>} : memref<2x1000xf32, #tpu.memory_space<vmem>>, vector<2x1000xf32>,
    } else {
    }
    return
  }
  func.func @transform_0(%arg0: i32) -> (i32, i32) {
    %c0_i32 = arith.constant 0 : i32
    %c0_i32_0 = arith.constant 0 : i32
    return %c0_i32, %arg0 : i32, i32
  }
  func.func @transform_1(%arg0: i32) -> (i32, i32) {
    %c0_i32 = arith.constant 0 : i32
    %c0_i32_0 = arith.constant 0 : i32
    return %arg0, %c0_i32 : i32, i32
  }
  func.func @transform_2(%arg0: i32) -> (i32, i32) {
    %c0_i32 = arith.constant 0 : i32
    %c0_i32_0 = arith.constant 0 : i32
    %c0_i32_1 = arith.constant 0 : i32
    return %c0_i32, %c0_i32_0 : i32, i32
  }
  func.func @transform_3(%arg0: i32) -> (i32, i32) {
    %c0_i32 = arith.constant 0 : i32
    %c0_i32_0 = arith.constant 0 : i32
    %c0_i32_1 = arith.constant 0 : i32
    return %c0_i32, %c0_i32_0 : i32, i32
  }
}

module attributes {stable_mosaic.version = 11 : i64} {
  func.func @linear_kernel(%arg0: i32, %arg1: memref<2x512xbf16, #tpu.memory_space<vmem>>, %arg2: memref<512x512xbf16, #tpu.memory_space<vmem>>, %arg3: memref<1x512xf32, #tpu.memory_space<vmem>>, %arg4: memref<2x512xf32, #tpu.memory_space<vmem>>, %arg5: memref<2x512xf32, #tpu.memory_space<vmem>>) attributes {dimension_semantics = [#tpu.dimension_semantics<arbitrary>], iteration_bounds = array<i64: 2>, scalar_prefetch = 0 : i64, scratch_operands = 1 : i64, tpu.core_type = #tpu.core_type<tc>, window_params = [{transform_indices = @transform_0, window_bounds = array<i64: 2, 512>}, {transform_indices = @transform_1, window_bounds = array<i64: 512, 512>}, {pipeline_mode = #tpu.pipeline_mode<synchronous>, transform_indices = @transform_2, window_bounds = array<i64: 1, 512>}, {pipeline_mode = #tpu.pipeline_mode<synchronous>, transform_indices = @transform_3, window_bounds = array<i64: 2, 512>}]} {
    %c0_i32 = arith.constant 0 : i32
    %0 = arith.cmpi eq, %arg0, %c0_i32 : i32
    %1 = arith.extui %0 : i1 to i32
    %c0_i32_0 = arith.constant 0 : i32
    %2 = arith.cmpi ne, %1, %c0_i32_0 : i32
    scf.if %2 {
      %cst_9 = arith.constant 0.000000e+00 : f32
      %12 = vector.broadcast %cst_9 : f32 to vector<2x512xf32>
      %c0_10 = arith.constant 0 : index
      %c0_11 = arith.constant 0 : index
      %13 = vector.load %arg5[%c0_10, %c0_11] : memref<2x512xf32, #tpu.memory_space<vmem>>, vector<2x512xf32>
      tpu.vector_store %arg5[%c0_10, %c0_11], %12 {strides = array<i32>} : memref<2x512xf32, #tpu.memory_space<vmem>>, vector<2x512xf32>,
    } else {
    }
    %c0 = arith.constant 0 : index
    %c0_1 = arith.constant 0 : index
    %3 = vector.load %arg5[%c0, %c0_1] : memref<2x512xf32, #tpu.memory_space<vmem>>, vector<2x512xf32>
    %c0_2 = arith.constant 0 : index
    %c0_3 = arith.constant 0 : index
    %4 = vector.load %arg1[%c0_2, %c0_3] : memref<2x512xbf16, #tpu.memory_space<vmem>>, vector<2x512xbf16>
    %c0_4 = arith.constant 0 : index
    %c0_5 = arith.constant 0 : index
    %5 = vector.load %arg2[%c0_4, %c0_5] : memref<512x512xbf16, #tpu.memory_space<vmem>>, vector<512x512xbf16>
    %cst = arith.constant dense<0.000000e+00> : vector<2x512xf32>
    %6 = tpu.matmul %4, %5, %cst {dimension_numbers = #tpu.dot_dimension_numbers<[1], [0], [0], [1], [0, 0, 1, 1], [], []>} : vector<2x512xbf16>, vector<512x512xbf16>, vector<2x512xf32> -> vector<2x512xf32>
    %7 = arith.addf %3, %6 : vector<2x512xf32>
    %c0_6 = arith.constant 0 : index
    %c0_7 = arith.constant 0 : index
    %8 = vector.load %arg5[%c0_6, %c0_7] : memref<2x512xf32, #tpu.memory_space<vmem>>, vector<2x512xf32>
    tpu.vector_store %arg5[%c0_6, %c0_7], %7 {strides = array<i32>} : memref<2x512xf32, #tpu.memory_space<vmem>>, vector<2x512xf32>,
    %c1_i32 = arith.constant 1 : i32
    %9 = arith.cmpi eq, %arg0, %c1_i32 : i32
    %10 = arith.extui %9 : i1 to i32
    %c0_i32_8 = arith.constant 0 : i32
    %11 = arith.cmpi ne, %10, %c0_i32_8 : i32
    scf.if %11 {
      %c0_9 = arith.constant 0 : index
      %c0_10 = arith.constant 0 : index
      %12 = vector.load %arg5[%c0_9, %c0_10] : memref<2x512xf32, #tpu.memory_space<vmem>>, vector<2x512xf32>
      %c0_11 = arith.constant 0 : index
      %c0_12 = arith.constant 0 : index
      %13 = vector.load %arg3[%c0_11, %c0_12] : memref<1x512xf32, #tpu.memory_space<vmem>>, vector<1x512xf32>
      %14 = vector.broadcast %13 : vector<1x512xf32> to vector<2x512xf32>
      %15 = arith.addf %12, %14 : vector<2x512xf32>
      %cst_13 = arith.constant 0.000000e+00 : f32
      %16 = vector.broadcast %cst_13 : f32 to vector<2x512xf32>
      %17 = arith.maximumf %15, %16 : vector<2x512xf32>
      %c0_14 = arith.constant 0 : index
      %c0_15 = arith.constant 0 : index
      %18 = vector.load %arg4[%c0_14, %c0_15] : memref<2x512xf32, #tpu.memory_space<vmem>>, vector<2x512xf32>
      tpu.vector_store %arg4[%c0_14, %c0_15], %17 {strides = array<i32>} : memref<2x512xf32, #tpu.memory_space<vmem>>, vector<2x512xf32>,
    } else {
    }
    return
  }
  func.func @transform_0(%arg0: i32) -> (i32, i32) {
    %c0_i32 = arith.constant 0 : i32
    %c0_i32_0 = arith.constant 0 : i32
    return %c0_i32, %arg0 : i32, i32
  }
  func.func @transform_1(%arg0: i32) -> (i32, i32) {
    %c0_i32 = arith.constant 0 : i32
    %c0_i32_0 = arith.constant 0 : i32
    return %arg0, %c0_i32 : i32, i32
  }
  func.func @transform_2(%arg0: i32) -> (i32, i32) {
    %c0_i32 = arith.constant 0 : i32
    %c0_i32_0 = arith.constant 0 : i32
    %c0_i32_1 = arith.constant 0 : i32
    return %c0_i32, %c0_i32_0 : i32, i32
  }
  func.func @transform_3(%arg0: i32) -> (i32, i32) {
    %c0_i32 = arith.constant 0 : i32
    %c0_i32_0 = arith.constant 0 : i32
    %c0_i32_1 = arith.constant 0 : i32
    return %c0_i32, %c0_i32_0 : i32, i32
  }
}

module attributes {stable_mosaic.version = 11 : i64} {
  func.func @linear_kernel(%arg0: i32, %arg1: memref<2x512xbf16, #tpu.memory_space<vmem>>, %arg2: memref<512x4xbf16, #tpu.memory_space<vmem>>, %arg3: memref<1x4xf32, #tpu.memory_space<vmem>>, %arg4: memref<2x4xf32, #tpu.memory_space<vmem>>, %arg5: memref<2x4xf32, #tpu.memory_space<vmem>>) attributes {dimension_semantics = [#tpu.dimension_semantics<arbitrary>], iteration_bounds = array<i64: 1>, scalar_prefetch = 0 : i64, scratch_operands = 1 : i64, tpu.core_type = #tpu.core_type<tc>, window_params = [{transform_indices = @transform_0, window_bounds = array<i64: 2, 512>}, {transform_indices = @transform_1, window_bounds = array<i64: 512, 4>}, {pipeline_mode = #tpu.pipeline_mode<synchronous>, transform_indices = @transform_2, window_bounds = array<i64: 1, 4>}, {pipeline_mode = #tpu.pipeline_mode<synchronous>, transform_indices = @transform_3, window_bounds = array<i64: 2, 4>}]} {
    %c0_i32 = arith.constant 0 : i32
    %0 = arith.cmpi eq, %arg0, %c0_i32 : i32
    %1 = arith.extui %0 : i1 to i32
    %c0_i32_0 = arith.constant 0 : i32
    %2 = arith.cmpi ne, %1, %c0_i32_0 : i32
    scf.if %2 {
      %cst_10 = arith.constant 0.000000e+00 : f32
      %12 = vector.broadcast %cst_10 : f32 to vector<2x4xf32>
      %c0_11 = arith.constant 0 : index
      %c0_12 = arith.constant 0 : index
      %13 = vector.load %arg5[%c0_11, %c0_12] : memref<2x4xf32, #tpu.memory_space<vmem>>, vector<2x4xf32>
      tpu.vector_store %arg5[%c0_11, %c0_12], %12 {strides = array<i32>} : memref<2x4xf32, #tpu.memory_space<vmem>>, vector<2x4xf32>,
    } else {
    }
    %c0 = arith.constant 0 : index
    %c0_1 = arith.constant 0 : index
    %3 = vector.load %arg5[%c0, %c0_1] : memref<2x4xf32, #tpu.memory_space<vmem>>, vector<2x4xf32>
    %c0_2 = arith.constant 0 : index
    %c0_3 = arith.constant 0 : index
    %4 = vector.load %arg1[%c0_2, %c0_3] : memref<2x512xbf16, #tpu.memory_space<vmem>>, vector<2x512xbf16>
    %c0_4 = arith.constant 0 : index
    %c0_5 = arith.constant 0 : index
    %5 = vector.load %arg2[%c0_4, %c0_5] : memref<512x4xbf16, #tpu.memory_space<vmem>>, vector<512x4xbf16>
    %cst = arith.constant dense<0.000000e+00> : vector<2x4xf32>
    %6 = tpu.matmul %4, %5, %cst {dimension_numbers = #tpu.dot_dimension_numbers<[1], [0], [0], [1], [0, 0, 1, 1], [], []>} : vector<2x512xbf16>, vector<512x4xbf16>, vector<2x4xf32> -> vector<2x4xf32>
    %7 = arith.addf %3, %6 : vector<2x4xf32>
    %c0_6 = arith.constant 0 : index
    %c0_7 = arith.constant 0 : index
    %8 = vector.load %arg5[%c0_6, %c0_7] : memref<2x4xf32, #tpu.memory_space<vmem>>, vector<2x4xf32>
    tpu.vector_store %arg5[%c0_6, %c0_7], %7 {strides = array<i32>} : memref<2x4xf32, #tpu.memory_space<vmem>>, vector<2x4xf32>,
    %c0_i32_8 = arith.constant 0 : i32
    %9 = arith.cmpi eq, %arg0, %c0_i32_8 : i32
    %10 = arith.extui %9 : i1 to i32
    %c0_i32_9 = arith.constant 0 : i32
    %11 = arith.cmpi ne, %10, %c0_i32_9 : i32
    scf.if %11 {
      %c0_10 = arith.constant 0 : index
      %c0_11 = arith.constant 0 : index
      %12 = vector.load %arg5[%c0_10, %c0_11] : memref<2x4xf32, #tpu.memory_space<vmem>>, vector<2x4xf32>
      %c0_12 = arith.constant 0 : index
      %c0_13 = arith.constant 0 : index
      %13 = vector.load %arg3[%c0_12, %c0_13] : memref<1x4xf32, #tpu.memory_space<vmem>>, vector<1x4xf32>
      %14 = vector.broadcast %13 : vector<1x4xf32> to vector<2x4xf32>
      %15 = arith.addf %12, %14 : vector<2x4xf32>
      %c0_14 = arith.constant 0 : index
      %c0_15 = arith.constant 0 : index
      %16 = vector.load %arg4[%c0_14, %c0_15] : memref<2x4xf32, #tpu.memory_space<vmem>>, vector<2x4xf32>
      tpu.vector_store %arg4[%c0_14, %c0_15], %15 {strides = array<i32>} : memref<2x4xf32, #tpu.memory_space<vmem>>, vector<2x4xf32>,
    } else {
    }
    return
  }
  func.func @transform_0(%arg0: i32) -> (i32, i32) {
    %c0_i32 = arith.constant 0 : i32
    %c0_i32_0 = arith.constant 0 : i32
    return %c0_i32, %arg0 : i32, i32
  }
  func.func @transform_1(%arg0: i32) -> (i32, i32) {
    %c0_i32 = arith.constant 0 : i32
    %c0_i32_0 = arith.constant 0 : i32
    return %arg0, %c0_i32 : i32, i32
  }
  func.func @transform_2(%arg0: i32) -> (i32, i32) {
    %c0_i32 = arith.constant 0 : i32
    %c0_i32_0 = arith.constant 0 : i32
    %c0_i32_1 = arith.constant 0 : i32
    return %c0_i32, %c0_i32_0 : i32, i32
  }
  func.func @transform_3(%arg0: i32) -> (i32, i32) {
    %c0_i32 = arith.constant 0 : i32
    %c0_i32_0 = arith.constant 0 : i32
    %c0_i32_1 = arith.constant 0 : i32
    return %c0_i32, %c0_i32_0 : i32, i32
  }
}

</mosaic_0001>

<llo_original>
// kernel: forward.6
$region0: #{forward.6}
  #allocation0 [shape = 'u32[]', space=smem, size = 0x4, offset = 0x4, fixed_abs, tag = 'smem constant byte address 0x4 - core index']
  #allocation1 [shape = 'u32[72,128]{1,0:T(1,128)}', space=vmem, size = 0x9000, scoped, tag = 'internal scratch']
  %s0 = inlined_call_operand.vmem [shape: bf16[2,3,456], index: 0, kind: input, shape index: {}]
  %s1 = inlined_call_operand.vmem [shape: bf16[3,32,9], index: 1, kind: input, shape index: {}]
  %s2 = inlined_call_operand.vmem [shape: f32[32,1], index: 2, kind: input, shape index: {}]
  %s3 = inlined_call_operand.vmem [shape: f32[32,1], index: 3, kind: input, shape index: {}]
  %s4 = inlined_call_operand.vmem [shape: bf16[2,32,384], index: 4, kind: output, shape index: {}]
  %s5 = sld [smem:[#allocation0]]
  $region49: #{forward.6} parent=0
    _
  %s7 = ssub.s32 1, %s5
  %s8 = scalar_select 0, %s7, %s5
  loop: start=0, step=1, limit=4
  $region2: #{forward.6} parent=0 // loop_pre_header
    _
  $region3: #{forward.6} parent=0 // loop_header
    %s10 = sphi 0, %s14
    %p11 = scmp.ge.s32.totalorder %s10, 4
    %s20 = sphi 0, %s22
    %s23 = sphi 0, %s20
    %s24 = sphi 0, %s23
    %s40 = sphi 0, %s24
    %s44 = sphi 0, %s44
    %s46 = sphi 0, %s44
    %s47 = sphi 0, %s46
    %s61 = sphi 0, %s47
    %s65 = sphi 0, %s65
    %s67 = sphi 0, %s65
    %s68 = sphi 0, %s67
    %s82 = sphi 0, %s68
    %s86 = sphi 0, %s86
    %s88 = sphi 0, %s86
    %s89 = sphi 0, %s88
    %s103 = sphi 0, %s89
    %s109 = sphi 0, %s111
    %s112 = sphi 0, %s109
    %s113 = sphi 0, %s112
    %s129 = sphi 0, %s113
  $region4: #{forward.6} parent=0 // loop_header_branch
    %13 = sbr.rel (%p11) target = $region8
  $region5: #{forward.6} parent=0 // loop_body
    %s15 = ssub.s32 %s10, 1
    %s16 = ssub.s32 %s10, 2
    %s17 = sadd.s32 %s10, 1
    %s18 = ssub.s32 %s10, %s17
    %p19 = scmp.eq.s32.totalorder %s18, 0
    %s21 = sadd.s32 %s20, 1
    %s22 = scalar_select %p19, %s20, %s21
    %p25 = pneg %p19
    %p26 = scmp.eq.s32.totalorder %s10, 1
    %p27 = por %p25, %p26
    %p28 = scmp.ne.s32.totalorder %s20, %s23
    %p29 = scmp.eq.s32.totalorder %s10, 0
    %p30 = por %p28, %p29
    %p31 = scmp.ne.s32.totalorder %s20, %s23
    %p32 = scmp.eq.s32.totalorder %s15, 1
    %p33 = por %p31, %p32
    %p34 = scmp.ne.s32.totalorder %s23, %s24
    %p35 = scmp.eq.s32.totalorder %s15, 0
    %p36 = por %p34, %p35
    %p37 = scmp.ne.s32.totalorder %s23, %s24
    %p38 = scmp.eq.s32.totalorder %s16, 1
    %p39 = por %p37, %p38
    %p41 = scmp.ne.s32.totalorder %s24, %s40
    %p42 = scmp.eq.s32.totalorder %s16, 0
    %p43 = por %p41, %p42
    %s45 = sadd.s32 %s44, 1
    %p48 = scmp.eq.s32.totalorder %s10, 1
    %p49 = scmp.ne.s32.totalorder %s44, %s46
    %p50 = scmp.eq.s32.totalorder %s10, 0
    %p51 = por %p49, %p50
    %p52 = scmp.ne.s32.totalorder %s44, %s46
    %p53 = scmp.eq.s32.totalorder %s15, 1
    %p54 = por %p52, %p53
    %p55 = scmp.ne.s32.totalorder %s46, %s47
    %p56 = scmp.eq.s32.totalorder %s15, 0
    %p57 = por %p55, %p56
    %p58 = scmp.ne.s32.totalorder %s46, %s47
    %p59 = scmp.eq.s32.totalorder %s16, 1
    %p60 = por %p58, %p59
    %p62 = scmp.ne.s32.totalorder %s47, %s61
    %p63 = scmp.eq.s32.totalorder %s16, 0
    %p64 = por %p62, %p63
    %s66 = sadd.s32 %s65, 1
    %p69 = scmp.eq.s32.totalorder %s10, 1
    %p70 = scmp.ne.s32.totalorder %s65, %s67
    %p71 = scmp.eq.s32.totalorder %s10, 0
    %p72 = por %p70, %p71
    %p73 = scmp.ne.s32.totalorder %s65, %s67
    %p74 = scmp.eq.s32.totalorder %s15, 1
    %p75 = por %p73, %p74
    %p76 = scmp.ne.s32.totalorder %s67, %s68
    %p77 = scmp.eq.s32.totalorder %s15, 0
    %p78 = por %p76, %p77
    %p79 = scmp.ne.s32.totalorder %s67, %s68
    %p80 = scmp.eq.s32.totalorder %s16, 1
    %p81 = por %p79, %p80
    %p83 = scmp.ne.s32.totalorder %s68, %s82
    %p84 = scmp.eq.s32.totalorder %s16, 0
    %p85 = por %p83, %p84
    %s87 = sadd.s32 %s86, 1
    %p90 = scmp.eq.s32.totalorder %s10, 1
    %p91 = scmp.ne.s32.totalorder %s86, %s88
    %p92 = scmp.eq.s32.totalorder %s10, 0
    %p93 = por %p91, %p92
    %p94 = scmp.ne.s32.totalorder %s86, %s88
    %p95 = scmp.eq.s32.totalorder %s15, 1
    %p96 = por %p94, %p95
    %p97 = scmp.ne.s32.totalorder %s88, %s89
    %p98 = scmp.eq.s32.totalorder %s15, 0
    %p99 = por %p97, %p98
    %p100 = scmp.ne.s32.totalorder %s88, %s89
    %p101 = scmp.eq.s32.totalorder %s16, 1
    %p102 = por %p100, %p101
    %p104 = scmp.ne.s32.totalorder %s89, %s103
    %p105 = scmp.eq.s32.totalorder %s16, 0
    %p106 = por %p104, %p105
    %s107 = ssub.s32 %s10, %s17
    %p108 = scmp.eq.s32.totalorder %s107, 0
    %s110 = sadd.s32 %s109, 1
    %s111 = scalar_select %p108, %s109, %s110
    %p114 = pneg %p108
    %p115 = scmp.eq.s32.totalorder %s10, 1
    %p116 = por %p114, %p115
    %p117 = scmp.ne.s32.totalorder %s109, %s112
    %p118 = scmp.eq.s32.totalorder %s10, 0
    %p119 = por %p117, %p118
    %p120 = scmp.ne.s32.totalorder %s109, %s112
    %p121 = scmp.eq.s32.totalorder %s15, 1
    %p122 = por %p120, %p121
    %p123 = scmp.ne.s32.totalorder %s112, %s113
    %p124 = scmp.eq.s32.totalorder %s15, 0
    %p125 = por %p123, %p124
    %p126 = scmp.ne.s32.totalorder %s112, %s113
    %p127 = scmp.eq.s32.totalorder %s16, 1
    %p128 = por %p126, %p127
    %p130 = scmp.ne.s32.totalorder %s113, %s129
    %p131 = scmp.eq.s32.totalorder %s16, 0
    %p132 = por %p130, %p131
    %p133 = scmp.le.s32.totalorder 1, %s10
    %p134 = scmp.lt.s32.totalorder %s10, 3
    %p135 = pnand %p133, %p134
    %p136 = pneg %p135
    // Predicated region
    $region9: #{forward.6} parent=5 // pred_check
      _
    $region10: #{forward.6} parent=5 // pred_check_branch
      %138 = sbr.rel (%p135) target = $region12
    $region11: #{forward.6} parent=5 // pred_region
      %s139 = ssub.s32 %s10, 1
      // Predicated region
      $region13: #{forward.6} parent=11 // pred_check
        %p140 = pneg %p57
      $region14: #{forward.6} parent=11 // pred_check_branch
        %142 = sbr.rel (%p140) target = $region16
      $region15: #{forward.6} parent=11 // pred_region
        _
      $region16: #{forward.6} parent=11 // pred_fallthru
        _
      // Predicated region
      $region17: #{forward.6} parent=11 // pred_check
        %p143 = pneg %p78
      $region18: #{forward.6} parent=11 // pred_check_branch
        %145 = sbr.rel (%p143) target = $region20
      $region19: #{forward.6} parent=11 // pred_region
        _
      $region20: #{forward.6} parent=11 // pred_fallthru
        _
      // Predicated region
      $region21: #{forward.6} parent=11 // pred_check
        %p146 = pneg %p99
      $region22: #{forward.6} parent=11 // pred_check_branch
        %148 = sbr.rel (%p146) target = $region24
      $region23: #{forward.6} parent=11 // pred_region
        _
      $region24: #{forward.6} parent=11 // pred_fallthru
        _
    $region12: #{forward.6} parent=5 // pred_fallthru
      _
    %p149 = scmp.lt.s32.totalorder %s10, 2
    // Predicated region
    $region25: #{forward.6} parent=5 // pred_check
      %p150 = pneg %p149
    $region26: #{forward.6} parent=5 // pred_check_branch
      %152 = sbr.rel (%p150) target = $region28
    $region27: #{forward.6} parent=5 // pred_region
      // Predicated region
      $region29: #{forward.6} parent=27 // pred_check
        %p153 = pneg %p30
      $region30: #{forward.6} parent=27 // pred_check_branch
        %155 = sbr.rel (%p153) target = $region32
      $region31: #{forward.6} parent=27 // pred_region
        %p156 = scmp.lt.s32.totalorder %s10, 1
        %s157 = scalar_select %p156, %s10, 1
        %s158 = smul.addr %s157, 4
        %s159 = smul.addr %s158, 2
        %s160 = scalar_lea.vmem %s0, %s159
      $region32: #{forward.6} parent=27 // pred_fallthru
        _
    $region28: #{forward.6} parent=5 // pred_fallthru
      _
    %p161 = scmp.le.s32.totalorder 1, %s10
    %p162 = scmp.lt.s32.totalorder %s10, 3
    %p163 = pnand %p161, %p162
    %p164 = pneg %p163
    // Predicated region
    $region33: #{forward.6} parent=5 // pred_check
      _
    $region34: #{forward.6} parent=5 // pred_check_branch
      %166 = sbr.rel (%p163) target = $region36
    $region35: #{forward.6} parent=5 // pred_region
      %s167 = ssub.s32 %s10, 1
      %p168 = scmp.lt.s32.totalorder %s15, 1
      %s169 = scalar_select %p168, %s15, 1
      %s170 = smul.addr %s169, 4
      %s171 = smul.addr %s170, 2
      %s172 = scalar_lea.vmem %s0, %s171
      %p173 = pneg %p36
      %p174 = pneg %p33
      %p175 = pneg %p57
      %p176 = pneg %p54
      %p177 = pneg %p78
      %p178 = pneg %p75
      %p179 = pneg %p99
      %p180 = pneg %p96
      %p181 = pneg %p125
      %p182 = pneg %p122
      %p183 = scmp.lt.s32.totalorder %s15, 1
      %s184 = scalar_select %p183, %s15, 1
      %s185 = smul.addr %s184, 12
      %s186 = smul.addr %s185, 4
      %s187 = scalar_lea.vmem %s4, %s186
      %p188 = scmp.lt.s32.totalorder %s15, 1
      %s189 = scalar_select %p188, %s15, 1
      %s190 = smul.addr %s189, 4
      %s191 = smul.addr %s190, 2
      %s192 = scalar_lea.vmem %s0, %s191
      %p193 = scmp.lt.s32.totalorder %s15, 1
      %s194 = scalar_select %p193, %s15, 1
      %s195 = smul.addr %s194, 12
      %s196 = smul.addr %s195, 4
      %s197 = scalar_lea.vmem %s4, %s196
      %v199 = vld [vmem:[%s192] sm:$0xff]
      %201 = vst [vmem:[#allocation1] ss:$4 sm:$0xff] %v199
      %v202 = vld.sshfl [vmem:[#allocation1] sm:$0xff pattern:$0x73625140]
      %v203 = vld.sshfl [vmem:[#allocation1 + $0x8] sm:$0xff pattern:$0x73625140]
      %v204 = vld.sshfl [vmem:[#allocation1 + $0x10] sm:$0xff pattern:$0x73625140]
      %v205 = vld.sshfl [vmem:[#allocation1 + $0x18] sm:$0xff pattern:$0x73625140]
      %210 = vst [vmem:[#allocation1] ss:$4 sm:$0xff] %v199
      %v211 = vld.sshfl [vmem:[#allocation1] sm:$0xff pattern:$0x73625140]
      %v212 = vld.sshfl [vmem:[#allocation1 + $0x8] sm:$0xff pattern:$0x73625140]
      %v213 = vld.sshfl [vmem:[#allocation1 + $0x10] sm:$0xff pattern:$0x73625140]
      %v214 = vld.sshfl [vmem:[#allocation1 + $0x18] sm:$0xff pattern:$0x73625140]
      %v215 = vshrl.u32 %v211, 16
      %v217 = vrot.slane %v215, 6
      %v218 = vshll.u32 %v211, 16
      %v220 = vrot.slane %v218, 7
      %v221 = vor.u32 %v217, %v220
      %v222 = vshrl.u32 %v212, 16
      %v224 = vrot.slane %v222, 6
      %v225 = vshll.u32 %v212, 16
      %v227 = vrot.slane %v225, 7
      %v228 = vor.u32 %v224, %v227
      %v229 = vshrl.u32 %v213, 16
      %v231 = vrot.slane %v229, 6
      %v232 = vshll.u32 %v213, 16
      %v234 = vrot.slane %v232, 7
      %v235 = vor.u32 %v231, %v234
      %v236 = vshrl.u32 %v214, 16
      %v238 = vrot.slane %v236, 6
      %v239 = vshll.u32 %v214, 16
      %v241 = vrot.slane %v239, 7
      %v242 = vor.u32 %v238, %v241
      %243 = vrot.lane.b32.xlu0 %v221, 127
      %v244 = vpop.permute.xlu0 %243
      %245 = vrot.lane.b32.xlu0 %v228, 127
      %v246 = vpop.permute.xlu0 %245
      %247 = vrot.lane.b32.xlu0 %v235, 127
      %v248 = vpop.permute.xlu0 %247
      %249 = vrot.lane.b32.xlu0 %v242, 127
      %v250 = vpop.permute.xlu0 %249
      %vm251 = vcmask 1039360
      %v252 = vsel %vm251, %v244, %v246
      %v253 = vsel %vm251, %v246, %v248
      %v254 = vsel %vm251, %v248, %v250
      %259 = vst [vmem:[#allocation1] ss:$4 sm:$0xff] %v199
      %v260 = vld.sshfl [vmem:[#allocation1] sm:$0xff pattern:$0x73625140]
      %v262 = vld.sshfl [vmem:[#allocation1 + $0x8] sm:$0xff pattern:$0x73625140]
      %v264 = vld.sshfl [vmem:[#allocation1 + $0x10] sm:$0xff pattern:$0x73625140]
      %v266 = vld.sshfl [vmem:[#allocation1 + $0x18] sm:$0xff pattern:$0x73625140]
      %v268 = vrot.slane %v260, 5
      %v269 = vrot.slane %v262, 5
      %v270 = vrot.slane %v264, 5
      %v271 = vrot.slane %v266, 5
      %272 = vrot.lane.b32.xlu0 %v268, 126
      %v273 = vpop.permute.xlu0 %272
      %274 = vrot.lane.b32.xlu0 %v269, 126
      %v275 = vpop.permute.xlu0 %274
      %276 = vrot.lane.b32.xlu0 %v270, 126
      %v277 = vpop.permute.xlu0 %276
      %278 = vrot.lane.b32.xlu0 %v271, 126
      %v279 = vpop.permute.xlu0 %278
      %vm280 = vcmask 1031168
      %v281 = vsel %vm280, %v273, %v275
      %v282 = vsel %vm280, %v275, %v277
      %v283 = vsel %vm280, %v277, %v279
      %vm284 = vcmask 1041408
      %vm285 = vsmask.f32 1280
      %vm286 = vmand %vm284, %vm285
      %v287 = vsel %vm286, %v202, %v252
      %v288 = vsel %vm286, %v203, %v253
      %v289 = vsel %vm286, %v204, %v254
      %v290 = vsel %vm286, %v205, %v250
      %vm291 = vcmask 1042432
      %v294 = vsel %vm291, %v287, %v281
      %v297 = vsel %vm291, %v288, %v282
      %v300 = vsel %vm291, %v289, %v283
      %v303 = vsel %vm291, %v290, %v279
      %v304 = vld [vmem:[%s1] sm:$0xf]
      %v305 = vld [vmem:[%s1 + $0x4] sm:$0xf]
      %v306 = vld [vmem:[%s1 + $0x8] sm:$0xf]
      %v307 = vld [vmem:[%s1 + $0xc] sm:$0xf]
      %v312 = vunpack.c.l.b16 %v304
      %v313 = vunpack.c.l.b16 %v305
      %v314 = vunpack.c.l.b16 %v306
      %v315 = vunpack.c.l.b16 %v307
      %v316 = vpack.c.b16 %v313, %v312
      %v317 = vpack.c.b16 %v315, %v314
      %vm318 = vcmask 72704
      %v320 = vsel %vm318, %v316, 0
      %v323 = vsel %vm318, %v317, 0
      %vm325 = vcmask 1043456
      %vm326 = vcmask 1044480
      %v327 = vsel %vm325, 4294967295, 65535
      %v328 = vsel %vm326, %v327, 0
      %v329 = vand.u32 %v294, %v328
      %v331 = vand.u32 %v297, %v328
      %v333 = vand.u32 %v300, %v328
      %335 = vmatpush.bf16.msra.mxu0 0
      %336 = vmatpush.bf16.msra.mxu0 0
      %337 = vmatpush.bf16.msra.mxu0 0
      %338 = vmatpush.bf16.msra.mxu0 0
      %339 = vmatpush.bf16.msra.mxu0 0
      %340 = vmatpush.bf16.msra.mxu0 0
      %341 = vmatpush.bf16.msra.mxu0 0
      %342 = vmatpush.bf16.msra.mxu0 %v329
      %343 = vmatmul.bf16.gmra.mxu0 %v320
      %v344 = vpop.f32.mrf.mxu0
      %v345 = vadd.f32 0.0, %v344
      %v346 = vpop.f32.mrf.mxu0
      %v347 = vadd.f32 0.0, %v346
      %348 = vmatmul.bf16.gmra.mxu0 %v323
      %v349 = vpop.f32.mrf.mxu0
      %v350 = vadd.f32 0.0, %v349
      %v351 = vpop.f32.mrf.mxu0
      %v352 = vadd.f32 0.0, %v351
      %353 = vdwg.mxu0
      %354 = vmatpush.bf16.msra.mxu0 0
      %355 = vmatpush.bf16.msra.mxu0 0
      %356 = vmatpush.bf16.msra.mxu0 0
      %357 = vmatpush.bf16.msra.mxu0 0
      %358 = vmatpush.bf16.msra.mxu0 0
      %359 = vmatpush.bf16.msra.mxu0 0
      %360 = vmatpush.bf16.msra.mxu0 0
      %361 = vmatpush.bf16.msra.mxu0 %v331
      %362 = vmatmul.bf16.gmra.mxu0 %v320
      %v363 = vpop.f32.mrf.mxu0
      %v364 = vadd.f32 0.0, %v363
      %v365 = vpop.f32.mrf.mxu0
      %v366 = vadd.f32 0.0, %v365
      %367 = vmatmul.bf16.gmra.mxu0 %v323
      %v368 = vpop.f32.mrf.mxu0
      %v369 = vadd.f32 0.0, %v368
      %v370 = vpop.f32.mrf.mxu0
      %v371 = vadd.f32 0.0, %v370
      %372 = vdwg.mxu0
      %373 = vmatpush.bf16.msra.mxu0 0
      %374 = vmatpush.bf16.msra.mxu0 0
      %375 = vmatpush.bf16.msra.mxu0 0
      %376 = vmatpush.bf16.msra.mxu0 0
      %377 = vmatpush.bf16.msra.mxu0 0
      %378 = vmatpush.bf16.msra.mxu0 0
      %379 = vmatpush.bf16.msra.mxu0 0
      %380 = vmatpush.bf16.msra.mxu0 %v333
      %381 = vmatmul.bf16.gmra.mxu0 %v320
      %v382 = vpop.f32.mrf.mxu0
      %v383 = vadd.f32 0.0, %v382
      %v384 = vpop.f32.mrf.mxu0
      %v385 = vadd.f32 0.0, %v384
      %386 = vmatmul.bf16.gmra.mxu0 %v323
      %v387 = vpop.f32.mrf.mxu0
      %v388 = vadd.f32 0.0, %v387
      %v389 = vpop.f32.mrf.mxu0
      %v390 = vadd.f32 0.0, %v389
      %391 = vdwg.mxu0
      %s392 = scalar_lea.vmem %s1, 16
      %v393 = vld [vmem:[%s392] sm:$0xf]
      %v394 = vld [vmem:[%s392 + $0x4] sm:$0xf]
      %v395 = vld [vmem:[%s392 + $0x8] sm:$0xf]
      %v396 = vld [vmem:[%s392 + $0xc] sm:$0xf]
      %v401 = vunpack.c.l.b16 %v393
      %v402 = vunpack.c.l.b16 %v394
      %v403 = vunpack.c.l.b16 %v395
      %v404 = vunpack.c.l.b16 %v396
      %v405 = vpack.c.b16 %v402, %v401
      %v406 = vpack.c.b16 %v404, %v403
      %v408 = vsel %vm318, %v405, 0
      %v411 = vsel %vm318, %v406, 0
      %v413 = vand.u32 %v303, %v328
      %415 = vmatpush.bf16.msra.mxu0 0
      %416 = vmatpush.bf16.msra.mxu0 0
      %417 = vmatpush.bf16.msra.mxu0 0
      %418 = vmatpush.bf16.msra.mxu0 0
      %419 = vmatpush.bf16.msra.mxu0 0
      %420 = vmatpush.bf16.msra.mxu0 0
      %421 = vmatpush.bf16.msra.mxu0 0
      %422 = vmatpush.bf16.msra.mxu0 %v329
      %423 = vmatmul.bf16.gmra.mxu0 %v408
      %v424 = vpop.f32.mrf.mxu0
      %v425 = vadd.f32 0.0, %v424
      %v426 = vpop.f32.mrf.mxu0
      %v427 = vadd.f32 0.0, %v426
      %428 = vmatmul.bf16.gmra.mxu0 %v411
      %v429 = vpop.f32.mrf.mxu0
      %v430 = vadd.f32 0.0, %v429
      %v431 = vpop.f32.mrf.mxu0
      %v432 = vadd.f32 0.0, %v431
      %433 = vdwg.mxu0
      %434 = vmatpush.bf16.msra.mxu0 0
      %435 = vmatpush.bf16.msra.mxu0 0
      %436 = vmatpush.bf16.msra.mxu0 0
      %437 = vmatpush.bf16.msra.mxu0 0
      %438 = vmatpush.bf16.msra.mxu0 0
      %439 = vmatpush.bf16.msra.mxu0 0
      %440 = vmatpush.bf16.msra.mxu0 0
      %441 = vmatpush.bf16.msra.mxu0 %v331
      %442 = vmatmul.bf16.gmra.mxu0 %v408
      %v443 = vpop.f32.mrf.mxu0
      %v444 = vadd.f32 0.0, %v443
      %v445 = vpop.f32.mrf.mxu0
      %v446 = vadd.f32 0.0, %v445
      %447 = vmatmul.bf16.gmra.mxu0 %v411
      %v448 = vpop.f32.mrf.mxu0
      %v449 = vadd.f32 0.0, %v448
      %v450 = vpop.f32.mrf.mxu0
      %v451 = vadd.f32 0.0, %v450
      %452 = vdwg.mxu0
      %453 = vmatpush.bf16.msra.mxu0 0
      %454 = vmatpush.bf16.msra.mxu0 0
      %455 = vmatpush.bf16.msra.mxu0 0
      %456 = vmatpush.bf16.msra.mxu0 0
      %457 = vmatpush.bf16.msra.mxu0 0
      %458 = vmatpush.bf16.msra.mxu0 0
      %459 = vmatpush.bf16.msra.mxu0 0
      %460 = vmatpush.bf16.msra.mxu0 %v333
      %461 = vmatmul.bf16.gmra.mxu0 %v408
      %v462 = vpop.f32.mrf.mxu0
      %v463 = vadd.f32 0.0, %v462
      %v464 = vpop.f32.mrf.mxu0
      %v465 = vadd.f32 0.0, %v464
      %466 = vmatmul.bf16.gmra.mxu0 %v411
      %v467 = vpop.f32.mrf.mxu0
      %v468 = vadd.f32 0.0, %v467
      %v469 = vpop.f32.mrf.mxu0
      %v470 = vadd.f32 0.0, %v469
      %471 = vdwg.mxu0
      %472 = vmatpush.bf16.msra.mxu0 0
      %473 = vmatpush.bf16.msra.mxu0 0
      %474 = vmatpush.bf16.msra.mxu0 0
      %475 = vmatpush.bf16.msra.mxu0 0
      %476 = vmatpush.bf16.msra.mxu0 0
      %477 = vmatpush.bf16.msra.mxu0 0
      %478 = vmatpush.bf16.msra.mxu0 0
      %479 = vmatpush.bf16.msra.mxu0 %v413
      %480 = vmatmul.bf16.gmra.mxu0 %v408
      %v481 = vpop.f32.mrf.mxu0
      %v482 = vadd.f32 0.0, %v481
      %v483 = vpop.f32.mrf.mxu0
      %v484 = vadd.f32 0.0, %v483
      %485 = vmatmul.bf16.gmra.mxu0 %v411
      %v486 = vpop.f32.mrf.mxu0
      %v487 = vadd.f32 0.0, %v486
      %v488 = vpop.f32.mrf.mxu0
      %v489 = vadd.f32 0.0, %v488
      %490 = vdwg.mxu0
      %507 = vrot.lane.b32.xlu0 %v425, 104
      %v508 = vpop.permute.xlu0 %507
      %509 = vrot.lane.b32.xlu0 %v444, 104
      %v510 = vpop.permute.xlu0 %509
      %511 = vrot.lane.b32.xlu0 %v463, 104
      %v512 = vpop.permute.xlu0 %511
      %513 = vrot.lane.b32.xlu0 %v482, 104
      %v514 = vpop.permute.xlu0 %513
      %515 = vrot.lane.b32.xlu0 %v427, 104
      %v516 = vpop.permute.xlu0 %515
      %517 = vrot.lane.b32.xlu0 %v446, 104
      %v518 = vpop.permute.xlu0 %517
      %519 = vrot.lane.b32.xlu0 %v465, 104
      %v520 = vpop.permute.xlu0 %519
      %521 = vrot.lane.b32.xlu0 %v484, 104
      %v522 = vpop.permute.xlu0 %521
      %523 = vrot.lane.b32.xlu0 %v430, 104
      %v524 = vpop.permute.xlu0 %523
      %525 = vrot.lane.b32.xlu0 %v449, 104
      %v526 = vpop.permute.xlu0 %525
      %527 = vrot.lane.b32.xlu0 %v468, 104
      %v528 = vpop.permute.xlu0 %527
      %529 = vrot.lane.b32.xlu0 %v487, 104
      %v530 = vpop.permute.xlu0 %529
      %531 = vrot.lane.b32.xlu0 %v432, 104
      %v532 = vpop.permute.xlu0 %531
      %533 = vrot.lane.b32.xlu0 %v451, 104
      %v534 = vpop.permute.xlu0 %533
      %535 = vrot.lane.b32.xlu0 %v470, 104
      %v536 = vpop.permute.xlu0 %535
      %537 = vrot.lane.b32.xlu0 %v489, 104
      %v538 = vpop.permute.xlu0 %537
      %vm539 = vcmask 850944
      %v540 = vsel %vm539, %v508, %v510
      %v541 = vsel %vm539, %v510, %v512
      %v542 = vsel %vm539, %v512, %v514
      %v543 = vsel %vm539, %v516, %v518
      %v544 = vsel %vm539, %v518, %v520
      %v545 = vsel %vm539, %v520, %v522
      %v546 = vsel %vm539, %v524, %v526
      %v547 = vsel %vm539, %v526, %v528
      %v548 = vsel %vm539, %v528, %v530
      %v549 = vsel %vm539, %v532, %v534
      %v550 = vsel %vm539, %v534, %v536
      %v551 = vsel %vm539, %v536, %v538
      %v564 = vadd.f32 %v345, %v540
      %v565 = vadd.f32 %v364, %v541
      %v566 = vadd.f32 %v383, %v542
      %v567 = vadd.f32 %v347, %v543
      %v568 = vadd.f32 %v366, %v544
      %v569 = vadd.f32 %v385, %v545
      %v570 = vadd.f32 %v350, %v546
      %v571 = vadd.f32 %v369, %v547
      %v572 = vadd.f32 %v388, %v548
      %v573 = vadd.f32 %v352, %v549
      %v574 = vadd.f32 %v371, %v550
      %v575 = vadd.f32 %v390, %v551
      %s576 = scalar_lea.vmem %s1, 32
      %v577 = vld [vmem:[%s576] sm:$0xf]
      %v578 = vld [vmem:[%s576 + $0x4] sm:$0xf]
      %v579 = vld [vmem:[%s576 + $0x8] sm:$0xf]
      %v580 = vld [vmem:[%s576 + $0xc] sm:$0xf]
      %v585 = vunpack.c.l.b16 %v577
      %v586 = vunpack.c.l.b16 %v578
      %v587 = vunpack.c.l.b16 %v579
      %v588 = vunpack.c.l.b16 %v580
      %v589 = vpack.c.b16 %v586, %v585
      %v590 = vpack.c.b16 %v588, %v587
      %v592 = vsel %vm318, %v589, 0
      %v595 = vsel %vm318, %v590, 0
      %597 = vmatpush.bf16.msra.mxu0 0
      %598 = vmatpush.bf16.msra.mxu0 0
      %599 = vmatpush.bf16.msra.mxu0 0
      %600 = vmatpush.bf16.msra.mxu0 0
      %601 = vmatpush.bf16.msra.mxu0 0
      %602 = vmatpush.bf16.msra.mxu0 0
      %603 = vmatpush.bf16.msra.mxu0 0
      %604 = vmatpush.bf16.msra.mxu0 %v329
      %605 = vmatmul.bf16.gmra.mxu0 %v592
      %v606 = vpop.f32.mrf.mxu0
      %v607 = vadd.f32 0.0, %v606
      %v608 = vpop.f32.mrf.mxu0
      %v609 = vadd.f32 0.0, %v608
      %610 = vmatmul.bf16.gmra.mxu0 %v595
      %v611 = vpop.f32.mrf.mxu0
      %v612 = vadd.f32 0.0, %v611
      %v613 = vpop.f32.mrf.mxu0
      %v614 = vadd.f32 0.0, %v613
      %615 = vdwg.mxu0
      %616 = vmatpush.bf16.msra.mxu0 0
      %617 = vmatpush.bf16.msra.mxu0 0
      %618 = vmatpush.bf16.msra.mxu0 0
      %619 = vmatpush.bf16.msra.mxu0 0
      %620 = vmatpush.bf16.msra.mxu0 0
      %621 = vmatpush.bf16.msra.mxu0 0
      %622 = vmatpush.bf16.msra.mxu0 0
      %623 = vmatpush.bf16.msra.mxu0 %v331
      %624 = vmatmul.bf16.gmra.mxu0 %v592
      %v625 = vpop.f32.mrf.mxu0
      %v626 = vadd.f32 0.0, %v625
      %v627 = vpop.f32.mrf.mxu0
      %v628 = vadd.f32 0.0, %v627
      %629 = vmatmul.bf16.gmra.mxu0 %v595
      %v630 = vpop.f32.mrf.mxu0
      %v631 = vadd.f32 0.0, %v630
      %v632 = vpop.f32.mrf.mxu0
      %v633 = vadd.f32 0.0, %v632
      %634 = vdwg.mxu0
      %635 = vmatpush.bf16.msra.mxu0 0
      %636 = vmatpush.bf16.msra.mxu0 0
      %637 = vmatpush.bf16.msra.mxu0 0
      %638 = vmatpush.bf16.msra.mxu0 0
      %639 = vmatpush.bf16.msra.mxu0 0
      %640 = vmatpush.bf16.msra.mxu0 0
      %641 = vmatpush.bf16.msra.mxu0 0
      %642 = vmatpush.bf16.msra.mxu0 %v333
      %643 = vmatmul.bf16.gmra.mxu0 %v592
      %v644 = vpop.f32.mrf.mxu0
      %v645 = vadd.f32 0.0, %v644
      %v646 = vpop.f32.mrf.mxu0
      %v647 = vadd.f32 0.0, %v646
      %648 = vmatmul.bf16.gmra.mxu0 %v595
      %v649 = vpop.f32.mrf.mxu0
      %v650 = vadd.f32 0.0, %v649
      %v651 = vpop.f32.mrf.mxu0
      %v652 = vadd.f32 0.0, %v651
      %653 = vdwg.mxu0
      %654 = vmatpush.bf16.msra.mxu0 0
      %655 = vmatpush.bf16.msra.mxu0 0
      %656 = vmatpush.bf16.msra.mxu0 0
      %657 = vmatpush.bf16.msra.mxu0 0
      %658 = vmatpush.bf16.msra.mxu0 0
      %659 = vmatpush.bf16.msra.mxu0 0
      %660 = vmatpush.bf16.msra.mxu0 0
      %661 = vmatpush.bf16.msra.mxu0 %v413
      %662 = vmatmul.bf16.gmra.mxu0 %v592
      %v663 = vpop.f32.mrf.mxu0
      %v664 = vadd.f32 0.0, %v663
      %v665 = vpop.f32.mrf.mxu0
      %v666 = vadd.f32 0.0, %v665
      %667 = vmatmul.bf16.gmra.mxu0 %v595
      %v668 = vpop.f32.mrf.mxu0
      %v669 = vadd.f32 0.0, %v668
      %v670 = vpop.f32.mrf.mxu0
      %v671 = vadd.f32 0.0, %v670
      %672 = vdwg.mxu0
      %689 = vrot.lane.b32.xlu0 %v607, 80
      %v690 = vpop.permute.xlu0 %689
      %691 = vrot.lane.b32.xlu0 %v626, 80
      %v692 = vpop.permute.xlu0 %691
      %693 = vrot.lane.b32.xlu0 %v645, 80
      %v694 = vpop.permute.xlu0 %693
      %695 = vrot.lane.b32.xlu0 %v664, 80
      %v696 = vpop.permute.xlu0 %695
      %697 = vrot.lane.b32.xlu0 %v609, 80
      %v698 = vpop.permute.xlu0 %697
      %699 = vrot.lane.b32.xlu0 %v628, 80
      %v700 = vpop.permute.xlu0 %699
      %701 = vrot.lane.b32.xlu0 %v647, 80
      %v702 = vpop.permute.xlu0 %701
      %703 = vrot.lane.b32.xlu0 %v666, 80
      %v704 = vpop.permute.xlu0 %703
      %705 = vrot.lane.b32.xlu0 %v612, 80
      %v706 = vpop.permute.xlu0 %705
      %707 = vrot.lane.b32.xlu0 %v631, 80
      %v708 = vpop.permute.xlu0 %707
      %709 = vrot.lane.b32.xlu0 %v650, 80
      %v710 = vpop.permute.xlu0 %709
      %711 = vrot.lane.b32.xlu0 %v669, 80
      %v712 = vpop.permute.xlu0 %711
      %713 = vrot.lane.b32.xlu0 %v614, 80
      %v714 = vpop.permute.xlu0 %713
      %715 = vrot.lane.b32.xlu0 %v633, 80
      %v716 = vpop.permute.xlu0 %715
      %717 = vrot.lane.b32.xlu0 %v652, 80
      %v718 = vpop.permute.xlu0 %717
      %719 = vrot.lane.b32.xlu0 %v671, 80
      %v720 = vpop.permute.xlu0 %719
      %vm721 = vcmask 654336
      %v722 = vsel %vm721, %v690, %v692
      %v723 = vsel %vm721, %v692, %v694
      %v724 = vsel %vm721, %v694, %v696
      %v725 = vsel %vm721, %v698, %v700
      %v726 = vsel %vm721, %v700, %v702
      %v727 = vsel %vm721, %v702, %v704
      %v728 = vsel %vm721, %v706, %v708
      %v729 = vsel %vm721, %v708, %v710
      %v730 = vsel %vm721, %v710, %v712
      %v731 = vsel %vm721, %v714, %v716
      %v732 = vsel %vm721, %v716, %v718
      %v733 = vsel %vm721, %v718, %v720
      %v746 = vadd.f32 %v564, %v722
      %v747 = vadd.f32 %v565, %v723
      %v748 = vadd.f32 %v566, %v724
      %v749 = vadd.f32 %v567, %v725
      %v750 = vadd.f32 %v568, %v726
      %v751 = vadd.f32 %v569, %v727
      %v752 = vadd.f32 %v570, %v728
      %v753 = vadd.f32 %v571, %v729
      %v754 = vadd.f32 %v572, %v730
      %v755 = vadd.f32 %v573, %v731
      %v756 = vadd.f32 %v574, %v732
      %v757 = vadd.f32 %v575, %v733
      %v758 = vld [vmem:[%s2] sm:$0xff]
      %v759 = vld [vmem:[%s2 + $0x8] sm:$0xff]
      %v760 = vld [vmem:[%s2 + $0x10] sm:$0xff]
      %v761 = vld [vmem:[%s2 + $0x18] sm:$0xff]
      %763 = vset.pattern.permute.xlu0 0
      %764 = vperm.xlu0 %763, %v758
      %v765 = vpop.permute.xlu0 %764
      %768 = vset.pattern.permute.xlu0 0
      %769 = vperm.xlu0 %768, %v759
      %v770 = vpop.permute.xlu0 %769
      %773 = vset.pattern.permute.xlu0 0
      %774 = vperm.xlu0 %773, %v760
      %v775 = vpop.permute.xlu0 %774
      %778 = vset.pattern.permute.xlu0 0
      %779 = vperm.xlu0 %778, %v761
      %v780 = vpop.permute.xlu0 %779
      %v782 = vmul.f32 %v746, %v765
      %v783 = vmul.f32 %v747, %v765
      %v784 = vmul.f32 %v748, %v765
      %v785 = vmul.f32 %v749, %v770
      %v786 = vmul.f32 %v750, %v770
      %v787 = vmul.f32 %v751, %v770
      %v788 = vmul.f32 %v752, %v775
      %v789 = vmul.f32 %v753, %v775
      %v790 = vmul.f32 %v754, %v775
      %v791 = vmul.f32 %v755, %v780
      %v792 = vmul.f32 %v756, %v780
      %v793 = vmul.f32 %v757, %v780
      %v794 = vld [vmem:[%s3] sm:$0xff]
      %v795 = vld [vmem:[%s3 + $0x8] sm:$0xff]
      %v796 = vld [vmem:[%s3 + $0x10] sm:$0xff]
      %v797 = vld [vmem:[%s3 + $0x18] sm:$0xff]
      %799 = vset.pattern.permute.xlu0 0
      %800 = vperm.xlu0 %799, %v794
      %v801 = vpop.permute.xlu0 %800
      %804 = vset.pattern.permute.xlu0 0
      %805 = vperm.xlu0 %804, %v795
      %v806 = vpop.permute.xlu0 %805
      %809 = vset.pattern.permute.xlu0 0
      %810 = vperm.xlu0 %809, %v796
      %v811 = vpop.permute.xlu0 %810
      %814 = vset.pattern.permute.xlu0 0
      %815 = vperm.xlu0 %814, %v797
      %v816 = vpop.permute.xlu0 %815
      %v818 = vadd.f32 %v782, %v801
      %v819 = vadd.f32 %v783, %v801
      %v820 = vadd.f32 %v784, %v801
      %v821 = vadd.f32 %v785, %v806
      %v822 = vadd.f32 %v786, %v806
      %v823 = vadd.f32 %v787, %v806
      %v824 = vadd.f32 %v788, %v811
      %v825 = vadd.f32 %v789, %v811
      %v826 = vadd.f32 %v790, %v811
      %v827 = vadd.f32 %v791, %v816
      %v828 = vadd.f32 %v792, %v816
      %v829 = vadd.f32 %v793, %v816
      %vm830 = vcmp.ge.f32.partialorder %v818, 0.0
      %vm831 = vcmp.ge.f32.partialorder %v819, 0.0
      %vm832 = vcmp.ge.f32.partialorder %v820, 0.0
      %vm833 = vcmp.ge.f32.partialorder %v821, 0.0
      %vm834 = vcmp.ge.f32.partialorder %v822, 0.0
      %vm835 = vcmp.ge.f32.partialorder %v823, 0.0
      %vm836 = vcmp.ge.f32.partialorder %v824, 0.0
      %vm837 = vcmp.ge.f32.partialorder %v825, 0.0
      %vm838 = vcmp.ge.f32.partialorder %v826, 0.0
      %vm839 = vcmp.ge.f32.partialorder %v827, 0.0
      %vm840 = vcmp.ge.f32.partialorder %v828, 0.0
      %vm841 = vcmp.ge.f32.partialorder %v829, 0.0
      %v842 = vmul.f32 %v818, 0.01
      %v843 = vmul.f32 %v819, 0.01
      %v844 = vmul.f32 %v820, 0.01
      %v845 = vmul.f32 %v821, 0.01
      %v846 = vmul.f32 %v822, 0.01
      %v847 = vmul.f32 %v823, 0.01
      %v848 = vmul.f32 %v824, 0.01
      %v849 = vmul.f32 %v825, 0.01
      %v850 = vmul.f32 %v826, 0.01
      %v851 = vmul.f32 %v827, 0.01
      %v852 = vmul.f32 %v828, 0.01
      %v853 = vmul.f32 %v829, 0.01
      %v854 = vsel %vm830, %v818, %v842
      %v855 = vsel %vm831, %v819, %v843
      %v856 = vsel %vm832, %v820, %v844
      %v857 = vsel %vm833, %v821, %v845
      %v858 = vsel %vm834, %v822, %v846
      %v859 = vsel %vm835, %v823, %v847
      %v860 = vsel %vm836, %v824, %v848
      %v861 = vsel %vm837, %v825, %v849
      %v862 = vsel %vm838, %v826, %v850
      %v863 = vsel %vm839, %v827, %v851
      %v864 = vsel %vm840, %v828, %v852
      %v865 = vsel %vm841, %v829, %v853
      %v866 = vpack.c.bf16 %v855, %v854
      %v867 = vpack.c.bf16 %v856, %v856
      %v868 = vpack.c.bf16 %v858, %v857
      %v869 = vpack.c.bf16 %v859, %v859
      %v870 = vpack.c.bf16 %v861, %v860
      %v871 = vpack.c.bf16 %v862, %v862
      %v872 = vpack.c.bf16 %v864, %v863
      %v873 = vpack.c.bf16 %v865, %v865
      %874 = vst [vmem:[%s197] sm:$0xff] %v866
      %875 = vst [vmem:[%s197 + $0x8] sm:$0xf] %v867
      %876 = vst [vmem:[%s197 + $0xc] sm:$0xff] %v868
      %877 = vst [vmem:[%s197 + $0x14] sm:$0xf] %v869
      %878 = vst [vmem:[%s197 + $0x18] sm:$0xff] %v870
      %879 = vst [vmem:[%s197 + $0x20] sm:$0xf] %v871
      %880 = vst [vmem:[%s197 + $0x24] sm:$0xff] %v872
      %881 = vst [vmem:[%s197 + $0x2c] sm:$0xf] %v873
      %p882 = scmp.lt.s32.totalorder %s15, 1
      %s883 = scalar_select %p882, %s15, 1
      %s884 = smul.addr %s883, 12
      %s885 = smul.addr %s884, 4
      %s886 = scalar_lea.vmem %s4, %s885
      // Predicated region
      $region37: #{forward.6} parent=35 // pred_check
        %p887 = pneg %p122
      $region38: #{forward.6} parent=35 // pred_check_branch
        %889 = sbr.rel (%p887) target = $region40
      $region39: #{forward.6} parent=35 // pred_region
        _
      $region40: #{forward.6} parent=35 // pred_fallthru
        _
    $region36: #{forward.6} parent=5 // pred_fallthru
      _
    %p890 = scmp.le.s32.totalorder 2, %s10
    // Predicated region
    $region41: #{forward.6} parent=5 // pred_check
      %p891 = pneg %p890
    $region42: #{forward.6} parent=5 // pred_check_branch
      %893 = sbr.rel (%p891) target = $region44
    $region43: #{forward.6} parent=5 // pred_region
      %s894 = ssub.s32 %s10, 2
      // Predicated region
      $region45: #{forward.6} parent=43 // pred_check
        %p895 = pneg %p128
      $region46: #{forward.6} parent=43 // pred_check_branch
        %897 = sbr.rel (%p895) target = $region48
      $region47: #{forward.6} parent=43 // pred_region
        %p898 = scmp.lt.s32.totalorder %s16, 1
        %s899 = scalar_select %p898, %s16, 1
        %s900 = smul.addr %s899, 12
        %s901 = smul.addr %s900, 4
        %s902 = scalar_lea.vmem %s4, %s901
      $region48: #{forward.6} parent=43 // pred_fallthru
        _
    $region44: #{forward.6} parent=5 // pred_fallthru
      _
  $region6: #{forward.6} parent=0 // loop_footer
    %s14 = sadd.s32 1, %s10
  $region7: #{forward.6} parent=0 // loop_footer_branch
    %9 = sbr.rel target = $region3
  $region8: #{forward.6} parent=0 // loop_exit
    _

// kernel: forward.7
$region0: #{forward.7}
  #allocation0 [shape = 'u32[]', space=smem, size = 0x4, offset = 0x4, fixed_abs, tag = 'smem constant byte address 0x4 - core index']
  #allocation1 [shape = 'u32[72,128]{1,0:T(1,128)}', space=vmem, size = 0x9000, scoped, tag = 'internal scratch']
  %s0 = inlined_call_operand.vmem [shape: bf16[2,32,456], index: 0, kind: input, shape index: {}]
  %s1 = inlined_call_operand.hbm [shape: bf16[3,32,96], index: 1, kind: input, shape index: {}]
  %s2 = inlined_call_operand.vmem [shape: f32[32,1], index: 2, kind: input, shape index: {}]
  %s3 = inlined_call_operand.vmem [shape: f32[32,1], index: 3, kind: input, shape index: {}]
  %s4 = inlined_call_operand.vmem [shape: bf16[2,32,384], index: 4, kind: output, shape index: {}]
  %s5 = sld [smem:[#allocation0]]
  $region53: #{forward.7} parent=0
    _
  %s7 = ssub.s32 1, %s5
  %s8 = scalar_select 0, %s7, %s5
  $region1: #{forward.7} parent=0
    #allocation2 [shape = 'u8[24576]{0}', space=vmem, size = 0x6000, scoped, tag = 'input window, operand 1, single buffered']
    #allocation3 [shape = 's32[2]{0}', space=sflag, size = 0x8, scoped, tag = 'scoped memory for forward.7']
    %9 = vsyncpa [#allocation3], 0
    loop: start=0, step=1, limit=4
    $region2: #{forward.7} parent=1 // loop_pre_header
      _
    $region3: #{forward.7} parent=1 // loop_header
      %s11 = sphi 0, %s15
      %p12 = scmp.ge.s32.totalorder %s11, 4
      %s21 = sphi 0, %s23
      %s24 = sphi 0, %s21
      %s25 = sphi 0, %s24
      %s41 = sphi 0, %s25
      %s45 = sphi 0, %s45
      %s47 = sphi 0, %s45
      %s48 = sphi 0, %s47
      %s62 = sphi 0, %s48
      %s66 = sphi 0, %s66
      %s68 = sphi 0, %s66
      %s69 = sphi 0, %s68
      %s83 = sphi 0, %s69
      %s87 = sphi 0, %s87
      %s89 = sphi 0, %s87
      %s90 = sphi 0, %s89
      %s104 = sphi 0, %s90
      %s110 = sphi 0, %s112
      %s113 = sphi 0, %s110
      %s114 = sphi 0, %s113
      %s130 = sphi 0, %s114
    $region4: #{forward.7} parent=1 // loop_header_branch
      %14 = sbr.rel (%p12) target = $region8
    $region5: #{forward.7} parent=1 // loop_body
      %s16 = ssub.s32 %s11, 1
      %s17 = ssub.s32 %s11, 2
      %s18 = sadd.s32 %s11, 1
      %s19 = ssub.s32 %s11, %s18
      %p20 = scmp.eq.s32.totalorder %s19, 0
      %s22 = sadd.s32 %s21, 1
      %s23 = scalar_select %p20, %s21, %s22
      %p26 = pneg %p20
      %p27 = scmp.eq.s32.totalorder %s11, 1
      %p28 = por %p26, %p27
      %p29 = scmp.ne.s32.totalorder %s21, %s24
      %p30 = scmp.eq.s32.totalorder %s11, 0
      %p31 = por %p29, %p30
      %p32 = scmp.ne.s32.totalorder %s21, %s24
      %p33 = scmp.eq.s32.totalorder %s16, 1
      %p34 = por %p32, %p33
      %p35 = scmp.ne.s32.totalorder %s24, %s25
      %p36 = scmp.eq.s32.totalorder %s16, 0
      %p37 = por %p35, %p36
      %p38 = scmp.ne.s32.totalorder %s24, %s25
      %p39 = scmp.eq.s32.totalorder %s17, 1
      %p40 = por %p38, %p39
      %p42 = scmp.ne.s32.totalorder %s25, %s41
      %p43 = scmp.eq.s32.totalorder %s17, 0
      %p44 = por %p42, %p43
      %s46 = sadd.s32 %s45, 1
      %p49 = scmp.eq.s32.totalorder %s11, 1
      %p50 = scmp.ne.s32.totalorder %s45, %s47
      %p51 = scmp.eq.s32.totalorder %s11, 0
      %p52 = por %p50, %p51
      %p53 = scmp.ne.s32.totalorder %s45, %s47
      %p54 = scmp.eq.s32.totalorder %s16, 1
      %p55 = por %p53, %p54
      %p56 = scmp.ne.s32.totalorder %s47, %s48
      %p57 = scmp.eq.s32.totalorder %s16, 0
      %p58 = por %p56, %p57
      %p59 = scmp.ne.s32.totalorder %s47, %s48
      %p60 = scmp.eq.s32.totalorder %s17, 1
      %p61 = por %p59, %p60
      %p63 = scmp.ne.s32.totalorder %s48, %s62
      %p64 = scmp.eq.s32.totalorder %s17, 0
      %p65 = por %p63, %p64
      %s67 = sadd.s32 %s66, 1
      %p70 = scmp.eq.s32.totalorder %s11, 1
      %p71 = scmp.ne.s32.totalorder %s66, %s68
      %p72 = scmp.eq.s32.totalorder %s11, 0
      %p73 = por %p71, %p72
      %p74 = scmp.ne.s32.totalorder %s66, %s68
      %p75 = scmp.eq.s32.totalorder %s16, 1
      %p76 = por %p74, %p75
      %p77 = scmp.ne.s32.totalorder %s68, %s69
      %p78 = scmp.eq.s32.totalorder %s16, 0
      %p79 = por %p77, %p78
      %p80 = scmp.ne.s32.totalorder %s68, %s69
      %p81 = scmp.eq.s32.totalorder %s17, 1
      %p82 = por %p80, %p81
      %p84 = scmp.ne.s32.totalorder %s69, %s83
      %p85 = scmp.eq.s32.totalorder %s17, 0
      %p86 = por %p84, %p85
      %s88 = sadd.s32 %s87, 1
      %p91 = scmp.eq.s32.totalorder %s11, 1
      %p92 = scmp.ne.s32.totalorder %s87, %s89
      %p93 = scmp.eq.s32.totalorder %s11, 0
      %p94 = por %p92, %p93
      %p95 = scmp.ne.s32.totalorder %s87, %s89
      %p96 = scmp.eq.s32.totalorder %s16, 1
      %p97 = por %p95, %p96
      %p98 = scmp.ne.s32.totalorder %s89, %s90
      %p99 = scmp.eq.s32.totalorder %s16, 0
      %p100 = por %p98, %p99
      %p101 = scmp.ne.s32.totalorder %s89, %s90
      %p102 = scmp.eq.s32.totalorder %s17, 1
      %p103 = por %p101, %p102
      %p105 = scmp.ne.s32.totalorder %s90, %s104
      %p106 = scmp.eq.s32.totalorder %s17, 0
      %p107 = por %p105, %p106
      %s108 = ssub.s32 %s11, %s18
      %p109 = scmp.eq.s32.totalorder %s108, 0
      %s111 = sadd.s32 %s110, 1
      %s112 = scalar_select %p109, %s110, %s111
      %p115 = pneg %p109
      %p116 = scmp.eq.s32.totalorder %s11, 1
      %p117 = por %p115, %p116
      %p118 = scmp.ne.s32.totalorder %s110, %s113
      %p119 = scmp.eq.s32.totalorder %s11, 0
      %p120 = por %p118, %p119
      %p121 = scmp.ne.s32.totalorder %s110, %s113
      %p122 = scmp.eq.s32.totalorder %s16, 1
      %p123 = por %p121, %p122
      %p124 = scmp.ne.s32.totalorder %s113, %s114
      %p125 = scmp.eq.s32.totalorder %s16, 0
      %p126 = por %p124, %p125
      %p127 = scmp.ne.s32.totalorder %s113, %s114
      %p128 = scmp.eq.s32.totalorder %s17, 1
      %p129 = por %p127, %p128
      %p131 = scmp.ne.s32.totalorder %s114, %s130
      %p132 = scmp.eq.s32.totalorder %s17, 0
      %p133 = por %p131, %p132
      %p134 = scmp.le.s32.totalorder 1, %s11
      %p135 = scmp.lt.s32.totalorder %s11, 3
      %p136 = pnand %p134, %p135
      %p137 = pneg %p136
      // Predicated region
      $region9: #{forward.7} parent=5 // pred_check
        _
      $region10: #{forward.7} parent=5 // pred_check_branch
        %139 = sbr.rel (%p136) target = $region12
      $region11: #{forward.7} parent=5 // pred_region
        %s140 = ssub.s32 %s11, 1
        // Predicated region
        $region13: #{forward.7} parent=11 // pred_check
          %p141 = pneg %p58
        $region14: #{forward.7} parent=11 // pred_check_branch
          %143 = sbr.rel (%p141) target = $region16
        $region15: #{forward.7} parent=11 // pred_region
          %145 = vsyncadd [#allocation3], 0
          %s146 = sshll.u32 %s1, 4
          %s147 = int_to_ptr.hbm [resolvable:$true] %s146
          %s148 = sshll.u32 [#allocation2], 4
          %s149 = int_to_ptr.vmem [resolvable:$true] %s148
          %154 = dma.hbm_to_vmem [thread:$0]  %s147, 768, %s149, [#allocation3], 64, 64, 4
        $region16: #{forward.7} parent=11 // pred_fallthru
          _
        // Predicated region
        $region17: #{forward.7} parent=11 // pred_check
          %p155 = pneg %p79
        $region18: #{forward.7} parent=11 // pred_check_branch
          %157 = sbr.rel (%p155) target = $region20
        $region19: #{forward.7} parent=11 // pred_region
          _
        $region20: #{forward.7} parent=11 // pred_fallthru
          _
        // Predicated region
        $region21: #{forward.7} parent=11 // pred_check
          %p158 = pneg %p100
        $region22: #{forward.7} parent=11 // pred_check_branch
          %160 = sbr.rel (%p158) target = $region24
        $region23: #{forward.7} parent=11 // pred_region
          _
        $region24: #{forward.7} parent=11 // pred_fallthru
          _
      $region12: #{forward.7} parent=5 // pred_fallthru
        _
      %p161 = scmp.lt.s32.totalorder %s11, 2
      // Predicated region
      $region25: #{forward.7} parent=5 // pred_check
        %p162 = pneg %p161
      $region26: #{forward.7} parent=5 // pred_check_branch
        %164 = sbr.rel (%p162) target = $region28
      $region27: #{forward.7} parent=5 // pred_region
        // Predicated region
        $region29: #{forward.7} parent=27 // pred_check
          %p165 = pneg %p31
        $region30: #{forward.7} parent=27 // pred_check_branch
          %167 = sbr.rel (%p165) target = $region32
        $region31: #{forward.7} parent=27 // pred_region
          %p168 = scmp.lt.s32.totalorder %s11, 1
          %s169 = scalar_select %p168, %s11, 1
          %s170 = smul.addr %s169, 16
          %s171 = smul.addr %s170, 4
          %s172 = scalar_lea.vmem %s0, %s171
        $region32: #{forward.7} parent=27 // pred_fallthru
          _
      $region28: #{forward.7} parent=5 // pred_fallthru
        _
      %p173 = scmp.le.s32.totalorder 1, %s11
      %p174 = scmp.lt.s32.totalorder %s11, 3
      %p175 = pnand %p173, %p174
      %p176 = pneg %p175
      // Predicated region
      $region33: #{forward.7} parent=5 // pred_check
        _
      $region34: #{forward.7} parent=5 // pred_check_branch
        %178 = sbr.rel (%p175) target = $region36
      $region35: #{forward.7} parent=5 // pred_region
        %s179 = ssub.s32 %s11, 1
        // Predicated region
        $region37: #{forward.7} parent=35 // pred_check
          %p180 = pneg %p58
        $region38: #{forward.7} parent=35 // pred_check_branch
          %182 = sbr.rel (%p180) target = $region40
        $region39: #{forward.7} parent=35 // pred_region
          %184 = dma.done [#allocation3], 768
        $region40: #{forward.7} parent=35 // pred_fallthru
          _
        %p185 = scmp.lt.s32.totalorder %s16, 1
        %s186 = scalar_select %p185, %s16, 1
        %s187 = smul.addr %s186, 16
        %s188 = smul.addr %s187, 4
        %s189 = scalar_lea.vmem %s0, %s188
        %p190 = pneg %p37
        %p191 = pneg %p34
        %p192 = pneg %p58
        %p193 = pneg %p55
        %p194 = pneg %p79
        %p195 = pneg %p76
        %p196 = pneg %p100
        %p197 = pneg %p97
        %p198 = pneg %p126
        %p199 = pneg %p123
        %p200 = scmp.lt.s32.totalorder %s16, 1
        %s201 = scalar_select %p200, %s16, 1
        %s202 = smul.addr %s201, 12
        %s203 = smul.addr %s202, 4
        %s204 = scalar_lea.vmem %s4, %s203
        %p205 = scmp.lt.s32.totalorder %s16, 1
        %s206 = scalar_select %p205, %s16, 1
        %s207 = smul.addr %s206, 16
        %s208 = smul.addr %s207, 4
        %s209 = scalar_lea.vmem %s0, %s208
        %p210 = scmp.lt.s32.totalorder %s16, 1
        %s211 = scalar_select %p210, %s16, 1
        %s212 = smul.addr %s211, 12
        %s213 = smul.addr %s212, 4
        %s214 = scalar_lea.vmem %s4, %s213
        %v216 = vld [vmem:[%s209] sm:$0xff]
        %v217 = vld [vmem:[%s209 + $0x8] sm:$0xff]
        %v218 = vld [vmem:[%s209 + $0x10] sm:$0xff]
        %v219 = vld [vmem:[%s209 + $0x18] sm:$0xff]
        %v220 = vld [vmem:[%s209 + $0x20] sm:$0xff]
        %v221 = vld [vmem:[%s209 + $0x28] sm:$0xff]
        %v222 = vld [vmem:[%s209 + $0x30] sm:$0xff]
        %v223 = vld [vmem:[%s209 + $0x38] sm:$0xff]
        %v232 = vunpack.c.l.b16 %v216
        %v233 = vunpack.c.h.b16 %v216
        %v234 = vunpack.c.l.b16 %v217
        %v235 = vunpack.c.h.b16 %v217
        %v236 = vunpack.c.l.b16 %v218
        %v237 = vunpack.c.h.b16 %v218
        %v238 = vunpack.c.l.b16 %v219
        %v239 = vunpack.c.h.b16 %v219
        %v240 = vunpack.c.l.b16 %v220
        %v241 = vunpack.c.h.b16 %v220
        %v242 = vunpack.c.l.b16 %v221
        %v243 = vunpack.c.h.b16 %v221
        %v244 = vunpack.c.l.b16 %v222
        %v245 = vunpack.c.h.b16 %v222
        %v246 = vunpack.c.l.b16 %v223
        %v247 = vunpack.c.h.b16 %v223
        %v248 = vpack.c.b16 %v236, %v232
        %v249 = vpack.c.b16 %v237, %v233
        %v250 = vpack.c.b16 %v238, %v234
        %v251 = vpack.c.b16 %v239, %v235
        %v252 = vpack.c.b16 %v244, %v240
        %v253 = vpack.c.b16 %v245, %v241
        %v254 = vpack.c.b16 %v246, %v242
        %v255 = vpack.c.b16 %v247, %v243
        %264 = vrot.lane.b32.xlu0 %v248, 127
        %v265 = vpop.permute.xlu0 %264
        %266 = vrot.lane.b32.xlu0 %v249, 127
        %v267 = vpop.permute.xlu0 %266
        %268 = vrot.lane.b32.xlu0 %v250, 127
        %v269 = vpop.permute.xlu0 %268
        %270 = vrot.lane.b32.xlu0 %v251, 127
        %v271 = vpop.permute.xlu0 %270
        %272 = vrot.lane.b32.xlu0 %v252, 127
        %v273 = vpop.permute.xlu0 %272
        %274 = vrot.lane.b32.xlu0 %v253, 127
        %v275 = vpop.permute.xlu0 %274
        %276 = vrot.lane.b32.xlu0 %v254, 127
        %v277 = vpop.permute.xlu0 %276
        %278 = vrot.lane.b32.xlu0 %v255, 127
        %v279 = vpop.permute.xlu0 %278
        %vm280 = vcmask 1039360
        %v281 = vsel %vm280, %v265, %v267
        %v282 = vsel %vm280, %v267, %v269
        %v283 = vsel %vm280, %v269, %v271
        %v284 = vsel %vm280, %v273, %v275
        %v285 = vsel %vm280, %v275, %v277
        %v286 = vsel %vm280, %v277, %v279
        %295 = vrot.lane.b32.xlu0 %v248, 126
        %v296 = vpop.permute.xlu0 %295
        %297 = vrot.lane.b32.xlu0 %v249, 126
        %v298 = vpop.permute.xlu0 %297
        %299 = vrot.lane.b32.xlu0 %v250, 126
        %v300 = vpop.permute.xlu0 %299
        %301 = vrot.lane.b32.xlu0 %v251, 126
        %v302 = vpop.permute.xlu0 %301
        %303 = vrot.lane.b32.xlu0 %v252, 126
        %v304 = vpop.permute.xlu0 %303
        %305 = vrot.lane.b32.xlu0 %v253, 126
        %v306 = vpop.permute.xlu0 %305
        %307 = vrot.lane.b32.xlu0 %v254, 126
        %v308 = vpop.permute.xlu0 %307
        %309 = vrot.lane.b32.xlu0 %v255, 126
        %v310 = vpop.permute.xlu0 %309
        %vm311 = vcmask 1031168
        %v312 = vsel %vm311, %v296, %v298
        %v313 = vsel %vm311, %v298, %v300
        %v314 = vsel %vm311, %v300, %v302
        %v315 = vsel %vm311, %v304, %v306
        %v316 = vsel %vm311, %v306, %v308
        %v317 = vsel %vm311, %v308, %v310
        %v326 = vld [vmem:[#allocation2] sm:$0xf]
        %v327 = vld [vmem:[#allocation2 + $0x4] sm:$0xf]
        %v328 = vld [vmem:[#allocation2 + $0x8] sm:$0xf]
        %v329 = vld [vmem:[#allocation2 + $0xc] sm:$0xf]
        %v334 = vunpack.c.l.b16 %v326
        %v335 = vunpack.c.l.b16 %v327
        %v336 = vunpack.c.l.b16 %v328
        %v337 = vunpack.c.l.b16 %v329
        %v338 = vpack.c.b16 %v335, %v334
        %v339 = vpack.c.b16 %v337, %v336
        %vm340 = vcmask 785408
        %v342 = vsel %vm340, %v338, 0
        %v345 = vsel %vm340, %v339, 0
        %347 = vmatpush.bf16.msra.mxu0 0
        %348 = vmatpush.bf16.msra.mxu0 0
        %349 = vmatpush.bf16.msra.mxu0 %v315
        %350 = vmatpush.bf16.msra.mxu0 %v312
        %351 = vmatpush.bf16.msra.mxu0 %v284
        %352 = vmatpush.bf16.msra.mxu0 %v281
        %353 = vmatpush.bf16.msra.mxu0 %v252
        %354 = vmatpush.bf16.msra.mxu0 %v248
        %355 = vmatmul.bf16.gmra.mxu0 %v342
        %v356 = vpop.f32.mrf.mxu0
        %v357 = vadd.f32 0.0, %v356
        %v358 = vpop.f32.mrf.mxu0
        %v359 = vadd.f32 0.0, %v358
        %360 = vmatmul.bf16.gmra.mxu0 %v345
        %v361 = vpop.f32.mrf.mxu0
        %v362 = vadd.f32 0.0, %v361
        %v363 = vpop.f32.mrf.mxu0
        %v364 = vadd.f32 0.0, %v363
        %365 = vdwg.mxu0
        %366 = vmatpush.bf16.msra.mxu0 0
        %367 = vmatpush.bf16.msra.mxu0 0
        %368 = vmatpush.bf16.msra.mxu0 %v316
        %369 = vmatpush.bf16.msra.mxu0 %v313
        %370 = vmatpush.bf16.msra.mxu0 %v285
        %371 = vmatpush.bf16.msra.mxu0 %v282
        %372 = vmatpush.bf16.msra.mxu0 %v253
        %373 = vmatpush.bf16.msra.mxu0 %v249
        %374 = vmatmul.bf16.gmra.mxu0 %v342
        %v375 = vpop.f32.mrf.mxu0
        %v376 = vadd.f32 0.0, %v375
        %v377 = vpop.f32.mrf.mxu0
        %v378 = vadd.f32 0.0, %v377
        %379 = vmatmul.bf16.gmra.mxu0 %v345
        %v380 = vpop.f32.mrf.mxu0
        %v381 = vadd.f32 0.0, %v380
        %v382 = vpop.f32.mrf.mxu0
        %v383 = vadd.f32 0.0, %v382
        %384 = vdwg.mxu0
        %385 = vmatpush.bf16.msra.mxu0 0
        %386 = vmatpush.bf16.msra.mxu0 0
        %387 = vmatpush.bf16.msra.mxu0 %v317
        %388 = vmatpush.bf16.msra.mxu0 %v314
        %389 = vmatpush.bf16.msra.mxu0 %v286
        %390 = vmatpush.bf16.msra.mxu0 %v283
        %391 = vmatpush.bf16.msra.mxu0 %v254
        %392 = vmatpush.bf16.msra.mxu0 %v250
        %393 = vmatmul.bf16.gmra.mxu0 %v342
        %v394 = vpop.f32.mrf.mxu0
        %v395 = vadd.f32 0.0, %v394
        %v396 = vpop.f32.mrf.mxu0
        %v397 = vadd.f32 0.0, %v396
        %398 = vmatmul.bf16.gmra.mxu0 %v345
        %v399 = vpop.f32.mrf.mxu0
        %v400 = vadd.f32 0.0, %v399
        %v401 = vpop.f32.mrf.mxu0
        %v402 = vadd.f32 0.0, %v401
        %403 = vdwg.mxu0
        %s404 = scalar_lea.vmem [#allocation2], 16
        %v405 = vld [vmem:[%s404] sm:$0xf]
        %v406 = vld [vmem:[%s404 + $0x4] sm:$0xf]
        %v407 = vld [vmem:[%s404 + $0x8] sm:$0xf]
        %v408 = vld [vmem:[%s404 + $0xc] sm:$0xf]
        %v413 = vunpack.c.l.b16 %v405
        %v414 = vunpack.c.l.b16 %v406
        %v415 = vunpack.c.l.b16 %v407
        %v416 = vunpack.c.l.b16 %v408
        %v417 = vpack.c.b16 %v414, %v413
        %v418 = vpack.c.b16 %v416, %v415
        %v420 = vsel %vm340, %v417, 0
        %v423 = vsel %vm340, %v418, 0
        %425 = vmatpush.bf16.msra.mxu0 0
        %426 = vmatpush.bf16.msra.mxu0 0
        %427 = vmatpush.bf16.msra.mxu0 %v315
        %428 = vmatpush.bf16.msra.mxu0 %v312
        %429 = vmatpush.bf16.msra.mxu0 %v284
        %430 = vmatpush.bf16.msra.mxu0 %v281
        %431 = vmatpush.bf16.msra.mxu0 %v252
        %432 = vmatpush.bf16.msra.mxu0 %v248
        %433 = vmatmul.bf16.gmra.mxu0 %v420
        %v434 = vpop.f32.mrf.mxu0
        %v435 = vadd.f32 0.0, %v434
        %v436 = vpop.f32.mrf.mxu0
        %v437 = vadd.f32 0.0, %v436
        %438 = vmatmul.bf16.gmra.mxu0 %v423
        %v439 = vpop.f32.mrf.mxu0
        %v440 = vadd.f32 0.0, %v439
        %v441 = vpop.f32.mrf.mxu0
        %v442 = vadd.f32 0.0, %v441
        %443 = vdwg.mxu0
        %444 = vmatpush.bf16.msra.mxu0 0
        %445 = vmatpush.bf16.msra.mxu0 0
        %446 = vmatpush.bf16.msra.mxu0 %v316
        %447 = vmatpush.bf16.msra.mxu0 %v313
        %448 = vmatpush.bf16.msra.mxu0 %v285
        %449 = vmatpush.bf16.msra.mxu0 %v282
        %450 = vmatpush.bf16.msra.mxu0 %v253
        %451 = vmatpush.bf16.msra.mxu0 %v249
        %452 = vmatmul.bf16.gmra.mxu0 %v420
        %v453 = vpop.f32.mrf.mxu0
        %v454 = vadd.f32 0.0, %v453
        %v455 = vpop.f32.mrf.mxu0
        %v456 = vadd.f32 0.0, %v455
        %457 = vmatmul.bf16.gmra.mxu0 %v423
        %v458 = vpop.f32.mrf.mxu0
        %v459 = vadd.f32 0.0, %v458
        %v460 = vpop.f32.mrf.mxu0
        %v461 = vadd.f32 0.0, %v460
        %462 = vdwg.mxu0
        %463 = vmatpush.bf16.msra.mxu0 0
        %464 = vmatpush.bf16.msra.mxu0 0
        %465 = vmatpush.bf16.msra.mxu0 %v317
        %466 = vmatpush.bf16.msra.mxu0 %v314
        %467 = vmatpush.bf16.msra.mxu0 %v286
        %468 = vmatpush.bf16.msra.mxu0 %v283
        %469 = vmatpush.bf16.msra.mxu0 %v254
        %470 = vmatpush.bf16.msra.mxu0 %v250
        %471 = vmatmul.bf16.gmra.mxu0 %v420
        %v472 = vpop.f32.mrf.mxu0
        %v473 = vadd.f32 0.0, %v472
        %v474 = vpop.f32.mrf.mxu0
        %v475 = vadd.f32 0.0, %v474
        %476 = vmatmul.bf16.gmra.mxu0 %v423
        %v477 = vpop.f32.mrf.mxu0
        %v478 = vadd.f32 0.0, %v477
        %v479 = vpop.f32.mrf.mxu0
        %v480 = vadd.f32 0.0, %v479
        %481 = vdwg.mxu0
        %482 = vmatpush.bf16.msra.mxu0 0
        %483 = vmatpush.bf16.msra.mxu0 0
        %484 = vmatpush.bf16.msra.mxu0 %v310
        %485 = vmatpush.bf16.msra.mxu0 %v302
        %486 = vmatpush.bf16.msra.mxu0 %v279
        %487 = vmatpush.bf16.msra.mxu0 %v271
        %488 = vmatpush.bf16.msra.mxu0 %v255
        %489 = vmatpush.bf16.msra.mxu0 %v251
        %490 = vmatmul.bf16.gmra.mxu0 %v420
        %v491 = vpop.f32.mrf.mxu0
        %v492 = vadd.f32 0.0, %v491
        %v493 = vpop.f32.mrf.mxu0
        %v494 = vadd.f32 0.0, %v493
        %495 = vmatmul.bf16.gmra.mxu0 %v423
        %v496 = vpop.f32.mrf.mxu0
        %v497 = vadd.f32 0.0, %v496
        %v498 = vpop.f32.mrf.mxu0
        %v499 = vadd.f32 0.0, %v498
        %500 = vdwg.mxu0
        %517 = vrot.lane.b32.xlu0 %v435, 104
        %v518 = vpop.permute.xlu0 %517
        %519 = vrot.lane.b32.xlu0 %v454, 104
        %v520 = vpop.permute.xlu0 %519
        %521 = vrot.lane.b32.xlu0 %v473, 104
        %v522 = vpop.permute.xlu0 %521
        %523 = vrot.lane.b32.xlu0 %v492, 104
        %v524 = vpop.permute.xlu0 %523
        %525 = vrot.lane.b32.xlu0 %v437, 104
        %v526 = vpop.permute.xlu0 %525
        %527 = vrot.lane.b32.xlu0 %v456, 104
        %v528 = vpop.permute.xlu0 %527
        %529 = vrot.lane.b32.xlu0 %v475, 104
        %v530 = vpop.permute.xlu0 %529
        %531 = vrot.lane.b32.xlu0 %v494, 104
        %v532 = vpop.permute.xlu0 %531
        %533 = vrot.lane.b32.xlu0 %v440, 104
        %v534 = vpop.permute.xlu0 %533
        %535 = vrot.lane.b32.xlu0 %v459, 104
        %v536 = vpop.permute.xlu0 %535
        %537 = vrot.lane.b32.xlu0 %v478, 104
        %v538 = vpop.permute.xlu0 %537
        %539 = vrot.lane.b32.xlu0 %v497, 104
        %v540 = vpop.permute.xlu0 %539
        %541 = vrot.lane.b32.xlu0 %v442, 104
        %v542 = vpop.permute.xlu0 %541
        %543 = vrot.lane.b32.xlu0 %v461, 104
        %v544 = vpop.permute.xlu0 %543
        %545 = vrot.lane.b32.xlu0 %v480, 104
        %v546 = vpop.permute.xlu0 %545
        %547 = vrot.lane.b32.xlu0 %v499, 104
        %v548 = vpop.permute.xlu0 %547
        %vm549 = vcmask 850944
        %v550 = vsel %vm549, %v518, %v520
        %v551 = vsel %vm549, %v520, %v522
        %v552 = vsel %vm549, %v522, %v524
        %v553 = vsel %vm549, %v526, %v528
        %v554 = vsel %vm549, %v528, %v530
        %v555 = vsel %vm549, %v530, %v532
        %v556 = vsel %vm549, %v534, %v536
        %v557 = vsel %vm549, %v536, %v538
        %v558 = vsel %vm549, %v538, %v540
        %v559 = vsel %vm549, %v542, %v544
        %v560 = vsel %vm549, %v544, %v546
        %v561 = vsel %vm549, %v546, %v548
        %v574 = vadd.f32 %v357, %v550
        %v575 = vadd.f32 %v376, %v551
        %v576 = vadd.f32 %v395, %v552
        %v577 = vadd.f32 %v359, %v553
        %v578 = vadd.f32 %v378, %v554
        %v579 = vadd.f32 %v397, %v555
        %v580 = vadd.f32 %v362, %v556
        %v581 = vadd.f32 %v381, %v557
        %v582 = vadd.f32 %v400, %v558
        %v583 = vadd.f32 %v364, %v559
        %v584 = vadd.f32 %v383, %v560
        %v585 = vadd.f32 %v402, %v561
        %s586 = scalar_lea.vmem [#allocation2], 32
        %v587 = vld [vmem:[%s586] sm:$0xf]
        %v588 = vld [vmem:[%s586 + $0x4] sm:$0xf]
        %v589 = vld [vmem:[%s586 + $0x8] sm:$0xf]
        %v590 = vld [vmem:[%s586 + $0xc] sm:$0xf]
        %v595 = vunpack.c.l.b16 %v587
        %v596 = vunpack.c.l.b16 %v588
        %v597 = vunpack.c.l.b16 %v589
        %v598 = vunpack.c.l.b16 %v590
        %v599 = vpack.c.b16 %v596, %v595
        %v600 = vpack.c.b16 %v598, %v597
        %v602 = vsel %vm340, %v599, 0
        %v605 = vsel %vm340, %v600, 0
        %607 = vmatpush.bf16.msra.mxu0 0
        %608 = vmatpush.bf16.msra.mxu0 0
        %609 = vmatpush.bf16.msra.mxu0 %v315
        %610 = vmatpush.bf16.msra.mxu0 %v312
        %611 = vmatpush.bf16.msra.mxu0 %v284
        %612 = vmatpush.bf16.msra.mxu0 %v281
        %613 = vmatpush.bf16.msra.mxu0 %v252
        %614 = vmatpush.bf16.msra.mxu0 %v248
        %615 = vmatmul.bf16.gmra.mxu0 %v602
        %v616 = vpop.f32.mrf.mxu0
        %v617 = vadd.f32 0.0, %v616
        %v618 = vpop.f32.mrf.mxu0
        %v619 = vadd.f32 0.0, %v618
        %620 = vmatmul.bf16.gmra.mxu0 %v605
        %v621 = vpop.f32.mrf.mxu0
        %v622 = vadd.f32 0.0, %v621
        %v623 = vpop.f32.mrf.mxu0
        %v624 = vadd.f32 0.0, %v623
        %625 = vdwg.mxu0
        %626 = vmatpush.bf16.msra.mxu0 0
        %627 = vmatpush.bf16.msra.mxu0 0
        %628 = vmatpush.bf16.msra.mxu0 %v316
        %629 = vmatpush.bf16.msra.mxu0 %v313
        %630 = vmatpush.bf16.msra.mxu0 %v285
        %631 = vmatpush.bf16.msra.mxu0 %v282
        %632 = vmatpush.bf16.msra.mxu0 %v253
        %633 = vmatpush.bf16.msra.mxu0 %v249
        %634 = vmatmul.bf16.gmra.mxu0 %v602
        %v635 = vpop.f32.mrf.mxu0
        %v636 = vadd.f32 0.0, %v635
        %v637 = vpop.f32.mrf.mxu0
        %v638 = vadd.f32 0.0, %v637
        %639 = vmatmul.bf16.gmra.mxu0 %v605
        %v640 = vpop.f32.mrf.mxu0
        %v641 = vadd.f32 0.0, %v640
        %v642 = vpop.f32.mrf.mxu0
        %v643 = vadd.f32 0.0, %v642
        %644 = vdwg.mxu0
        %645 = vmatpush.bf16.msra.mxu0 0
        %646 = vmatpush.bf16.msra.mxu0 0
        %647 = vmatpush.bf16.msra.mxu0 %v317
        %648 = vmatpush.bf16.msra.mxu0 %v314
        %649 = vmatpush.bf16.msra.mxu0 %v286
        %650 = vmatpush.bf16.msra.mxu0 %v283
        %651 = vmatpush.bf16.msra.mxu0 %v254
        %652 = vmatpush.bf16.msra.mxu0 %v250
        %653 = vmatmul.bf16.gmra.mxu0 %v602
        %v654 = vpop.f32.mrf.mxu0
        %v655 = vadd.f32 0.0, %v654
        %v656 = vpop.f32.mrf.mxu0
        %v657 = vadd.f32 0.0, %v656
        %658 = vmatmul.bf16.gmra.mxu0 %v605
        %v659 = vpop.f32.mrf.mxu0
        %v660 = vadd.f32 0.0, %v659
        %v661 = vpop.f32.mrf.mxu0
        %v662 = vadd.f32 0.0, %v661
        %663 = vdwg.mxu0
        %664 = vmatpush.bf16.msra.mxu0 0
        %665 = vmatpush.bf16.msra.mxu0 0
        %666 = vmatpush.bf16.msra.mxu0 %v310
        %667 = vmatpush.bf16.msra.mxu0 %v302
        %668 = vmatpush.bf16.msra.mxu0 %v279
        %669 = vmatpush.bf16.msra.mxu0 %v271
        %670 = vmatpush.bf16.msra.mxu0 %v255
        %671 = vmatpush.bf16.msra.mxu0 %v251
        %672 = vmatmul.bf16.gmra.mxu0 %v602
        %v673 = vpop.f32.mrf.mxu0
        %v674 = vadd.f32 0.0, %v673
        %v675 = vpop.f32.mrf.mxu0
        %v676 = vadd.f32 0.0, %v675
        %677 = vmatmul.bf16.gmra.mxu0 %v605
        %v678 = vpop.f32.mrf.mxu0
        %v679 = vadd.f32 0.0, %v678
        %v680 = vpop.f32.mrf.mxu0
        %v681 = vadd.f32 0.0, %v680
        %682 = vdwg.mxu0
        %699 = vrot.lane.b32.xlu0 %v617, 80
        %v700 = vpop.permute.xlu0 %699
        %701 = vrot.lane.b32.xlu0 %v636, 80
        %v702 = vpop.permute.xlu0 %701
        %703 = vrot.lane.b32.xlu0 %v655, 80
        %v704 = vpop.permute.xlu0 %703
        %705 = vrot.lane.b32.xlu0 %v674, 80
        %v706 = vpop.permute.xlu0 %705
        %707 = vrot.lane.b32.xlu0 %v619, 80
        %v708 = vpop.permute.xlu0 %707
        %709 = vrot.lane.b32.xlu0 %v638, 80
        %v710 = vpop.permute.xlu0 %709
        %711 = vrot.lane.b32.xlu0 %v657, 80
        %v712 = vpop.permute.xlu0 %711
        %713 = vrot.lane.b32.xlu0 %v676, 80
        %v714 = vpop.permute.xlu0 %713
        %715 = vrot.lane.b32.xlu0 %v622, 80
        %v716 = vpop.permute.xlu0 %715
        %717 = vrot.lane.b32.xlu0 %v641, 80
        %v718 = vpop.permute.xlu0 %717
        %719 = vrot.lane.b32.xlu0 %v660, 80
        %v720 = vpop.permute.xlu0 %719
        %721 = vrot.lane.b32.xlu0 %v679, 80
        %v722 = vpop.permute.xlu0 %721
        %723 = vrot.lane.b32.xlu0 %v624, 80
        %v724 = vpop.permute.xlu0 %723
        %725 = vrot.lane.b32.xlu0 %v643, 80
        %v726 = vpop.permute.xlu0 %725
        %727 = vrot.lane.b32.xlu0 %v662, 80
        %v728 = vpop.permute.xlu0 %727
        %729 = vrot.lane.b32.xlu0 %v681, 80
        %v730 = vpop.permute.xlu0 %729
        %vm731 = vcmask 654336
        %v732 = vsel %vm731, %v700, %v702
        %v733 = vsel %vm731, %v702, %v704
        %v734 = vsel %vm731, %v704, %v706
        %v735 = vsel %vm731, %v708, %v710
        %v736 = vsel %vm731, %v710, %v712
        %v737 = vsel %vm731, %v712, %v714
        %v738 = vsel %vm731, %v716, %v718
        %v739 = vsel %vm731, %v718, %v720
        %v740 = vsel %vm731, %v720, %v722
        %v741 = vsel %vm731, %v724, %v726
        %v742 = vsel %vm731, %v726, %v728
        %v743 = vsel %vm731, %v728, %v730
        %v756 = vadd.f32 %v574, %v732
        %v757 = vadd.f32 %v575, %v733
        %v758 = vadd.f32 %v576, %v734
        %v759 = vadd.f32 %v577, %v735
        %v760 = vadd.f32 %v578, %v736
        %v761 = vadd.f32 %v579, %v737
        %v762 = vadd.f32 %v580, %v738
        %v763 = vadd.f32 %v581, %v739
        %v764 = vadd.f32 %v582, %v740
        %v765 = vadd.f32 %v583, %v741
        %v766 = vadd.f32 %v584, %v742
        %v767 = vadd.f32 %v585, %v743
        %v768 = vld [vmem:[%s2] sm:$0xff]
        %v769 = vld [vmem:[%s2 + $0x8] sm:$0xff]
        %v770 = vld [vmem:[%s2 + $0x10] sm:$0xff]
        %v771 = vld [vmem:[%s2 + $0x18] sm:$0xff]
        %773 = vset.pattern.permute.xlu0 0
        %774 = vperm.xlu0 %773, %v768
        %v775 = vpop.permute.xlu0 %774
        %778 = vset.pattern.permute.xlu0 0
        %779 = vperm.xlu0 %778, %v769
        %v780 = vpop.permute.xlu0 %779
        %783 = vset.pattern.permute.xlu0 0
        %784 = vperm.xlu0 %783, %v770
        %v785 = vpop.permute.xlu0 %784
        %788 = vset.pattern.permute.xlu0 0
        %789 = vperm.xlu0 %788, %v771
        %v790 = vpop.permute.xlu0 %789
        %v792 = vmul.f32 %v756, %v775
        %v793 = vmul.f32 %v757, %v775
        %v794 = vmul.f32 %v758, %v775
        %v795 = vmul.f32 %v759, %v780
        %v796 = vmul.f32 %v760, %v780
        %v797 = vmul.f32 %v761, %v780
        %v798 = vmul.f32 %v762, %v785
        %v799 = vmul.f32 %v763, %v785
        %v800 = vmul.f32 %v764, %v785
        %v801 = vmul.f32 %v765, %v790
        %v802 = vmul.f32 %v766, %v790
        %v803 = vmul.f32 %v767, %v790
        %v804 = vld [vmem:[%s3] sm:$0xff]
        %v805 = vld [vmem:[%s3 + $0x8] sm:$0xff]
        %v806 = vld [vmem:[%s3 + $0x10] sm:$0xff]
        %v807 = vld [vmem:[%s3 + $0x18] sm:$0xff]
        %809 = vset.pattern.permute.xlu0 0
        %810 = vperm.xlu0 %809, %v804
        %v811 = vpop.permute.xlu0 %810
        %814 = vset.pattern.permute.xlu0 0
        %815 = vperm.xlu0 %814, %v805
        %v816 = vpop.permute.xlu0 %815
        %819 = vset.pattern.permute.xlu0 0
        %820 = vperm.xlu0 %819, %v806
        %v821 = vpop.permute.xlu0 %820
        %824 = vset.pattern.permute.xlu0 0
        %825 = vperm.xlu0 %824, %v807
        %v826 = vpop.permute.xlu0 %825
        %v828 = vadd.f32 %v792, %v811
        %v829 = vadd.f32 %v793, %v811
        %v830 = vadd.f32 %v794, %v811
        %v831 = vadd.f32 %v795, %v816
        %v832 = vadd.f32 %v796, %v816
        %v833 = vadd.f32 %v797, %v816
        %v834 = vadd.f32 %v798, %v821
        %v835 = vadd.f32 %v799, %v821
        %v836 = vadd.f32 %v800, %v821
        %v837 = vadd.f32 %v801, %v826
        %v838 = vadd.f32 %v802, %v826
        %v839 = vadd.f32 %v803, %v826
        %vm840 = vcmp.ge.f32.partialorder %v828, 0.0
        %vm841 = vcmp.ge.f32.partialorder %v829, 0.0
        %vm842 = vcmp.ge.f32.partialorder %v830, 0.0
        %vm843 = vcmp.ge.f32.partialorder %v831, 0.0
        %vm844 = vcmp.ge.f32.partialorder %v832, 0.0
        %vm845 = vcmp.ge.f32.partialorder %v833, 0.0
        %vm846 = vcmp.ge.f32.partialorder %v834, 0.0
        %vm847 = vcmp.ge.f32.partialorder %v835, 0.0
        %vm848 = vcmp.ge.f32.partialorder %v836, 0.0
        %vm849 = vcmp.ge.f32.partialorder %v837, 0.0
        %vm850 = vcmp.ge.f32.partialorder %v838, 0.0
        %vm851 = vcmp.ge.f32.partialorder %v839, 0.0
        %v852 = vmul.f32 %v828, 0.01
        %v853 = vmul.f32 %v829, 0.01
        %v854 = vmul.f32 %v830, 0.01
        %v855 = vmul.f32 %v831, 0.01
        %v856 = vmul.f32 %v832, 0.01
        %v857 = vmul.f32 %v833, 0.01
        %v858 = vmul.f32 %v834, 0.01
        %v859 = vmul.f32 %v835, 0.01
        %v860 = vmul.f32 %v836, 0.01
        %v861 = vmul.f32 %v837, 0.01
        %v862 = vmul.f32 %v838, 0.01
        %v863 = vmul.f32 %v839, 0.01
        %v864 = vsel %vm840, %v828, %v852
        %v865 = vsel %vm841, %v829, %v853
        %v866 = vsel %vm842, %v830, %v854
        %v867 = vsel %vm843, %v831, %v855
        %v868 = vsel %vm844, %v832, %v856
        %v869 = vsel %vm845, %v833, %v857
        %v870 = vsel %vm846, %v834, %v858
        %v871 = vsel %vm847, %v835, %v859
        %v872 = vsel %vm848, %v836, %v860
        %v873 = vsel %vm849, %v837, %v861
        %v874 = vsel %vm850, %v838, %v862
        %v875 = vsel %vm851, %v839, %v863
        %v876 = vpack.c.bf16 %v865, %v864
        %v877 = vpack.c.bf16 %v866, %v866
        %v878 = vpack.c.bf16 %v868, %v867
        %v879 = vpack.c.bf16 %v869, %v869
        %v880 = vpack.c.bf16 %v871, %v870
        %v881 = vpack.c.bf16 %v872, %v872
        %v882 = vpack.c.bf16 %v874, %v873
        %v883 = vpack.c.bf16 %v875, %v875
        %884 = vst [vmem:[%s214] sm:$0xff] %v876
        %885 = vst [vmem:[%s214 + $0x8] sm:$0xf] %v877
        %886 = vst [vmem:[%s214 + $0xc] sm:$0xff] %v878
        %887 = vst [vmem:[%s214 + $0x14] sm:$0xf] %v879
        %888 = vst [vmem:[%s214 + $0x18] sm:$0xff] %v880
        %889 = vst [vmem:[%s214 + $0x20] sm:$0xf] %v881
        %890 = vst [vmem:[%s214 + $0x24] sm:$0xff] %v882
        %891 = vst [vmem:[%s214 + $0x2c] sm:$0xf] %v883
        %p892 = scmp.lt.s32.totalorder %s16, 1
        %s893 = scalar_select %p892, %s16, 1
        %s894 = smul.addr %s893, 12
        %s895 = smul.addr %s894, 4
        %s896 = scalar_lea.vmem %s4, %s895
        // Predicated region
        $region41: #{forward.7} parent=35 // pred_check
          %p897 = pneg %p123
        $region42: #{forward.7} parent=35 // pred_check_branch
          %899 = sbr.rel (%p897) target = $region44
        $region43: #{forward.7} parent=35 // pred_region
          _
        $region44: #{forward.7} parent=35 // pred_fallthru
          _
      $region36: #{forward.7} parent=5 // pred_fallthru
        _
      %p900 = scmp.le.s32.totalorder 2, %s11
      // Predicated region
      $region45: #{forward.7} parent=5 // pred_check
        %p901 = pneg %p900
      $region46: #{forward.7} parent=5 // pred_check_branch
        %903 = sbr.rel (%p901) target = $region48
      $region47: #{forward.7} parent=5 // pred_region
        %s904 = ssub.s32 %s11, 2
        // Predicated region
        $region49: #{forward.7} parent=47 // pred_check
          %p905 = pneg %p129
        $region50: #{forward.7} parent=47 // pred_check_branch
          %907 = sbr.rel (%p905) target = $region52
        $region51: #{forward.7} parent=47 // pred_region
          %p908 = scmp.lt.s32.totalorder %s17, 1
          %s909 = scalar_select %p908, %s17, 1
          %s910 = smul.addr %s909, 12
          %s911 = smul.addr %s910, 4
          %s912 = scalar_lea.vmem %s4, %s911
        $region52: #{forward.7} parent=47 // pred_fallthru
          _
      $region48: #{forward.7} parent=5 // pred_fallthru
        _
    $region6: #{forward.7} parent=1 // loop_footer
      %s15 = sadd.s32 1, %s11
    $region7: #{forward.7} parent=1 // loop_footer_branch
      %10 = sbr.rel target = $region3
    $region8: #{forward.7} parent=1 // loop_exit
      _
    %913 = vsyncpa [#allocation3], 1
    %s914 = scalar_lea.sflag [#allocation3], 1
    %915 = vsyncpa %s914, 1

// kernel: forward.8
$region0: #{forward.8}
  #allocation0 [shape = 'u32[]', space=smem, size = 0x4, offset = 0x4, fixed_abs, tag = 'smem constant byte address 0x4 - core index']
  #allocation1 [shape = 'u32[72,128]{1,0:T(1,128)}', space=vmem, size = 0x9000, scoped, tag = 'internal scratch']
  %s0 = inlined_call_operand.vmem [shape: bf16[2,32,176], index: 0, kind: input, shape index: {}]
  %s1 = inlined_call_operand.vmem [shape: bf16[3,64,96], index: 1, kind: input, shape index: {}]
  %s2 = inlined_call_operand.vmem [shape: f32[64,1], index: 2, kind: input, shape index: {}]
  %s3 = inlined_call_operand.vmem [shape: f32[64,1], index: 3, kind: input, shape index: {}]
  %s4 = inlined_call_operand.vmem [shape: bf16[2,64,128], index: 4, kind: output, shape index: {}]
  %s5 = sld [smem:[#allocation0]]
  $region49: #{forward.8} parent=0
    _
  %s7 = ssub.s32 1, %s5
  %s8 = scalar_select 0, %s7, %s5
  loop: start=0, step=1, limit=4
  $region2: #{forward.8} parent=0 // loop_pre_header
    _
  $region3: #{forward.8} parent=0 // loop_header
    %s10 = sphi 0, %s14
    %p11 = scmp.ge.s32.totalorder %s10, 4
    %s20 = sphi 0, %s22
    %s23 = sphi 0, %s20
    %s24 = sphi 0, %s23
    %s40 = sphi 0, %s24
    %s44 = sphi 0, %s44
    %s46 = sphi 0, %s44
    %s47 = sphi 0, %s46
    %s61 = sphi 0, %s47
    %s65 = sphi 0, %s65
    %s67 = sphi 0, %s65
    %s68 = sphi 0, %s67
    %s82 = sphi 0, %s68
    %s86 = sphi 0, %s86
    %s88 = sphi 0, %s86
    %s89 = sphi 0, %s88
    %s103 = sphi 0, %s89
    %s109 = sphi 0, %s111
    %s112 = sphi 0, %s109
    %s113 = sphi 0, %s112
    %s129 = sphi 0, %s113
  $region4: #{forward.8} parent=0 // loop_header_branch
    %13 = sbr.rel (%p11) target = $region8
  $region5: #{forward.8} parent=0 // loop_body
    %s15 = ssub.s32 %s10, 1
    %s16 = ssub.s32 %s10, 2
    %s17 = sadd.s32 %s10, 1
    %s18 = ssub.s32 %s10, %s17
    %p19 = scmp.eq.s32.totalorder %s18, 0
    %s21 = sadd.s32 %s20, 1
    %s22 = scalar_select %p19, %s20, %s21
    %p25 = pneg %p19
    %p26 = scmp.eq.s32.totalorder %s10, 1
    %p27 = por %p25, %p26
    %p28 = scmp.ne.s32.totalorder %s20, %s23
    %p29 = scmp.eq.s32.totalorder %s10, 0
    %p30 = por %p28, %p29
    %p31 = scmp.ne.s32.totalorder %s20, %s23
    %p32 = scmp.eq.s32.totalorder %s15, 1
    %p33 = por %p31, %p32
    %p34 = scmp.ne.s32.totalorder %s23, %s24
    %p35 = scmp.eq.s32.totalorder %s15, 0
    %p36 = por %p34, %p35
    %p37 = scmp.ne.s32.totalorder %s23, %s24
    %p38 = scmp.eq.s32.totalorder %s16, 1
    %p39 = por %p37, %p38
    %p41 = scmp.ne.s32.totalorder %s24, %s40
    %p42 = scmp.eq.s32.totalorder %s16, 0
    %p43 = por %p41, %p42
    %s45 = sadd.s32 %s44, 1
    %p48 = scmp.eq.s32.totalorder %s10, 1
    %p49 = scmp.ne.s32.totalorder %s44, %s46
    %p50 = scmp.eq.s32.totalorder %s10, 0
    %p51 = por %p49, %p50
    %p52 = scmp.ne.s32.totalorder %s44, %s46
    %p53 = scmp.eq.s32.totalorder %s15, 1
    %p54 = por %p52, %p53
    %p55 = scmp.ne.s32.totalorder %s46, %s47
    %p56 = scmp.eq.s32.totalorder %s15, 0
    %p57 = por %p55, %p56
    %p58 = scmp.ne.s32.totalorder %s46, %s47
    %p59 = scmp.eq.s32.totalorder %s16, 1
    %p60 = por %p58, %p59
    %p62 = scmp.ne.s32.totalorder %s47, %s61
    %p63 = scmp.eq.s32.totalorder %s16, 0
    %p64 = por %p62, %p63
    %s66 = sadd.s32 %s65, 1
    %p69 = scmp.eq.s32.totalorder %s10, 1
    %p70 = scmp.ne.s32.totalorder %s65, %s67
    %p71 = scmp.eq.s32.totalorder %s10, 0
    %p72 = por %p70, %p71
    %p73 = scmp.ne.s32.totalorder %s65, %s67
    %p74 = scmp.eq.s32.totalorder %s15, 1
    %p75 = por %p73, %p74
    %p76 = scmp.ne.s32.totalorder %s67, %s68
    %p77 = scmp.eq.s32.totalorder %s15, 0
    %p78 = por %p76, %p77
    %p79 = scmp.ne.s32.totalorder %s67, %s68
    %p80 = scmp.eq.s32.totalorder %s16, 1
    %p81 = por %p79, %p80
    %p83 = scmp.ne.s32.totalorder %s68, %s82
    %p84 = scmp.eq.s32.totalorder %s16, 0
    %p85 = por %p83, %p84
    %s87 = sadd.s32 %s86, 1
    %p90 = scmp.eq.s32.totalorder %s10, 1
    %p91 = scmp.ne.s32.totalorder %s86, %s88
    %p92 = scmp.eq.s32.totalorder %s10, 0
    %p93 = por %p91, %p92
    %p94 = scmp.ne.s32.totalorder %s86, %s88
    %p95 = scmp.eq.s32.totalorder %s15, 1
    %p96 = por %p94, %p95
    %p97 = scmp.ne.s32.totalorder %s88, %s89
    %p98 = scmp.eq.s32.totalorder %s15, 0
    %p99 = por %p97, %p98
    %p100 = scmp.ne.s32.totalorder %s88, %s89
    %p101 = scmp.eq.s32.totalorder %s16, 1
    %p102 = por %p100, %p101
    %p104 = scmp.ne.s32.totalorder %s89, %s103
    %p105 = scmp.eq.s32.totalorder %s16, 0
    %p106 = por %p104, %p105
    %s107 = ssub.s32 %s10, %s17
    %p108 = scmp.eq.s32.totalorder %s107, 0
    %s110 = sadd.s32 %s109, 1
    %s111 = scalar_select %p108, %s109, %s110
    %p114 = pneg %p108
    %p115 = scmp.eq.s32.totalorder %s10, 1
    %p116 = por %p114, %p115
    %p117 = scmp.ne.s32.totalorder %s109, %s112
    %p118 = scmp.eq.s32.totalorder %s10, 0
    %p119 = por %p117, %p118
    %p120 = scmp.ne.s32.totalorder %s109, %s112
    %p121 = scmp.eq.s32.totalorder %s15, 1
    %p122 = por %p120, %p121
    %p123 = scmp.ne.s32.totalorder %s112, %s113
    %p124 = scmp.eq.s32.totalorder %s15, 0
    %p125 = por %p123, %p124
    %p126 = scmp.ne.s32.totalorder %s112, %s113
    %p127 = scmp.eq.s32.totalorder %s16, 1
    %p128 = por %p126, %p127
    %p130 = scmp.ne.s32.totalorder %s113, %s129
    %p131 = scmp.eq.s32.totalorder %s16, 0
    %p132 = por %p130, %p131
    %p133 = scmp.le.s32.totalorder 1, %s10
    %p134 = scmp.lt.s32.totalorder %s10, 3
    %p135 = pnand %p133, %p134
    %p136 = pneg %p135
    // Predicated region
    $region9: #{forward.8} parent=5 // pred_check
      _
    $region10: #{forward.8} parent=5 // pred_check_branch
      %138 = sbr.rel (%p135) target = $region12
    $region11: #{forward.8} parent=5 // pred_region
      %s139 = ssub.s32 %s10, 1
      // Predicated region
      $region13: #{forward.8} parent=11 // pred_check
        %p140 = pneg %p57
      $region14: #{forward.8} parent=11 // pred_check_branch
        %142 = sbr.rel (%p140) target = $region16
      $region15: #{forward.8} parent=11 // pred_region
        _
      $region16: #{forward.8} parent=11 // pred_fallthru
        _
      // Predicated region
      $region17: #{forward.8} parent=11 // pred_check
        %p143 = pneg %p78
      $region18: #{forward.8} parent=11 // pred_check_branch
        %145 = sbr.rel (%p143) target = $region20
      $region19: #{forward.8} parent=11 // pred_region
        _
      $region20: #{forward.8} parent=11 // pred_fallthru
        _
      // Predicated region
      $region21: #{forward.8} parent=11 // pred_check
        %p146 = pneg %p99
      $region22: #{forward.8} parent=11 // pred_check_branch
        %148 = sbr.rel (%p146) target = $region24
      $region23: #{forward.8} parent=11 // pred_region
        _
      $region24: #{forward.8} parent=11 // pred_fallthru
        _
    $region12: #{forward.8} parent=5 // pred_fallthru
      _
    %p149 = scmp.lt.s32.totalorder %s10, 2
    // Predicated region
    $region25: #{forward.8} parent=5 // pred_check
      %p150 = pneg %p149
    $region26: #{forward.8} parent=5 // pred_check_branch
      %152 = sbr.rel (%p150) target = $region28
    $region27: #{forward.8} parent=5 // pred_region
      // Predicated region
      $region29: #{forward.8} parent=27 // pred_check
        %p153 = pneg %p30
      $region30: #{forward.8} parent=27 // pred_check_branch
        %155 = sbr.rel (%p153) target = $region32
      $region31: #{forward.8} parent=27 // pred_region
        %p156 = scmp.lt.s32.totalorder %s10, 1
        %s157 = scalar_select %p156, %s10, 1
        %s158 = smul.addr %s157, 8
        %s159 = smul.addr %s158, 4
        %s160 = scalar_lea.vmem %s0, %s159
      $region32: #{forward.8} parent=27 // pred_fallthru
        _
    $region28: #{forward.8} parent=5 // pred_fallthru
      _
    %p161 = scmp.le.s32.totalorder 1, %s10
    %p162 = scmp.lt.s32.totalorder %s10, 3
    %p163 = pnand %p161, %p162
    %p164 = pneg %p163
    // Predicated region
    $region33: #{forward.8} parent=5 // pred_check
      _
    $region34: #{forward.8} parent=5 // pred_check_branch
      %166 = sbr.rel (%p163) target = $region36
    $region35: #{forward.8} parent=5 // pred_region
      %s167 = ssub.s32 %s10, 1
      %p168 = scmp.lt.s32.totalorder %s15, 1
      %s169 = scalar_select %p168, %s15, 1
      %s170 = smul.addr %s169, 8
      %s171 = smul.addr %s170, 4
      %s172 = scalar_lea.vmem %s0, %s171
      %p173 = pneg %p36
      %p174 = pneg %p33
      %p175 = pneg %p57
      %p176 = pneg %p54
      %p177 = pneg %p78
      %p178 = pneg %p75
      %p179 = pneg %p99
      %p180 = pneg %p96
      %p181 = pneg %p125
      %p182 = pneg %p122
      %p183 = scmp.lt.s32.totalorder %s15, 1
      %s184 = scalar_select %p183, %s15, 1
      %s185 = smul.addr %s184, 8
      %s186 = smul.addr %s185, 4
      %s187 = scalar_lea.vmem %s4, %s186
      %p188 = scmp.lt.s32.totalorder %s15, 1
      %s189 = scalar_select %p188, %s15, 1
      %s190 = smul.addr %s189, 8
      %s191 = smul.addr %s190, 4
      %s192 = scalar_lea.vmem %s0, %s191
      %p193 = scmp.lt.s32.totalorder %s15, 1
      %s194 = scalar_select %p193, %s15, 1
      %s195 = smul.addr %s194, 8
      %s196 = smul.addr %s195, 4
      %s197 = scalar_lea.vmem %s4, %s196
      %v199 = vld [vmem:[%s192] sm:$0xff]
      %v200 = vld [vmem:[%s192 + $0x8] sm:$0xff]
      %v201 = vld [vmem:[%s192 + $0x10] sm:$0xff]
      %v202 = vld [vmem:[%s192 + $0x18] sm:$0xff]
      %v207 = vunpack.c.l.b16 %v199
      %v208 = vunpack.c.h.b16 %v199
      %v209 = vunpack.c.l.b16 %v200
      %v210 = vunpack.c.h.b16 %v200
      %v211 = vunpack.c.l.b16 %v201
      %v212 = vunpack.c.h.b16 %v201
      %v213 = vunpack.c.l.b16 %v202
      %v214 = vunpack.c.h.b16 %v202
      %v215 = vpack.c.b16 %v209, %v207
      %v216 = vpack.c.b16 %v210, %v208
      %v217 = vpack.c.b16 %v213, %v211
      %v218 = vpack.c.b16 %v214, %v212
      %223 = vrot.lane.b32.xlu0 %v215, 127
      %v224 = vpop.permute.xlu0 %223
      %225 = vrot.lane.b32.xlu0 %v216, 127
      %v226 = vpop.permute.xlu0 %225
      %227 = vrot.lane.b32.xlu0 %v217, 127
      %v228 = vpop.permute.xlu0 %227
      %229 = vrot.lane.b32.xlu0 %v218, 127
      %v230 = vpop.permute.xlu0 %229
      %vm231 = vcmask 1039360
      %v232 = vsel %vm231, %v224, %v226
      %v233 = vsel %vm231, %v228, %v230
      %238 = vrot.lane.b32.xlu0 %v215, 126
      %v239 = vpop.permute.xlu0 %238
      %240 = vrot.lane.b32.xlu0 %v216, 126
      %v241 = vpop.permute.xlu0 %240
      %242 = vrot.lane.b32.xlu0 %v217, 126
      %v243 = vpop.permute.xlu0 %242
      %244 = vrot.lane.b32.xlu0 %v218, 126
      %v245 = vpop.permute.xlu0 %244
      %vm246 = vcmask 1031168
      %v247 = vsel %vm246, %v239, %v241
      %v248 = vsel %vm246, %v243, %v245
      %v253 = vld [vmem:[%s1] sm:$0xf]
      %v254 = vld [vmem:[%s1 + $0x4] sm:$0xf]
      %v255 = vld [vmem:[%s1 + $0x8] sm:$0xf]
      %v256 = vld [vmem:[%s1 + $0xc] sm:$0xf]
      %v257 = vld [vmem:[%s1 + $0x10] sm:$0xf]
      %v258 = vld [vmem:[%s1 + $0x14] sm:$0xf]
      %v259 = vld [vmem:[%s1 + $0x18] sm:$0xf]
      %v260 = vld [vmem:[%s1 + $0x1c] sm:$0xf]
      %v269 = vunpack.c.l.b16 %v253
      %v270 = vunpack.c.l.b16 %v254
      %v271 = vunpack.c.l.b16 %v255
      %v272 = vunpack.c.l.b16 %v256
      %v273 = vunpack.c.l.b16 %v257
      %v274 = vunpack.c.l.b16 %v258
      %v275 = vunpack.c.l.b16 %v259
      %v276 = vunpack.c.l.b16 %v260
      %v277 = vpack.c.b16 %v270, %v269
      %v278 = vpack.c.b16 %v272, %v271
      %v279 = vpack.c.b16 %v274, %v273
      %v280 = vpack.c.b16 %v276, %v275
      %vm281 = vcmask 785408
      %v283 = vsel %vm281, %v277, 0
      %v286 = vsel %vm281, %v278, 0
      %v289 = vsel %vm281, %v279, 0
      %v292 = vsel %vm281, %v280, 0
      %294 = vmatpush.bf16.msra.mxu0 0
      %295 = vmatpush.bf16.msra.mxu0 0
      %296 = vmatpush.bf16.msra.mxu0 %v248
      %297 = vmatpush.bf16.msra.mxu0 %v247
      %298 = vmatpush.bf16.msra.mxu0 %v233
      %299 = vmatpush.bf16.msra.mxu0 %v232
      %300 = vmatpush.bf16.msra.mxu0 %v217
      %301 = vmatpush.bf16.msra.mxu0 %v215
      %302 = vmatmul.bf16.gmra.mxu0 %v283
      %v303 = vpop.f32.mrf.mxu0
      %v304 = vadd.f32 0.0, %v303
      %v305 = vpop.f32.mrf.mxu0
      %v306 = vadd.f32 0.0, %v305
      %307 = vmatmul.bf16.gmra.mxu0 %v286
      %v308 = vpop.f32.mrf.mxu0
      %v309 = vadd.f32 0.0, %v308
      %v310 = vpop.f32.mrf.mxu0
      %v311 = vadd.f32 0.0, %v310
      %312 = vmatmul.bf16.gmra.mxu0 %v289
      %v313 = vpop.f32.mrf.mxu0
      %v314 = vadd.f32 0.0, %v313
      %v315 = vpop.f32.mrf.mxu0
      %v316 = vadd.f32 0.0, %v315
      %317 = vmatmul.bf16.gmra.mxu0 %v292
      %v318 = vpop.f32.mrf.mxu0
      %v319 = vadd.f32 0.0, %v318
      %v320 = vpop.f32.mrf.mxu0
      %v321 = vadd.f32 0.0, %v320
      %322 = vdwg.mxu0
      %s323 = scalar_lea.vmem %s1, 32
      %v324 = vld [vmem:[%s323] sm:$0xf]
      %v325 = vld [vmem:[%s323 + $0x4] sm:$0xf]
      %v326 = vld [vmem:[%s323 + $0x8] sm:$0xf]
      %v327 = vld [vmem:[%s323 + $0xc] sm:$0xf]
      %v328 = vld [vmem:[%s323 + $0x10] sm:$0xf]
      %v329 = vld [vmem:[%s323 + $0x14] sm:$0xf]
      %v330 = vld [vmem:[%s323 + $0x18] sm:$0xf]
      %v331 = vld [vmem:[%s323 + $0x1c] sm:$0xf]
      %v340 = vunpack.c.l.b16 %v324
      %v341 = vunpack.c.l.b16 %v325
      %v342 = vunpack.c.l.b16 %v326
      %v343 = vunpack.c.l.b16 %v327
      %v344 = vunpack.c.l.b16 %v328
      %v345 = vunpack.c.l.b16 %v329
      %v346 = vunpack.c.l.b16 %v330
      %v347 = vunpack.c.l.b16 %v331
      %v348 = vpack.c.b16 %v341, %v340
      %v349 = vpack.c.b16 %v343, %v342
      %v350 = vpack.c.b16 %v345, %v344
      %v351 = vpack.c.b16 %v347, %v346
      %v353 = vsel %vm281, %v348, 0
      %v356 = vsel %vm281, %v349, 0
      %v359 = vsel %vm281, %v350, 0
      %v362 = vsel %vm281, %v351, 0
      %364 = vmatpush.bf16.msra.mxu0 0
      %365 = vmatpush.bf16.msra.mxu0 0
      %366 = vmatpush.bf16.msra.mxu0 %v248
      %367 = vmatpush.bf16.msra.mxu0 %v247
      %368 = vmatpush.bf16.msra.mxu0 %v233
      %369 = vmatpush.bf16.msra.mxu0 %v232
      %370 = vmatpush.bf16.msra.mxu0 %v217
      %371 = vmatpush.bf16.msra.mxu0 %v215
      %372 = vmatmul.bf16.gmra.mxu0 %v353
      %v373 = vpop.f32.mrf.mxu0
      %v374 = vadd.f32 0.0, %v373
      %v375 = vpop.f32.mrf.mxu0
      %v376 = vadd.f32 0.0, %v375
      %377 = vmatmul.bf16.gmra.mxu0 %v356
      %v378 = vpop.f32.mrf.mxu0
      %v379 = vadd.f32 0.0, %v378
      %v380 = vpop.f32.mrf.mxu0
      %v381 = vadd.f32 0.0, %v380
      %382 = vmatmul.bf16.gmra.mxu0 %v359
      %v383 = vpop.f32.mrf.mxu0
      %v384 = vadd.f32 0.0, %v383
      %v385 = vpop.f32.mrf.mxu0
      %v386 = vadd.f32 0.0, %v385
      %387 = vmatmul.bf16.gmra.mxu0 %v362
      %v388 = vpop.f32.mrf.mxu0
      %v389 = vadd.f32 0.0, %v388
      %v390 = vpop.f32.mrf.mxu0
      %v391 = vadd.f32 0.0, %v390
      %392 = vdwg.mxu0
      %393 = vmatpush.bf16.msra.mxu0 0
      %394 = vmatpush.bf16.msra.mxu0 0
      %395 = vmatpush.bf16.msra.mxu0 %v245
      %396 = vmatpush.bf16.msra.mxu0 %v241
      %397 = vmatpush.bf16.msra.mxu0 %v230
      %398 = vmatpush.bf16.msra.mxu0 %v226
      %399 = vmatpush.bf16.msra.mxu0 %v218
      %400 = vmatpush.bf16.msra.mxu0 %v216
      %401 = vmatmul.bf16.gmra.mxu0 %v353
      %v402 = vpop.f32.mrf.mxu0
      %v403 = vadd.f32 0.0, %v402
      %v404 = vpop.f32.mrf.mxu0
      %v405 = vadd.f32 0.0, %v404
      %406 = vmatmul.bf16.gmra.mxu0 %v356
      %v407 = vpop.f32.mrf.mxu0
      %v408 = vadd.f32 0.0, %v407
      %v409 = vpop.f32.mrf.mxu0
      %v410 = vadd.f32 0.0, %v409
      %411 = vmatmul.bf16.gmra.mxu0 %v359
      %v412 = vpop.f32.mrf.mxu0
      %v413 = vadd.f32 0.0, %v412
      %v414 = vpop.f32.mrf.mxu0
      %v415 = vadd.f32 0.0, %v414
      %416 = vmatmul.bf16.gmra.mxu0 %v362
      %v417 = vpop.f32.mrf.mxu0
      %v418 = vadd.f32 0.0, %v417
      %v419 = vpop.f32.mrf.mxu0
      %v420 = vadd.f32 0.0, %v419
      %421 = vdwg.mxu0
      %438 = vrot.lane.b32.xlu0 %v374, 112
      %v439 = vpop.permute.xlu0 %438
      %440 = vrot.lane.b32.xlu0 %v403, 112
      %v441 = vpop.permute.xlu0 %440
      %442 = vrot.lane.b32.xlu0 %v376, 112
      %v443 = vpop.permute.xlu0 %442
      %444 = vrot.lane.b32.xlu0 %v405, 112
      %v445 = vpop.permute.xlu0 %444
      %446 = vrot.lane.b32.xlu0 %v379, 112
      %v447 = vpop.permute.xlu0 %446
      %448 = vrot.lane.b32.xlu0 %v408, 112
      %v449 = vpop.permute.xlu0 %448
      %450 = vrot.lane.b32.xlu0 %v381, 112
      %v451 = vpop.permute.xlu0 %450
      %452 = vrot.lane.b32.xlu0 %v410, 112
      %v453 = vpop.permute.xlu0 %452
      %454 = vrot.lane.b32.xlu0 %v384, 112
      %v455 = vpop.permute.xlu0 %454
      %456 = vrot.lane.b32.xlu0 %v413, 112
      %v457 = vpop.permute.xlu0 %456
      %458 = vrot.lane.b32.xlu0 %v386, 112
      %v459 = vpop.permute.xlu0 %458
      %460 = vrot.lane.b32.xlu0 %v415, 112
      %v461 = vpop.permute.xlu0 %460
      %462 = vrot.lane.b32.xlu0 %v389, 112
      %v463 = vpop.permute.xlu0 %462
      %464 = vrot.lane.b32.xlu0 %v418, 112
      %v465 = vpop.permute.xlu0 %464
      %466 = vrot.lane.b32.xlu0 %v391, 112
      %v467 = vpop.permute.xlu0 %466
      %468 = vrot.lane.b32.xlu0 %v420, 112
      %v469 = vpop.permute.xlu0 %468
      %vm470 = vcmask 916480
      %v471 = vsel %vm470, %v439, %v441
      %v472 = vsel %vm470, %v443, %v445
      %v473 = vsel %vm470, %v447, %v449
      %v474 = vsel %vm470, %v451, %v453
      %v475 = vsel %vm470, %v455, %v457
      %v476 = vsel %vm470, %v459, %v461
      %v477 = vsel %vm470, %v463, %v465
      %v478 = vsel %vm470, %v467, %v469
      %v487 = vadd.f32 %v304, %v471
      %v488 = vadd.f32 %v306, %v472
      %v489 = vadd.f32 %v309, %v473
      %v490 = vadd.f32 %v311, %v474
      %v491 = vadd.f32 %v314, %v475
      %v492 = vadd.f32 %v316, %v476
      %v493 = vadd.f32 %v319, %v477
      %v494 = vadd.f32 %v321, %v478
      %s495 = scalar_lea.vmem %s1, 64
      %v496 = vld [vmem:[%s495] sm:$0xf]
      %v497 = vld [vmem:[%s495 + $0x4] sm:$0xf]
      %v498 = vld [vmem:[%s495 + $0x8] sm:$0xf]
      %v499 = vld [vmem:[%s495 + $0xc] sm:$0xf]
      %v500 = vld [vmem:[%s495 + $0x10] sm:$0xf]
      %v501 = vld [vmem:[%s495 + $0x14] sm:$0xf]
      %v502 = vld [vmem:[%s495 + $0x18] sm:$0xf]
      %v503 = vld [vmem:[%s495 + $0x1c] sm:$0xf]
      %v512 = vunpack.c.l.b16 %v496
      %v513 = vunpack.c.l.b16 %v497
      %v514 = vunpack.c.l.b16 %v498
      %v515 = vunpack.c.l.b16 %v499
      %v516 = vunpack.c.l.b16 %v500
      %v517 = vunpack.c.l.b16 %v501
      %v518 = vunpack.c.l.b16 %v502
      %v519 = vunpack.c.l.b16 %v503
      %v520 = vpack.c.b16 %v513, %v512
      %v521 = vpack.c.b16 %v515, %v514
      %v522 = vpack.c.b16 %v517, %v516
      %v523 = vpack.c.b16 %v519, %v518
      %v525 = vsel %vm281, %v520, 0
      %v528 = vsel %vm281, %v521, 0
      %v531 = vsel %vm281, %v522, 0
      %v534 = vsel %vm281, %v523, 0
      %536 = vmatpush.bf16.msra.mxu0 0
      %537 = vmatpush.bf16.msra.mxu0 0
      %538 = vmatpush.bf16.msra.mxu0 %v248
      %539 = vmatpush.bf16.msra.mxu0 %v247
      %540 = vmatpush.bf16.msra.mxu0 %v233
      %541 = vmatpush.bf16.msra.mxu0 %v232
      %542 = vmatpush.bf16.msra.mxu0 %v217
      %543 = vmatpush.bf16.msra.mxu0 %v215
      %544 = vmatmul.bf16.gmra.mxu0 %v525
      %v545 = vpop.f32.mrf.mxu0
      %v546 = vadd.f32 0.0, %v545
      %v547 = vpop.f32.mrf.mxu0
      %v548 = vadd.f32 0.0, %v547
      %549 = vmatmul.bf16.gmra.mxu0 %v528
      %v550 = vpop.f32.mrf.mxu0
      %v551 = vadd.f32 0.0, %v550
      %v552 = vpop.f32.mrf.mxu0
      %v553 = vadd.f32 0.0, %v552
      %554 = vmatmul.bf16.gmra.mxu0 %v531
      %v555 = vpop.f32.mrf.mxu0
      %v556 = vadd.f32 0.0, %v555
      %v557 = vpop.f32.mrf.mxu0
      %v558 = vadd.f32 0.0, %v557
      %559 = vmatmul.bf16.gmra.mxu0 %v534
      %v560 = vpop.f32.mrf.mxu0
      %v561 = vadd.f32 0.0, %v560
      %v562 = vpop.f32.mrf.mxu0
      %v563 = vadd.f32 0.0, %v562
      %564 = vdwg.mxu0
      %565 = vmatpush.bf16.msra.mxu0 0
      %566 = vmatpush.bf16.msra.mxu0 0
      %567 = vmatpush.bf16.msra.mxu0 %v245
      %568 = vmatpush.bf16.msra.mxu0 %v241
      %569 = vmatpush.bf16.msra.mxu0 %v230
      %570 = vmatpush.bf16.msra.mxu0 %v226
      %571 = vmatpush.bf16.msra.mxu0 %v218
      %572 = vmatpush.bf16.msra.mxu0 %v216
      %573 = vmatmul.bf16.gmra.mxu0 %v525
      %v574 = vpop.f32.mrf.mxu0
      %v575 = vadd.f32 0.0, %v574
      %v576 = vpop.f32.mrf.mxu0
      %v577 = vadd.f32 0.0, %v576
      %578 = vmatmul.bf16.gmra.mxu0 %v528
      %v579 = vpop.f32.mrf.mxu0
      %v580 = vadd.f32 0.0, %v579
      %v581 = vpop.f32.mrf.mxu0
      %v582 = vadd.f32 0.0, %v581
      %583 = vmatmul.bf16.gmra.mxu0 %v531
      %v584 = vpop.f32.mrf.mxu0
      %v585 = vadd.f32 0.0, %v584
      %v586 = vpop.f32.mrf.mxu0
      %v587 = vadd.f32 0.0, %v586
      %588 = vmatmul.bf16.gmra.mxu0 %v534
      %v589 = vpop.f32.mrf.mxu0
      %v590 = vadd.f32 0.0, %v589
      %v591 = vpop.f32.mrf.mxu0
      %v592 = vadd.f32 0.0, %v591
      %593 = vdwg.mxu0
      %610 = vrot.lane.b32.xlu0 %v546, 96
      %v611 = vpop.permute.xlu0 %610
      %612 = vrot.lane.b32.xlu0 %v575, 96
      %v613 = vpop.permute.xlu0 %612
      %614 = vrot.lane.b32.xlu0 %v548, 96
      %v615 = vpop.permute.xlu0 %614
      %616 = vrot.lane.b32.xlu0 %v577, 96
      %v617 = vpop.permute.xlu0 %616
      %618 = vrot.lane.b32.xlu0 %v551, 96
      %v619 = vpop.permute.xlu0 %618
      %620 = vrot.lane.b32.xlu0 %v580, 96
      %v621 = vpop.permute.xlu0 %620
      %622 = vrot.lane.b32.xlu0 %v553, 96
      %v623 = vpop.permute.xlu0 %622
      %624 = vrot.lane.b32.xlu0 %v582, 96
      %v625 = vpop.permute.xlu0 %624
      %626 = vrot.lane.b32.xlu0 %v556, 96
      %v627 = vpop.permute.xlu0 %626
      %628 = vrot.lane.b32.xlu0 %v585, 96
      %v629 = vpop.permute.xlu0 %628
      %630 = vrot.lane.b32.xlu0 %v558, 96
      %v631 = vpop.permute.xlu0 %630
      %632 = vrot.lane.b32.xlu0 %v587, 96
      %v633 = vpop.permute.xlu0 %632
      %634 = vrot.lane.b32.xlu0 %v561, 96
      %v635 = vpop.permute.xlu0 %634
      %636 = vrot.lane.b32.xlu0 %v590, 96
      %v637 = vpop.permute.xlu0 %636
      %638 = vrot.lane.b32.xlu0 %v563, 96
      %v639 = vpop.permute.xlu0 %638
      %640 = vrot.lane.b32.xlu0 %v592, 96
      %v641 = vpop.permute.xlu0 %640
      %v642 = vsel %vm281, %v611, %v613
      %v643 = vsel %vm281, %v615, %v617
      %v644 = vsel %vm281, %v619, %v621
      %v645 = vsel %vm281, %v623, %v625
      %v646 = vsel %vm281, %v627, %v629
      %v647 = vsel %vm281, %v631, %v633
      %v648 = vsel %vm281, %v635, %v637
      %v649 = vsel %vm281, %v639, %v641
      %v658 = vadd.f32 %v487, %v642
      %v659 = vadd.f32 %v488, %v643
      %v660 = vadd.f32 %v489, %v644
      %v661 = vadd.f32 %v490, %v645
      %v662 = vadd.f32 %v491, %v646
      %v663 = vadd.f32 %v492, %v647
      %v664 = vadd.f32 %v493, %v648
      %v665 = vadd.f32 %v494, %v649
      %v666 = vld [vmem:[%s2] sm:$0xff]
      %v667 = vld [vmem:[%s2 + $0x8] sm:$0xff]
      %v668 = vld [vmem:[%s2 + $0x10] sm:$0xff]
      %v669 = vld [vmem:[%s2 + $0x18] sm:$0xff]
      %v670 = vld [vmem:[%s2 + $0x20] sm:$0xff]
      %v671 = vld [vmem:[%s2 + $0x28] sm:$0xff]
      %v672 = vld [vmem:[%s2 + $0x30] sm:$0xff]
      %v673 = vld [vmem:[%s2 + $0x38] sm:$0xff]
      %675 = vset.pattern.permute.xlu0 0
      %676 = vperm.xlu0 %675, %v666
      %v677 = vpop.permute.xlu0 %676
      %680 = vset.pattern.permute.xlu0 0
      %681 = vperm.xlu0 %680, %v667
      %v682 = vpop.permute.xlu0 %681
      %685 = vset.pattern.permute.xlu0 0
      %686 = vperm.xlu0 %685, %v668
      %v687 = vpop.permute.xlu0 %686
      %690 = vset.pattern.permute.xlu0 0
      %691 = vperm.xlu0 %690, %v669
      %v692 = vpop.permute.xlu0 %691
      %695 = vset.pattern.permute.xlu0 0
      %696 = vperm.xlu0 %695, %v670
      %v697 = vpop.permute.xlu0 %696
      %700 = vset.pattern.permute.xlu0 0
      %701 = vperm.xlu0 %700, %v671
      %v702 = vpop.permute.xlu0 %701
      %705 = vset.pattern.permute.xlu0 0
      %706 = vperm.xlu0 %705, %v672
      %v707 = vpop.permute.xlu0 %706
      %710 = vset.pattern.permute.xlu0 0
      %711 = vperm.xlu0 %710, %v673
      %v712 = vpop.permute.xlu0 %711
      %v714 = vmul.f32 %v658, %v677
      %v715 = vmul.f32 %v659, %v682
      %v716 = vmul.f32 %v660, %v687
      %v717 = vmul.f32 %v661, %v692
      %v718 = vmul.f32 %v662, %v697
      %v719 = vmul.f32 %v663, %v702
      %v720 = vmul.f32 %v664, %v707
      %v721 = vmul.f32 %v665, %v712
      %v722 = vld [vmem:[%s3] sm:$0xff]
      %v723 = vld [vmem:[%s3 + $0x8] sm:$0xff]
      %v724 = vld [vmem:[%s3 + $0x10] sm:$0xff]
      %v725 = vld [vmem:[%s3 + $0x18] sm:$0xff]
      %v726 = vld [vmem:[%s3 + $0x20] sm:$0xff]
      %v727 = vld [vmem:[%s3 + $0x28] sm:$0xff]
      %v728 = vld [vmem:[%s3 + $0x30] sm:$0xff]
      %v729 = vld [vmem:[%s3 + $0x38] sm:$0xff]
      %731 = vset.pattern.permute.xlu0 0
      %732 = vperm.xlu0 %731, %v722
      %v733 = vpop.permute.xlu0 %732
      %736 = vset.pattern.permute.xlu0 0
      %737 = vperm.xlu0 %736, %v723
      %v738 = vpop.permute.xlu0 %737
      %741 = vset.pattern.permute.xlu0 0
      %742 = vperm.xlu0 %741, %v724
      %v743 = vpop.permute.xlu0 %742
      %746 = vset.pattern.permute.xlu0 0
      %747 = vperm.xlu0 %746, %v725
      %v748 = vpop.permute.xlu0 %747
      %751 = vset.pattern.permute.xlu0 0
      %752 = vperm.xlu0 %751, %v726
      %v753 = vpop.permute.xlu0 %752
      %756 = vset.pattern.permute.xlu0 0
      %757 = vperm.xlu0 %756, %v727
      %v758 = vpop.permute.xlu0 %757
      %761 = vset.pattern.permute.xlu0 0
      %762 = vperm.xlu0 %761, %v728
      %v763 = vpop.permute.xlu0 %762
      %766 = vset.pattern.permute.xlu0 0
      %767 = vperm.xlu0 %766, %v729
      %v768 = vpop.permute.xlu0 %767
      %v770 = vadd.f32 %v714, %v733
      %v771 = vadd.f32 %v715, %v738
      %v772 = vadd.f32 %v716, %v743
      %v773 = vadd.f32 %v717, %v748
      %v774 = vadd.f32 %v718, %v753
      %v775 = vadd.f32 %v719, %v758
      %v776 = vadd.f32 %v720, %v763
      %v777 = vadd.f32 %v721, %v768
      %vm778 = vcmp.ge.f32.partialorder %v770, 0.0
      %vm779 = vcmp.ge.f32.partialorder %v771, 0.0
      %vm780 = vcmp.ge.f32.partialorder %v772, 0.0
      %vm781 = vcmp.ge.f32.partialorder %v773, 0.0
      %vm782 = vcmp.ge.f32.partialorder %v774, 0.0
      %vm783 = vcmp.ge.f32.partialorder %v775, 0.0
      %vm784 = vcmp.ge.f32.partialorder %v776, 0.0
      %vm785 = vcmp.ge.f32.partialorder %v777, 0.0
      %v786 = vmul.f32 %v770, 0.01
      %v787 = vmul.f32 %v771, 0.01
      %v788 = vmul.f32 %v772, 0.01
      %v789 = vmul.f32 %v773, 0.01
      %v790 = vmul.f32 %v774, 0.01
      %v791 = vmul.f32 %v775, 0.01
      %v792 = vmul.f32 %v776, 0.01
      %v793 = vmul.f32 %v777, 0.01
      %v794 = vsel %vm778, %v770, %v786
      %v795 = vsel %vm779, %v771, %v787
      %v796 = vsel %vm780, %v772, %v788
      %v797 = vsel %vm781, %v773, %v789
      %v798 = vsel %vm782, %v774, %v790
      %v799 = vsel %vm783, %v775, %v791
      %v800 = vsel %vm784, %v776, %v792
      %v801 = vsel %vm785, %v777, %v793
      %v802 = vpack.c.bf16 %v794, %v794
      %v803 = vpack.c.bf16 %v795, %v795
      %v804 = vpack.c.bf16 %v796, %v796
      %v805 = vpack.c.bf16 %v797, %v797
      %v806 = vpack.c.bf16 %v798, %v798
      %v807 = vpack.c.bf16 %v799, %v799
      %v808 = vpack.c.bf16 %v800, %v800
      %v809 = vpack.c.bf16 %v801, %v801
      %810 = vst [vmem:[%s197] sm:$0xf] %v802
      %811 = vst [vmem:[%s197 + $0x4] sm:$0xf] %v803
      %812 = vst [vmem:[%s197 + $0x8] sm:$0xf] %v804
      %813 = vst [vmem:[%s197 + $0xc] sm:$0xf] %v805
      %814 = vst [vmem:[%s197 + $0x10] sm:$0xf] %v806
      %815 = vst [vmem:[%s197 + $0x14] sm:$0xf] %v807
      %816 = vst [vmem:[%s197 + $0x18] sm:$0xf] %v808
      %817 = vst [vmem:[%s197 + $0x1c] sm:$0xf] %v809
      %p818 = scmp.lt.s32.totalorder %s15, 1
      %s819 = scalar_select %p818, %s15, 1
      %s820 = smul.addr %s819, 8
      %s821 = smul.addr %s820, 4
      %s822 = scalar_lea.vmem %s4, %s821
      // Predicated region
      $region37: #{forward.8} parent=35 // pred_check
        %p823 = pneg %p122
      $region38: #{forward.8} parent=35 // pred_check_branch
        %825 = sbr.rel (%p823) target = $region40
      $region39: #{forward.8} parent=35 // pred_region
        _
      $region40: #{forward.8} parent=35 // pred_fallthru
        _
    $region36: #{forward.8} parent=5 // pred_fallthru
      _
    %p826 = scmp.le.s32.totalorder 2, %s10
    // Predicated region
    $region41: #{forward.8} parent=5 // pred_check
      %p827 = pneg %p826
    $region42: #{forward.8} parent=5 // pred_check_branch
      %829 = sbr.rel (%p827) target = $region44
    $region43: #{forward.8} parent=5 // pred_region
      %s830 = ssub.s32 %s10, 2
      // Predicated region
      $region45: #{forward.8} parent=43 // pred_check
        %p831 = pneg %p128
      $region46: #{forward.8} parent=43 // pred_check_branch
        %833 = sbr.rel (%p831) target = $region48
      $region47: #{forward.8} parent=43 // pred_region
        %p834 = scmp.lt.s32.totalorder %s16, 1
        %s835 = scalar_select %p834, %s16, 1
        %s836 = smul.addr %s835, 8
        %s837 = smul.addr %s836, 4
        %s838 = scalar_lea.vmem %s4, %s837
      $region48: #{forward.8} parent=43 // pred_fallthru
        _
    $region44: #{forward.8} parent=5 // pred_fallthru
      _
  $region6: #{forward.8} parent=0 // loop_footer
    %s14 = sadd.s32 1, %s10
  $region7: #{forward.8} parent=0 // loop_footer_branch
    %9 = sbr.rel target = $region3
  $region8: #{forward.8} parent=0 // loop_exit
    _

// kernel: forward.9
$region0: #{forward.9}
  #allocation0 [shape = 'u32[]', space=smem, size = 0x4, offset = 0x4, fixed_abs, tag = 'smem constant byte address 0x4 - core index']
  #allocation1 [shape = 'u32[72,128]{1,0:T(1,128)}', space=vmem, size = 0x9000, scoped, tag = 'internal scratch']
  #allocation2 [shape = 'f32[2,1000]{1,0:T(2,128)}', space=vmem, size = 0x2000, scoped, tag = 'scratch operand']
  %s0 = inlined_call_operand.vmem [shape: bf16[2,1024], index: 0, kind: input, shape index: {}]
  %s1 = inlined_call_operand.vmem [shape: bf16[1024,1000], index: 1, kind: input, shape index: {}]
  %s2 = inlined_call_operand.vmem [shape: f32[1,1000], index: 2, kind: input, shape index: {}]
  %s3 = inlined_call_operand.vmem [shape: f32[2,1000], index: 3, kind: output, shape index: {}]
  %s4 = sld [smem:[#allocation0]]
  $region53: #{forward.9} parent=0
    _
  %s6 = ssub.s32 1, %s4
  %s7 = scalar_select 0, %s6, %s4
  loop: start=0, step=1, limit=4
  $region2: #{forward.9} parent=0 // loop_pre_header
    _
  $region3: #{forward.9} parent=0 // loop_header
    %s9 = sphi 0, %s13
    %p10 = scmp.ge.s32.totalorder %s9, 4
    %s19 = sphi 0, %s21
    %s22 = sphi 0, %s19
    %s23 = sphi 0, %s22
    %s39 = sphi 0, %s23
    %s45 = sphi 0, %s47
    %s48 = sphi 0, %s45
    %s49 = sphi 0, %s48
    %s65 = sphi 0, %s49
    %s69 = sphi 0, %s69
    %s71 = sphi 0, %s69
    %s72 = sphi 0, %s71
    %s86 = sphi 0, %s72
    %s90 = sphi 0, %s90
    %s92 = sphi 0, %s90
    %s93 = sphi 0, %s92
    %s107 = sphi 0, %s93
  $region4: #{forward.9} parent=0 // loop_header_branch
    %12 = sbr.rel (%p10) target = $region8
  $region5: #{forward.9} parent=0 // loop_body
    %s14 = ssub.s32 %s9, 1
    %s15 = ssub.s32 %s9, 2
    %s16 = sadd.s32 %s9, 1
    %s17 = ssub.s32 %s9, %s16
    %p18 = scmp.eq.s32.totalorder %s17, 0
    %s20 = sadd.s32 %s19, 1
    %s21 = scalar_select %p18, %s19, %s20
    %p24 = pneg %p18
    %p25 = scmp.eq.s32.totalorder %s9, 1
    %p26 = por %p24, %p25
    %p27 = scmp.ne.s32.totalorder %s19, %s22
    %p28 = scmp.eq.s32.totalorder %s9, 0
    %p29 = por %p27, %p28
    %p30 = scmp.ne.s32.totalorder %s19, %s22
    %p31 = scmp.eq.s32.totalorder %s14, 1
    %p32 = por %p30, %p31
    %p33 = scmp.ne.s32.totalorder %s22, %s23
    %p34 = scmp.eq.s32.totalorder %s14, 0
    %p35 = por %p33, %p34
    %p36 = scmp.ne.s32.totalorder %s22, %s23
    %p37 = scmp.eq.s32.totalorder %s15, 1
    %p38 = por %p36, %p37
    %p40 = scmp.ne.s32.totalorder %s23, %s39
    %p41 = scmp.eq.s32.totalorder %s15, 0
    %p42 = por %p40, %p41
    %s43 = ssub.s32 %s9, %s16
    %p44 = scmp.eq.s32.totalorder %s43, 0
    %s46 = sadd.s32 %s45, 1
    %s47 = scalar_select %p44, %s45, %s46
    %p50 = pneg %p44
    %p51 = scmp.eq.s32.totalorder %s9, 1
    %p52 = por %p50, %p51
    %p53 = scmp.ne.s32.totalorder %s45, %s48
    %p54 = scmp.eq.s32.totalorder %s9, 0
    %p55 = por %p53, %p54
    %p56 = scmp.ne.s32.totalorder %s45, %s48
    %p57 = scmp.eq.s32.totalorder %s14, 1
    %p58 = por %p56, %p57
    %p59 = scmp.ne.s32.totalorder %s48, %s49
    %p60 = scmp.eq.s32.totalorder %s14, 0
    %p61 = por %p59, %p60
    %p62 = scmp.ne.s32.totalorder %s48, %s49
    %p63 = scmp.eq.s32.totalorder %s15, 1
    %p64 = por %p62, %p63
    %p66 = scmp.ne.s32.totalorder %s49, %s65
    %p67 = scmp.eq.s32.totalorder %s15, 0
    %p68 = por %p66, %p67
    %s70 = sadd.s32 %s69, 1
    %p73 = scmp.eq.s32.totalorder %s9, 1
    %p74 = scmp.ne.s32.totalorder %s69, %s71
    %p75 = scmp.eq.s32.totalorder %s9, 0
    %p76 = por %p74, %p75
    %p77 = scmp.ne.s32.totalorder %s69, %s71
    %p78 = scmp.eq.s32.totalorder %s14, 1
    %p79 = por %p77, %p78
    %p80 = scmp.ne.s32.totalorder %s71, %s72
    %p81 = scmp.eq.s32.totalorder %s14, 0
    %p82 = por %p80, %p81
    %p83 = scmp.ne.s32.totalorder %s71, %s72
    %p84 = scmp.eq.s32.totalorder %s15, 1
    %p85 = por %p83, %p84
    %p87 = scmp.ne.s32.totalorder %s72, %s86
    %p88 = scmp.eq.s32.totalorder %s15, 0
    %p89 = por %p87, %p88
    %s91 = sadd.s32 %s90, 1
    %p94 = scmp.eq.s32.totalorder %s9, 1
    %p95 = scmp.ne.s32.totalorder %s90, %s92
    %p96 = scmp.eq.s32.totalorder %s9, 0
    %p97 = por %p95, %p96
    %p98 = scmp.ne.s32.totalorder %s90, %s92
    %p99 = scmp.eq.s32.totalorder %s14, 1
    %p100 = por %p98, %p99
    %p101 = scmp.ne.s32.totalorder %s92, %s93
    %p102 = scmp.eq.s32.totalorder %s14, 0
    %p103 = por %p101, %p102
    %p104 = scmp.ne.s32.totalorder %s92, %s93
    %p105 = scmp.eq.s32.totalorder %s15, 1
    %p106 = por %p104, %p105
    %p108 = scmp.ne.s32.totalorder %s93, %s107
    %p109 = scmp.eq.s32.totalorder %s15, 0
    %p110 = por %p108, %p109
    %p111 = scmp.le.s32.totalorder 1, %s9
    %p112 = scmp.lt.s32.totalorder %s9, 3
    %p113 = pnand %p111, %p112
    %p114 = pneg %p113
    // Predicated region
    $region9: #{forward.9} parent=5 // pred_check
      _
    $region10: #{forward.9} parent=5 // pred_check_branch
      %116 = sbr.rel (%p113) target = $region12
    $region11: #{forward.9} parent=5 // pred_region
      %s117 = ssub.s32 %s9, 1
      // Predicated region
      $region13: #{forward.9} parent=11 // pred_check
        %p118 = pneg %p82
      $region14: #{forward.9} parent=11 // pred_check_branch
        %120 = sbr.rel (%p118) target = $region16
      $region15: #{forward.9} parent=11 // pred_region
        _
      $region16: #{forward.9} parent=11 // pred_fallthru
        _
    $region12: #{forward.9} parent=5 // pred_fallthru
      _
    %p121 = scmp.lt.s32.totalorder %s9, 2
    // Predicated region
    $region17: #{forward.9} parent=5 // pred_check
      %p122 = pneg %p121
    $region18: #{forward.9} parent=5 // pred_check_branch
      %124 = sbr.rel (%p122) target = $region20
    $region19: #{forward.9} parent=5 // pred_region
      // Predicated region
      $region21: #{forward.9} parent=19 // pred_check
        %p125 = pneg %p29
      $region22: #{forward.9} parent=19 // pred_check_branch
        %127 = sbr.rel (%p125) target = $region24
      $region23: #{forward.9} parent=19 // pred_region
        %s128 = smul.u32 4, %s9
        %p129 = scmp.lt.s32.totalorder %s128, 7
        %s130 = scalar_select %p129, %s128, 7
        %s131 = scalar_lea.vmem %s0, %s130
        %s132 = smul.u32 4, %s9
      $region24: #{forward.9} parent=19 // pred_fallthru
        _
      // Predicated region
      $region25: #{forward.9} parent=19 // pred_check
        %p133 = pneg %p55
      $region26: #{forward.9} parent=19 // pred_check_branch
        %135 = sbr.rel (%p133) target = $region28
      $region27: #{forward.9} parent=19 // pred_region
        %s136 = smul.u32 64, %s9
        %p137 = scmp.lt.s32.totalorder %s136, 127
        %s138 = scalar_select %p137, %s136, 127
        %s139 = smul.addr %s138, 8
        %s140 = smul.addr %s139, 4
        %s141 = scalar_lea.vmem %s1, %s140
        %s142 = smul.u32 64, %s9
      $region28: #{forward.9} parent=19 // pred_fallthru
        _
    $region20: #{forward.9} parent=5 // pred_fallthru
      _
    %p143 = scmp.le.s32.totalorder 1, %s9
    %p144 = scmp.lt.s32.totalorder %s9, 3
    %p145 = pnand %p143, %p144
    %p146 = pneg %p145
    // Predicated region
    $region29: #{forward.9} parent=5 // pred_check
      _
    $region30: #{forward.9} parent=5 // pred_check_branch
      %148 = sbr.rel (%p145) target = $region32
    $region31: #{forward.9} parent=5 // pred_region
      %s149 = ssub.s32 %s9, 1
      %s150 = smul.u32 4, %s14
      %p151 = scmp.lt.s32.totalorder %s150, 7
      %s152 = scalar_select %p151, %s150, 7
      %s153 = scalar_lea.vmem %s0, %s152
      %p154 = pneg %p35
      %p155 = pneg %p32
      %s156 = smul.u32 64, %s14
      %p157 = scmp.lt.s32.totalorder %s156, 127
      %s158 = scalar_select %p157, %s156, 127
      %s159 = smul.addr %s158, 8
      %s160 = smul.addr %s159, 4
      %s161 = scalar_lea.vmem %s1, %s160
      %p162 = pneg %p61
      %p163 = pneg %p58
      %p164 = pneg %p82
      %p165 = pneg %p79
      %p166 = pneg %p103
      %p167 = pneg %p100
      %s168 = smul.u32 4, %s14
      %p169 = scmp.lt.s32.totalorder %s168, 7
      %s170 = scalar_select %p169, %s168, 7
      %s171 = scalar_lea.vmem %s0, %s170
      %s172 = smul.u32 4, %s14
      %s173 = smul.u32 64, %s14
      %p174 = scmp.lt.s32.totalorder %s173, 127
      %s175 = scalar_select %p174, %s173, 127
      %s176 = smul.addr %s175, 8
      %s177 = smul.addr %s176, 4
      %s178 = scalar_lea.vmem %s1, %s177
      %s179 = smul.u32 64, %s14
      %p180 = scmp.eq.s32.totalorder %s14, 0
      // Predicated region
      $region33: #{forward.9} parent=31 // pred_check
        %p181 = pneg %p180
      $region34: #{forward.9} parent=31 // pred_check_branch
        %183 = sbr.rel (%p181) target = $region36
      $region35: #{forward.9} parent=31 // pred_region
        %184 = vst [vmem:[#allocation2] sm:$0xff] 0.0
        %vm185 = vcmask 1041408
        %vm186 = vcmask 1043458
        %vm187 = vmor %vm186, %vm185
        %vm188 = vcmask 1045508
        %vm189 = vmor %vm188, %vm187
        %vm190 = vcmask 850950
        %vm191 = vmor %vm190, %vm189
        %192 = vst.msk [vmem:[#allocation2 + $0x8] sm:$0xff] %vm191, 0.0
      $region36: #{forward.9} parent=31 // pred_fallthru
        _
      %v193 = vld [vmem:[#allocation2] sm:$0xff]
      %v194 = vld [vmem:[#allocation2 + $0x8] sm:$0xff]
      %v195 = vld [vmem:[%s171] sm:$0xf]
      %v196 = vld [vmem:[%s178] sm:$0xff]
      %v197 = vld [vmem:[%s178 + $0x8] sm:$0xff]
      %v198 = vld [vmem:[%s178 + $0x10] sm:$0xff]
      %v199 = vld [vmem:[%s178 + $0x18] sm:$0xff]
      %v200 = vld [vmem:[%s178 + $0x20] sm:$0xff]
      %v201 = vld [vmem:[%s178 + $0x28] sm:$0xff]
      %v202 = vld [vmem:[%s178 + $0x30] sm:$0xff]
      %v203 = vld [vmem:[%s178 + $0x38] sm:$0xff]
      %v204 = vld [vmem:[%s178 + $0x40] sm:$0xff]
      %v205 = vld [vmem:[%s178 + $0x48] sm:$0xff]
      %v206 = vld [vmem:[%s178 + $0x50] sm:$0xff]
      %v207 = vld [vmem:[%s178 + $0x58] sm:$0xff]
      %v208 = vld [vmem:[%s178 + $0x60] sm:$0xff]
      %v209 = vld [vmem:[%s178 + $0x68] sm:$0xff]
      %v210 = vld [vmem:[%s178 + $0x70] sm:$0xff]
      %v211 = vld [vmem:[%s178 + $0x78] sm:$0xff]
      %v212 = vld [vmem:[%s178 + $0x80] sm:$0xff]
      %v213 = vld [vmem:[%s178 + $0x88] sm:$0xff]
      %v214 = vld [vmem:[%s178 + $0x90] sm:$0xff]
      %v215 = vld [vmem:[%s178 + $0x98] sm:$0xff]
      %v216 = vld [vmem:[%s178 + $0xa0] sm:$0xff]
      %v217 = vld [vmem:[%s178 + $0xa8] sm:$0xff]
      %v218 = vld [vmem:[%s178 + $0xb0] sm:$0xff]
      %v219 = vld [vmem:[%s178 + $0xb8] sm:$0xff]
      %v220 = vld [vmem:[%s178 + $0xc0] sm:$0xff]
      %v221 = vld [vmem:[%s178 + $0xc8] sm:$0xff]
      %v222 = vld [vmem:[%s178 + $0xd0] sm:$0xff]
      %v223 = vld [vmem:[%s178 + $0xd8] sm:$0xff]
      %v224 = vld [vmem:[%s178 + $0xe0] sm:$0xff]
      %v225 = vld [vmem:[%s178 + $0xe8] sm:$0xff]
      %v226 = vld [vmem:[%s178 + $0xf0] sm:$0xff]
      %v227 = vld [vmem:[%s178 + $0xf8] sm:$0xff]
      %v228 = vld [vmem:[%s178 + $0x100] sm:$0xff]
      %v229 = vld [vmem:[%s178 + $0x108] sm:$0xff]
      %v230 = vld [vmem:[%s178 + $0x110] sm:$0xff]
      %v231 = vld [vmem:[%s178 + $0x118] sm:$0xff]
      %v232 = vld [vmem:[%s178 + $0x120] sm:$0xff]
      %v233 = vld [vmem:[%s178 + $0x128] sm:$0xff]
      %v234 = vld [vmem:[%s178 + $0x130] sm:$0xff]
      %v235 = vld [vmem:[%s178 + $0x138] sm:$0xff]
      %v236 = vld [vmem:[%s178 + $0x140] sm:$0xff]
      %v237 = vld [vmem:[%s178 + $0x148] sm:$0xff]
      %v238 = vld [vmem:[%s178 + $0x150] sm:$0xff]
      %v239 = vld [vmem:[%s178 + $0x158] sm:$0xff]
      %v240 = vld [vmem:[%s178 + $0x160] sm:$0xff]
      %v241 = vld [vmem:[%s178 + $0x168] sm:$0xff]
      %v242 = vld [vmem:[%s178 + $0x170] sm:$0xff]
      %v243 = vld [vmem:[%s178 + $0x178] sm:$0xff]
      %v244 = vld [vmem:[%s178 + $0x180] sm:$0xff]
      %v245 = vld [vmem:[%s178 + $0x188] sm:$0xff]
      %v246 = vld [vmem:[%s178 + $0x190] sm:$0xff]
      %v247 = vld [vmem:[%s178 + $0x198] sm:$0xff]
      %v248 = vld [vmem:[%s178 + $0x1a0] sm:$0xff]
      %v249 = vld [vmem:[%s178 + $0x1a8] sm:$0xff]
      %v250 = vld [vmem:[%s178 + $0x1b0] sm:$0xff]
      %v251 = vld [vmem:[%s178 + $0x1b8] sm:$0xff]
      %v252 = vld [vmem:[%s178 + $0x1c0] sm:$0xff]
      %v253 = vld [vmem:[%s178 + $0x1c8] sm:$0xff]
      %v254 = vld [vmem:[%s178 + $0x1d0] sm:$0xff]
      %v255 = vld [vmem:[%s178 + $0x1d8] sm:$0xff]
      %v256 = vld [vmem:[%s178 + $0x1e0] sm:$0xff]
      %v257 = vld [vmem:[%s178 + $0x1e8] sm:$0xff]
      %v258 = vld [vmem:[%s178 + $0x1f0] sm:$0xff]
      %v259 = vld [vmem:[%s178 + $0x1f8] sm:$0xff]
      %v260 = vld [vmem:[%s178 + $0x200] sm:$0xff]
      %v261 = vld [vmem:[%s178 + $0x208] sm:$0xff]
      %v262 = vld [vmem:[%s178 + $0x210] sm:$0xff]
      %v263 = vld [vmem:[%s178 + $0x218] sm:$0xff]
      %v264 = vld [vmem:[%s178 + $0x220] sm:$0xff]
      %v265 = vld [vmem:[%s178 + $0x228] sm:$0xff]
      %v266 = vld [vmem:[%s178 + $0x230] sm:$0xff]
      %v267 = vld [vmem:[%s178 + $0x238] sm:$0xff]
      %v268 = vld [vmem:[%s178 + $0x240] sm:$0xff]
      %v269 = vld [vmem:[%s178 + $0x248] sm:$0xff]
      %v270 = vld [vmem:[%s178 + $0x250] sm:$0xff]
      %v271 = vld [vmem:[%s178 + $0x258] sm:$0xff]
      %v272 = vld [vmem:[%s178 + $0x260] sm:$0xff]
      %v273 = vld [vmem:[%s178 + $0x268] sm:$0xff]
      %v274 = vld [vmem:[%s178 + $0x270] sm:$0xff]
      %v275 = vld [vmem:[%s178 + $0x278] sm:$0xff]
      %v276 = vld [vmem:[%s178 + $0x280] sm:$0xff]
      %v277 = vld [vmem:[%s178 + $0x288] sm:$0xff]
      %v278 = vld [vmem:[%s178 + $0x290] sm:$0xff]
      %v279 = vld [vmem:[%s178 + $0x298] sm:$0xff]
      %v280 = vld [vmem:[%s178 + $0x2a0] sm:$0xff]
      %v281 = vld [vmem:[%s178 + $0x2a8] sm:$0xff]
      %v282 = vld [vmem:[%s178 + $0x2b0] sm:$0xff]
      %v283 = vld [vmem:[%s178 + $0x2b8] sm:$0xff]
      %v284 = vld [vmem:[%s178 + $0x2c0] sm:$0xff]
      %v285 = vld [vmem:[%s178 + $0x2c8] sm:$0xff]
      %v286 = vld [vmem:[%s178 + $0x2d0] sm:$0xff]
      %v287 = vld [vmem:[%s178 + $0x2d8] sm:$0xff]
      %v288 = vld [vmem:[%s178 + $0x2e0] sm:$0xff]
      %v289 = vld [vmem:[%s178 + $0x2e8] sm:$0xff]
      %v290 = vld [vmem:[%s178 + $0x2f0] sm:$0xff]
      %v291 = vld [vmem:[%s178 + $0x2f8] sm:$0xff]
      %v292 = vld [vmem:[%s178 + $0x300] sm:$0xff]
      %v293 = vld [vmem:[%s178 + $0x308] sm:$0xff]
      %v294 = vld [vmem:[%s178 + $0x310] sm:$0xff]
      %v295 = vld [vmem:[%s178 + $0x318] sm:$0xff]
      %v296 = vld [vmem:[%s178 + $0x320] sm:$0xff]
      %v297 = vld [vmem:[%s178 + $0x328] sm:$0xff]
      %v298 = vld [vmem:[%s178 + $0x330] sm:$0xff]
      %v299 = vld [vmem:[%s178 + $0x338] sm:$0xff]
      %v300 = vld [vmem:[%s178 + $0x340] sm:$0xff]
      %v301 = vld [vmem:[%s178 + $0x348] sm:$0xff]
      %v302 = vld [vmem:[%s178 + $0x350] sm:$0xff]
      %v303 = vld [vmem:[%s178 + $0x358] sm:$0xff]
      %v304 = vld [vmem:[%s178 + $0x360] sm:$0xff]
      %v305 = vld [vmem:[%s178 + $0x368] sm:$0xff]
      %v306 = vld [vmem:[%s178 + $0x370] sm:$0xff]
      %v307 = vld [vmem:[%s178 + $0x378] sm:$0xff]
      %v308 = vld [vmem:[%s178 + $0x380] sm:$0xff]
      %v309 = vld [vmem:[%s178 + $0x388] sm:$0xff]
      %v310 = vld [vmem:[%s178 + $0x390] sm:$0xff]
      %v311 = vld [vmem:[%s178 + $0x398] sm:$0xff]
      %v312 = vld [vmem:[%s178 + $0x3a0] sm:$0xff]
      %v313 = vld [vmem:[%s178 + $0x3a8] sm:$0xff]
      %v314 = vld [vmem:[%s178 + $0x3b0] sm:$0xff]
      %v315 = vld [vmem:[%s178 + $0x3b8] sm:$0xff]
      %v316 = vld [vmem:[%s178 + $0x3c0] sm:$0xff]
      %v317 = vld [vmem:[%s178 + $0x3c8] sm:$0xff]
      %v318 = vld [vmem:[%s178 + $0x3d0] sm:$0xff]
      %v319 = vld [vmem:[%s178 + $0x3d8] sm:$0xff]
      %v320 = vld [vmem:[%s178 + $0x3e0] sm:$0xff]
      %v321 = vld [vmem:[%s178 + $0x3e8] sm:$0xff]
      %v322 = vld [vmem:[%s178 + $0x3f0] sm:$0xff]
      %v323 = vld [vmem:[%s178 + $0x3f8] sm:$0xff]
      %v324 = vld [vmem:[%s178 + $0x400] sm:$0xff]
      %v325 = vld [vmem:[%s178 + $0x408] sm:$0xff]
      %v326 = vld [vmem:[%s178 + $0x410] sm:$0xff]
      %v327 = vld [vmem:[%s178 + $0x418] sm:$0xff]
      %v328 = vld [vmem:[%s178 + $0x420] sm:$0xff]
      %v329 = vld [vmem:[%s178 + $0x428] sm:$0xff]
      %v330 = vld [vmem:[%s178 + $0x430] sm:$0xff]
      %v331 = vld [vmem:[%s178 + $0x438] sm:$0xff]
      %v332 = vld [vmem:[%s178 + $0x440] sm:$0xff]
      %v333 = vld [vmem:[%s178 + $0x448] sm:$0xff]
      %v334 = vld [vmem:[%s178 + $0x450] sm:$0xff]
      %v335 = vld [vmem:[%s178 + $0x458] sm:$0xff]
      %v336 = vld [vmem:[%s178 + $0x460] sm:$0xff]
      %v337 = vld [vmem:[%s178 + $0x468] sm:$0xff]
      %v338 = vld [vmem:[%s178 + $0x470] sm:$0xff]
      %v339 = vld [vmem:[%s178 + $0x478] sm:$0xff]
      %v340 = vld [vmem:[%s178 + $0x480] sm:$0xff]
      %v341 = vld [vmem:[%s178 + $0x488] sm:$0xff]
      %v342 = vld [vmem:[%s178 + $0x490] sm:$0xff]
      %v343 = vld [vmem:[%s178 + $0x498] sm:$0xff]
      %v344 = vld [vmem:[%s178 + $0x4a0] sm:$0xff]
      %v345 = vld [vmem:[%s178 + $0x4a8] sm:$0xff]
      %v346 = vld [vmem:[%s178 + $0x4b0] sm:$0xff]
      %v347 = vld [vmem:[%s178 + $0x4b8] sm:$0xff]
      %v348 = vld [vmem:[%s178 + $0x4c0] sm:$0xff]
      %v349 = vld [vmem:[%s178 + $0x4c8] sm:$0xff]
      %v350 = vld [vmem:[%s178 + $0x4d0] sm:$0xff]
      %v351 = vld [vmem:[%s178 + $0x4d8] sm:$0xff]
      %v352 = vld [vmem:[%s178 + $0x4e0] sm:$0xff]
      %v353 = vld [vmem:[%s178 + $0x4e8] sm:$0xff]
      %v354 = vld [vmem:[%s178 + $0x4f0] sm:$0xff]
      %v355 = vld [vmem:[%s178 + $0x4f8] sm:$0xff]
      %v356 = vld [vmem:[%s178 + $0x500] sm:$0xff]
      %v357 = vld [vmem:[%s178 + $0x508] sm:$0xff]
      %v358 = vld [vmem:[%s178 + $0x510] sm:$0xff]
      %v359 = vld [vmem:[%s178 + $0x518] sm:$0xff]
      %v360 = vld [vmem:[%s178 + $0x520] sm:$0xff]
      %v361 = vld [vmem:[%s178 + $0x528] sm:$0xff]
      %v362 = vld [vmem:[%s178 + $0x530] sm:$0xff]
      %v363 = vld [vmem:[%s178 + $0x538] sm:$0xff]
      %v364 = vld [vmem:[%s178 + $0x540] sm:$0xff]
      %v365 = vld [vmem:[%s178 + $0x548] sm:$0xff]
      %v366 = vld [vmem:[%s178 + $0x550] sm:$0xff]
      %v367 = vld [vmem:[%s178 + $0x558] sm:$0xff]
      %v368 = vld [vmem:[%s178 + $0x560] sm:$0xff]
      %v369 = vld [vmem:[%s178 + $0x568] sm:$0xff]
      %v370 = vld [vmem:[%s178 + $0x570] sm:$0xff]
      %v371 = vld [vmem:[%s178 + $0x578] sm:$0xff]
      %v372 = vld [vmem:[%s178 + $0x580] sm:$0xff]
      %v373 = vld [vmem:[%s178 + $0x588] sm:$0xff]
      %v374 = vld [vmem:[%s178 + $0x590] sm:$0xff]
      %v375 = vld [vmem:[%s178 + $0x598] sm:$0xff]
      %v376 = vld [vmem:[%s178 + $0x5a0] sm:$0xff]
      %v377 = vld [vmem:[%s178 + $0x5a8] sm:$0xff]
      %v378 = vld [vmem:[%s178 + $0x5b0] sm:$0xff]
      %v379 = vld [vmem:[%s178 + $0x5b8] sm:$0xff]
      %v380 = vld [vmem:[%s178 + $0x5c0] sm:$0xff]
      %v381 = vld [vmem:[%s178 + $0x5c8] sm:$0xff]
      %v382 = vld [vmem:[%s178 + $0x5d0] sm:$0xff]
      %v383 = vld [vmem:[%s178 + $0x5d8] sm:$0xff]
      %v384 = vld [vmem:[%s178 + $0x5e0] sm:$0xff]
      %v385 = vld [vmem:[%s178 + $0x5e8] sm:$0xff]
      %v386 = vld [vmem:[%s178 + $0x5f0] sm:$0xff]
      %v387 = vld [vmem:[%s178 + $0x5f8] sm:$0xff]
      %v388 = vld [vmem:[%s178 + $0x600] sm:$0xff]
      %v389 = vld [vmem:[%s178 + $0x608] sm:$0xff]
      %v390 = vld [vmem:[%s178 + $0x610] sm:$0xff]
      %v391 = vld [vmem:[%s178 + $0x618] sm:$0xff]
      %v392 = vld [vmem:[%s178 + $0x620] sm:$0xff]
      %v393 = vld [vmem:[%s178 + $0x628] sm:$0xff]
      %v394 = vld [vmem:[%s178 + $0x630] sm:$0xff]
      %v395 = vld [vmem:[%s178 + $0x638] sm:$0xff]
      %v396 = vld [vmem:[%s178 + $0x640] sm:$0xff]
      %v397 = vld [vmem:[%s178 + $0x648] sm:$0xff]
      %v398 = vld [vmem:[%s178 + $0x650] sm:$0xff]
      %v399 = vld [vmem:[%s178 + $0x658] sm:$0xff]
      %v400 = vld [vmem:[%s178 + $0x660] sm:$0xff]
      %v401 = vld [vmem:[%s178 + $0x668] sm:$0xff]
      %v402 = vld [vmem:[%s178 + $0x670] sm:$0xff]
      %v403 = vld [vmem:[%s178 + $0x678] sm:$0xff]
      %v404 = vld [vmem:[%s178 + $0x680] sm:$0xff]
      %v405 = vld [vmem:[%s178 + $0x688] sm:$0xff]
      %v406 = vld [vmem:[%s178 + $0x690] sm:$0xff]
      %v407 = vld [vmem:[%s178 + $0x698] sm:$0xff]
      %v408 = vld [vmem:[%s178 + $0x6a0] sm:$0xff]
      %v409 = vld [vmem:[%s178 + $0x6a8] sm:$0xff]
      %v410 = vld [vmem:[%s178 + $0x6b0] sm:$0xff]
      %v411 = vld [vmem:[%s178 + $0x6b8] sm:$0xff]
      %v412 = vld [vmem:[%s178 + $0x6c0] sm:$0xff]
      %v413 = vld [vmem:[%s178 + $0x6c8] sm:$0xff]
      %v414 = vld [vmem:[%s178 + $0x6d0] sm:$0xff]
      %v415 = vld [vmem:[%s178 + $0x6d8] sm:$0xff]
      %v416 = vld [vmem:[%s178 + $0x6e0] sm:$0xff]
      %v417 = vld [vmem:[%s178 + $0x6e8] sm:$0xff]
      %v418 = vld [vmem:[%s178 + $0x6f0] sm:$0xff]
      %v419 = vld [vmem:[%s178 + $0x6f8] sm:$0xff]
      %v420 = vld [vmem:[%s178 + $0x700] sm:$0xff]
      %v421 = vld [vmem:[%s178 + $0x708] sm:$0xff]
      %v422 = vld [vmem:[%s178 + $0x710] sm:$0xff]
      %v423 = vld [vmem:[%s178 + $0x718] sm:$0xff]
      %v424 = vld [vmem:[%s178 + $0x720] sm:$0xff]
      %v425 = vld [vmem:[%s178 + $0x728] sm:$0xff]
      %v426 = vld [vmem:[%s178 + $0x730] sm:$0xff]
      %v427 = vld [vmem:[%s178 + $0x738] sm:$0xff]
      %v428 = vld [vmem:[%s178 + $0x740] sm:$0xff]
      %v429 = vld [vmem:[%s178 + $0x748] sm:$0xff]
      %v430 = vld [vmem:[%s178 + $0x750] sm:$0xff]
      %v431 = vld [vmem:[%s178 + $0x758] sm:$0xff]
      %v432 = vld [vmem:[%s178 + $0x760] sm:$0xff]
      %v433 = vld [vmem:[%s178 + $0x768] sm:$0xff]
      %v434 = vld [vmem:[%s178 + $0x770] sm:$0xff]
      %v435 = vld [vmem:[%s178 + $0x778] sm:$0xff]
      %v436 = vld [vmem:[%s178 + $0x780] sm:$0xff]
      %v437 = vld [vmem:[%s178 + $0x788] sm:$0xff]
      %v438 = vld [vmem:[%s178 + $0x790] sm:$0xff]
      %v439 = vld [vmem:[%s178 + $0x798] sm:$0xff]
      %v440 = vld [vmem:[%s178 + $0x7a0] sm:$0xff]
      %v441 = vld [vmem:[%s178 + $0x7a8] sm:$0xff]
      %v442 = vld [vmem:[%s178 + $0x7b0] sm:$0xff]
      %v443 = vld [vmem:[%s178 + $0x7b8] sm:$0xff]
      %v444 = vld [vmem:[%s178 + $0x7c0] sm:$0xff]
      %v445 = vld [vmem:[%s178 + $0x7c8] sm:$0xff]
      %v446 = vld [vmem:[%s178 + $0x7d0] sm:$0xff]
      %v447 = vld [vmem:[%s178 + $0x7d8] sm:$0xff]
      %v448 = vld [vmem:[%s178 + $0x7e0] sm:$0xff]
      %v449 = vld [vmem:[%s178 + $0x7e8] sm:$0xff]
      %v450 = vld [vmem:[%s178 + $0x7f0] sm:$0xff]
      %v451 = vld [vmem:[%s178 + $0x7f8] sm:$0xff]
      %453 = vst [vmem:[#allocation1] ss:$9 sm:$0xff] %v195
      %v454 = vld [vmem:[#allocation1] sm:$0xff]
      %v455 = vld [vmem:[#allocation1 + $0x9] sm:$0xff]
      %v456 = vld [vmem:[#allocation1 + $0x12] sm:$0xff]
      %v457 = vld [vmem:[#allocation1 + $0x1b] sm:$0xff]
      %v718 = vunpack.c.l.b16 %v196
      %v719 = vunpack.c.h.b16 %v196
      %v720 = vunpack.c.l.b16 %v197
      %v721 = vunpack.c.h.b16 %v197
      %v722 = vunpack.c.l.b16 %v198
      %v723 = vunpack.c.h.b16 %v198
      %v724 = vunpack.c.l.b16 %v199
      %v725 = vunpack.c.h.b16 %v199
      %v726 = vunpack.c.l.b16 %v200
      %v727 = vunpack.c.h.b16 %v200
      %v728 = vunpack.c.l.b16 %v201
      %v729 = vunpack.c.h.b16 %v201
      %v730 = vunpack.c.l.b16 %v202
      %v731 = vunpack.c.h.b16 %v202
      %v732 = vunpack.c.l.b16 %v203
      %v733 = vunpack.c.h.b16 %v203
      %v734 = vunpack.c.l.b16 %v204
      %v735 = vunpack.c.h.b16 %v204
      %v736 = vunpack.c.l.b16 %v205
      %v737 = vunpack.c.h.b16 %v205
      %v738 = vunpack.c.l.b16 %v206
      %v739 = vunpack.c.h.b16 %v206
      %v740 = vunpack.c.l.b16 %v207
      %v741 = vunpack.c.h.b16 %v207
      %v742 = vunpack.c.l.b16 %v208
      %v743 = vunpack.c.h.b16 %v208
      %v744 = vunpack.c.l.b16 %v209
      %v745 = vunpack.c.h.b16 %v209
      %v746 = vunpack.c.l.b16 %v210
      %v747 = vunpack.c.h.b16 %v210
      %v748 = vunpack.c.l.b16 %v211
      %v749 = vunpack.c.h.b16 %v211
      %v750 = vunpack.c.l.b16 %v212
      %v751 = vunpack.c.h.b16 %v212
      %v752 = vunpack.c.l.b16 %v213
      %v753 = vunpack.c.h.b16 %v213
      %v754 = vunpack.c.l.b16 %v214
      %v755 = vunpack.c.h.b16 %v214
      %v756 = vunpack.c.l.b16 %v215
      %v757 = vunpack.c.h.b16 %v215
      %v758 = vunpack.c.l.b16 %v216
      %v759 = vunpack.c.h.b16 %v216
      %v760 = vunpack.c.l.b16 %v217
      %v761 = vunpack.c.h.b16 %v217
      %v762 = vunpack.c.l.b16 %v218
      %v763 = vunpack.c.h.b16 %v218
      %v764 = vunpack.c.l.b16 %v219
      %v765 = vunpack.c.h.b16 %v219
      %v766 = vunpack.c.l.b16 %v220
      %v767 = vunpack.c.h.b16 %v220
      %v768 = vunpack.c.l.b16 %v221
      %v769 = vunpack.c.h.b16 %v221
      %v770 = vunpack.c.l.b16 %v222
      %v771 = vunpack.c.h.b16 %v222
      %v772 = vunpack.c.l.b16 %v223
      %v773 = vunpack.c.h.b16 %v223
      %v774 = vunpack.c.l.b16 %v224
      %v775 = vunpack.c.h.b16 %v224
      %v776 = vunpack.c.l.b16 %v225
      %v777 = vunpack.c.h.b16 %v225
      %v778 = vunpack.c.l.b16 %v226
      %v779 = vunpack.c.h.b16 %v226
      %v780 = vunpack.c.l.b16 %v227
      %v781 = vunpack.c.h.b16 %v227
      %v782 = vunpack.c.l.b16 %v228
      %v783 = vunpack.c.h.b16 %v228
      %v784 = vunpack.c.l.b16 %v229
      %v785 = vunpack.c.h.b16 %v229
      %v786 = vunpack.c.l.b16 %v230
      %v787 = vunpack.c.h.b16 %v230
      %v788 = vunpack.c.l.b16 %v231
      %v789 = vunpack.c.h.b16 %v231
      %v790 = vunpack.c.l.b16 %v232
      %v791 = vunpack.c.h.b16 %v232
      %v792 = vunpack.c.l.b16 %v233
      %v793 = vunpack.c.h.b16 %v233
      %v794 = vunpack.c.l.b16 %v234
      %v795 = vunpack.c.h.b16 %v234
      %v796 = vunpack.c.l.b16 %v235
      %v797 = vunpack.c.h.b16 %v235
      %v798 = vunpack.c.l.b16 %v236
      %v799 = vunpack.c.h.b16 %v236
      %v800 = vunpack.c.l.b16 %v237
      %v801 = vunpack.c.h.b16 %v237
      %v802 = vunpack.c.l.b16 %v238
      %v803 = vunpack.c.h.b16 %v238
      %v804 = vunpack.c.l.b16 %v239
      %v805 = vunpack.c.h.b16 %v239
      %v806 = vunpack.c.l.b16 %v240
      %v807 = vunpack.c.h.b16 %v240
      %v808 = vunpack.c.l.b16 %v241
      %v809 = vunpack.c.h.b16 %v241
      %v810 = vunpack.c.l.b16 %v242
      %v811 = vunpack.c.h.b16 %v242
      %v812 = vunpack.c.l.b16 %v243
      %v813 = vunpack.c.h.b16 %v243
      %v814 = vunpack.c.l.b16 %v244
      %v815 = vunpack.c.h.b16 %v244
      %v816 = vunpack.c.l.b16 %v245
      %v817 = vunpack.c.h.b16 %v245
      %v818 = vunpack.c.l.b16 %v246
      %v819 = vunpack.c.h.b16 %v246
      %v820 = vunpack.c.l.b16 %v247
      %v821 = vunpack.c.h.b16 %v247
      %v822 = vunpack.c.l.b16 %v248
      %v823 = vunpack.c.h.b16 %v248
      %v824 = vunpack.c.l.b16 %v249
      %v825 = vunpack.c.h.b16 %v249
      %v826 = vunpack.c.l.b16 %v250
      %v827 = vunpack.c.h.b16 %v250
      %v828 = vunpack.c.l.b16 %v251
      %v829 = vunpack.c.h.b16 %v251
      %v830 = vunpack.c.l.b16 %v252
      %v831 = vunpack.c.h.b16 %v252
      %v832 = vunpack.c.l.b16 %v253
      %v833 = vunpack.c.h.b16 %v253
      %v834 = vunpack.c.l.b16 %v254
      %v835 = vunpack.c.h.b16 %v254
      %v836 = vunpack.c.l.b16 %v255
      %v837 = vunpack.c.h.b16 %v255
      %v838 = vunpack.c.l.b16 %v256
      %v839 = vunpack.c.h.b16 %v256
      %v840 = vunpack.c.l.b16 %v257
      %v841 = vunpack.c.h.b16 %v257
      %v842 = vunpack.c.l.b16 %v258
      %v843 = vunpack.c.h.b16 %v258
      %v844 = vunpack.c.l.b16 %v259
      %v845 = vunpack.c.h.b16 %v259
      %v846 = vunpack.c.l.b16 %v260
      %v847 = vunpack.c.h.b16 %v260
      %v848 = vunpack.c.l.b16 %v261
      %v849 = vunpack.c.h.b16 %v261
      %v850 = vunpack.c.l.b16 %v262
      %v851 = vunpack.c.h.b16 %v262
      %v852 = vunpack.c.l.b16 %v263
      %v853 = vunpack.c.h.b16 %v263
      %v854 = vunpack.c.l.b16 %v264
      %v855 = vunpack.c.h.b16 %v264
      %v856 = vunpack.c.l.b16 %v265
      %v857 = vunpack.c.h.b16 %v265
      %v858 = vunpack.c.l.b16 %v266
      %v859 = vunpack.c.h.b16 %v266
      %v860 = vunpack.c.l.b16 %v267
      %v861 = vunpack.c.h.b16 %v267
      %v862 = vunpack.c.l.b16 %v268
      %v863 = vunpack.c.h.b16 %v268
      %v864 = vunpack.c.l.b16 %v269
      %v865 = vunpack.c.h.b16 %v269
      %v866 = vunpack.c.l.b16 %v270
      %v867 = vunpack.c.h.b16 %v270
      %v868 = vunpack.c.l.b16 %v271
      %v869 = vunpack.c.h.b16 %v271
      %v870 = vunpack.c.l.b16 %v272
      %v871 = vunpack.c.h.b16 %v272
      %v872 = vunpack.c.l.b16 %v273
      %v873 = vunpack.c.h.b16 %v273
      %v874 = vunpack.c.l.b16 %v274
      %v875 = vunpack.c.h.b16 %v274
      %v876 = vunpack.c.l.b16 %v275
      %v877 = vunpack.c.h.b16 %v275
      %v878 = vunpack.c.l.b16 %v276
      %v879 = vunpack.c.h.b16 %v276
      %v880 = vunpack.c.l.b16 %v277
      %v881 = vunpack.c.h.b16 %v277
      %v882 = vunpack.c.l.b16 %v278
      %v883 = vunpack.c.h.b16 %v278
      %v884 = vunpack.c.l.b16 %v279
      %v885 = vunpack.c.h.b16 %v279
      %v886 = vunpack.c.l.b16 %v280
      %v887 = vunpack.c.h.b16 %v280
      %v888 = vunpack.c.l.b16 %v281
      %v889 = vunpack.c.h.b16 %v281
      %v890 = vunpack.c.l.b16 %v282
      %v891 = vunpack.c.h.b16 %v282
      %v892 = vunpack.c.l.b16 %v283
      %v893 = vunpack.c.h.b16 %v283
      %v894 = vunpack.c.l.b16 %v284
      %v895 = vunpack.c.h.b16 %v284
      %v896 = vunpack.c.l.b16 %v285
      %v897 = vunpack.c.h.b16 %v285
      %v898 = vunpack.c.l.b16 %v286
      %v899 = vunpack.c.h.b16 %v286
      %v900 = vunpack.c.l.b16 %v287
      %v901 = vunpack.c.h.b16 %v287
      %v902 = vunpack.c.l.b16 %v288
      %v903 = vunpack.c.h.b16 %v288
      %v904 = vunpack.c.l.b16 %v289
      %v905 = vunpack.c.h.b16 %v289
      %v906 = vunpack.c.l.b16 %v290
      %v907 = vunpack.c.h.b16 %v290
      %v908 = vunpack.c.l.b16 %v291
      %v909 = vunpack.c.h.b16 %v291
      %v910 = vunpack.c.l.b16 %v292
      %v911 = vunpack.c.h.b16 %v292
      %v912 = vunpack.c.l.b16 %v293
      %v913 = vunpack.c.h.b16 %v293
      %v914 = vunpack.c.l.b16 %v294
      %v915 = vunpack.c.h.b16 %v294
      %v916 = vunpack.c.l.b16 %v295
      %v917 = vunpack.c.h.b16 %v295
      %v918 = vunpack.c.l.b16 %v296
      %v919 = vunpack.c.h.b16 %v296
      %v920 = vunpack.c.l.b16 %v297
      %v921 = vunpack.c.h.b16 %v297
      %v922 = vunpack.c.l.b16 %v298
      %v923 = vunpack.c.h.b16 %v298
      %v924 = vunpack.c.l.b16 %v299
      %v925 = vunpack.c.h.b16 %v299
      %v926 = vunpack.c.l.b16 %v300
      %v927 = vunpack.c.h.b16 %v300
      %v928 = vunpack.c.l.b16 %v301
      %v929 = vunpack.c.h.b16 %v301
      %v930 = vunpack.c.l.b16 %v302
      %v931 = vunpack.c.h.b16 %v302
      %v932 = vunpack.c.l.b16 %v303
      %v933 = vunpack.c.h.b16 %v303
      %v934 = vunpack.c.l.b16 %v304
      %v935 = vunpack.c.h.b16 %v304
      %v936 = vunpack.c.l.b16 %v305
      %v937 = vunpack.c.h.b16 %v305
      %v938 = vunpack.c.l.b16 %v306
      %v939 = vunpack.c.h.b16 %v306
      %v940 = vunpack.c.l.b16 %v307
      %v941 = vunpack.c.h.b16 %v307
      %v942 = vunpack.c.l.b16 %v308
      %v943 = vunpack.c.h.b16 %v308
      %v944 = vunpack.c.l.b16 %v309
      %v945 = vunpack.c.h.b16 %v309
      %v946 = vunpack.c.l.b16 %v310
      %v947 = vunpack.c.h.b16 %v310
      %v948 = vunpack.c.l.b16 %v311
      %v949 = vunpack.c.h.b16 %v311
      %v950 = vunpack.c.l.b16 %v312
      %v951 = vunpack.c.h.b16 %v312
      %v952 = vunpack.c.l.b16 %v313
      %v953 = vunpack.c.h.b16 %v313
      %v954 = vunpack.c.l.b16 %v314
      %v955 = vunpack.c.h.b16 %v314
      %v956 = vunpack.c.l.b16 %v315
      %v957 = vunpack.c.h.b16 %v315
      %v958 = vunpack.c.l.b16 %v316
      %v959 = vunpack.c.h.b16 %v316
      %v960 = vunpack.c.l.b16 %v317
      %v961 = vunpack.c.h.b16 %v317
      %v962 = vunpack.c.l.b16 %v318
      %v963 = vunpack.c.h.b16 %v318
      %v964 = vunpack.c.l.b16 %v319
      %v965 = vunpack.c.h.b16 %v319
      %v966 = vunpack.c.l.b16 %v320
      %v967 = vunpack.c.h.b16 %v320
      %v968 = vunpack.c.l.b16 %v321
      %v969 = vunpack.c.h.b16 %v321
      %v970 = vunpack.c.l.b16 %v322
      %v971 = vunpack.c.h.b16 %v322
      %v972 = vunpack.c.l.b16 %v323
      %v973 = vunpack.c.h.b16 %v323
      %v974 = vunpack.c.l.b16 %v324
      %v975 = vunpack.c.h.b16 %v324
      %v976 = vunpack.c.l.b16 %v325
      %v977 = vunpack.c.h.b16 %v325
      %v978 = vunpack.c.l.b16 %v326
      %v979 = vunpack.c.h.b16 %v326
      %v980 = vunpack.c.l.b16 %v327
      %v981 = vunpack.c.h.b16 %v327
      %v982 = vunpack.c.l.b16 %v328
      %v983 = vunpack.c.h.b16 %v328
      %v984 = vunpack.c.l.b16 %v329
      %v985 = vunpack.c.h.b16 %v329
      %v986 = vunpack.c.l.b16 %v330
      %v987 = vunpack.c.h.b16 %v330
      %v988 = vunpack.c.l.b16 %v331
      %v989 = vunpack.c.h.b16 %v331
      %v990 = vunpack.c.l.b16 %v332
      %v991 = vunpack.c.h.b16 %v332
      %v992 = vunpack.c.l.b16 %v333
      %v993 = vunpack.c.h.b16 %v333
      %v994 = vunpack.c.l.b16 %v334
      %v995 = vunpack.c.h.b16 %v334
      %v996 = vunpack.c.l.b16 %v335
      %v997 = vunpack.c.h.b16 %v335
      %v998 = vunpack.c.l.b16 %v336
      %v999 = vunpack.c.h.b16 %v336
      %v1000 = vunpack.c.l.b16 %v337
      %v1001 = vunpack.c.h.b16 %v337
      %v1002 = vunpack.c.l.b16 %v338
      %v1003 = vunpack.c.h.b16 %v338
      %v1004 = vunpack.c.l.b16 %v339
      %v1005 = vunpack.c.h.b16 %v339
      %v1006 = vunpack.c.l.b16 %v340
      %v1007 = vunpack.c.h.b16 %v340
      %v1008 = vunpack.c.l.b16 %v341
      %v1009 = vunpack.c.h.b16 %v341
      %v1010 = vunpack.c.l.b16 %v342
      %v1011 = vunpack.c.h.b16 %v342
      %v1012 = vunpack.c.l.b16 %v343
      %v1013 = vunpack.c.h.b16 %v343
      %v1014 = vunpack.c.l.b16 %v344
      %v1015 = vunpack.c.h.b16 %v344
      %v1016 = vunpack.c.l.b16 %v345
      %v1017 = vunpack.c.h.b16 %v345
      %v1018 = vunpack.c.l.b16 %v346
      %v1019 = vunpack.c.h.b16 %v346
      %v1020 = vunpack.c.l.b16 %v347
      %v1021 = vunpack.c.h.b16 %v347
      %v1022 = vunpack.c.l.b16 %v348
      %v1023 = vunpack.c.h.b16 %v348
      %v1024 = vunpack.c.l.b16 %v349
      %v1025 = vunpack.c.h.b16 %v349
      %v1026 = vunpack.c.l.b16 %v350
      %v1027 = vunpack.c.h.b16 %v350
      %v1028 = vunpack.c.l.b16 %v351
      %v1029 = vunpack.c.h.b16 %v351
      %v1030 = vunpack.c.l.b16 %v352
      %v1031 = vunpack.c.h.b16 %v352
      %v1032 = vunpack.c.l.b16 %v353
      %v1033 = vunpack.c.h.b16 %v353
      %v1034 = vunpack.c.l.b16 %v354
      %v1035 = vunpack.c.h.b16 %v354
      %v1036 = vunpack.c.l.b16 %v355
      %v1037 = vunpack.c.h.b16 %v355
      %v1038 = vunpack.c.l.b16 %v356
      %v1039 = vunpack.c.h.b16 %v356
      %v1040 = vunpack.c.l.b16 %v357
      %v1041 = vunpack.c.h.b16 %v357
      %v1042 = vunpack.c.l.b16 %v358
      %v1043 = vunpack.c.h.b16 %v358
      %v1044 = vunpack.c.l.b16 %v359
      %v1045 = vunpack.c.h.b16 %v359
      %v1046 = vunpack.c.l.b16 %v360
      %v1047 = vunpack.c.h.b16 %v360
      %v1048 = vunpack.c.l.b16 %v361
      %v1049 = vunpack.c.h.b16 %v361
      %v1050 = vunpack.c.l.b16 %v362
      %v1051 = vunpack.c.h.b16 %v362
      %v1052 = vunpack.c.l.b16 %v363
      %v1053 = vunpack.c.h.b16 %v363
      %v1054 = vunpack.c.l.b16 %v364
      %v1055 = vunpack.c.h.b16 %v364
      %v1056 = vunpack.c.l.b16 %v365
      %v1057 = vunpack.c.h.b16 %v365
      %v1058 = vunpack.c.l.b16 %v366
      %v1059 = vunpack.c.h.b16 %v366
      %v1060 = vunpack.c.l.b16 %v367
      %v1061 = vunpack.c.h.b16 %v367
      %v1062 = vunpack.c.l.b16 %v368
      %v1063 = vunpack.c.h.b16 %v368
      %v1064 = vunpack.c.l.b16 %v369
      %v1065 = vunpack.c.h.b16 %v369
      %v1066 = vunpack.c.l.b16 %v370
      %v1067 = vunpack.c.h.b16 %v370
      %v1068 = vunpack.c.l.b16 %v371
      %v1069 = vunpack.c.h.b16 %v371
      %v1070 = vunpack.c.l.b16 %v372
      %v1071 = vunpack.c.h.b16 %v372
      %v1072 = vunpack.c.l.b16 %v373
      %v1073 = vunpack.c.h.b16 %v373
      %v1074 = vunpack.c.l.b16 %v374
      %v1075 = vunpack.c.h.b16 %v374
      %v1076 = vunpack.c.l.b16 %v375
      %v1077 = vunpack.c.h.b16 %v375
      %v1078 = vunpack.c.l.b16 %v376
      %v1079 = vunpack.c.h.b16 %v376
      %v1080 = vunpack.c.l.b16 %v377
      %v1081 = vunpack.c.h.b16 %v377
      %v1082 = vunpack.c.l.b16 %v378
      %v1083 = vunpack.c.h.b16 %v378
      %v1084 = vunpack.c.l.b16 %v379
      %v1085 = vunpack.c.h.b16 %v379
      %v1086 = vunpack.c.l.b16 %v380
      %v1087 = vunpack.c.h.b16 %v380
      %v1088 = vunpack.c.l.b16 %v381
      %v1089 = vunpack.c.h.b16 %v381
      %v1090 = vunpack.c.l.b16 %v382
      %v1091 = vunpack.c.h.b16 %v382
      %v1092 = vunpack.c.l.b16 %v383
      %v1093 = vunpack.c.h.b16 %v383
      %v1094 = vunpack.c.l.b16 %v384
      %v1095 = vunpack.c.h.b16 %v384
      %v1096 = vunpack.c.l.b16 %v385
      %v1097 = vunpack.c.h.b16 %v385
      %v1098 = vunpack.c.l.b16 %v386
      %v1099 = vunpack.c.h.b16 %v386
      %v1100 = vunpack.c.l.b16 %v387
      %v1101 = vunpack.c.h.b16 %v387
      %v1102 = vunpack.c.l.b16 %v388
      %v1103 = vunpack.c.h.b16 %v388
      %v1104 = vunpack.c.l.b16 %v389
      %v1105 = vunpack.c.h.b16 %v389
      %v1106 = vunpack.c.l.b16 %v390
      %v1107 = vunpack.c.h.b16 %v390
      %v1108 = vunpack.c.l.b16 %v391
      %v1109 = vunpack.c.h.b16 %v391
      %v1110 = vunpack.c.l.b16 %v392
      %v1111 = vunpack.c.h.b16 %v392
      %v1112 = vunpack.c.l.b16 %v393
      %v1113 = vunpack.c.h.b16 %v393
      %v1114 = vunpack.c.l.b16 %v394
      %v1115 = vunpack.c.h.b16 %v394
      %v1116 = vunpack.c.l.b16 %v395
      %v1117 = vunpack.c.h.b16 %v395
      %v1118 = vunpack.c.l.b16 %v396
      %v1119 = vunpack.c.h.b16 %v396
      %v1120 = vunpack.c.l.b16 %v397
      %v1121 = vunpack.c.h.b16 %v397
      %v1122 = vunpack.c.l.b16 %v398
      %v1123 = vunpack.c.h.b16 %v398
      %v1124 = vunpack.c.l.b16 %v399
      %v1125 = vunpack.c.h.b16 %v399
      %v1126 = vunpack.c.l.b16 %v400
      %v1127 = vunpack.c.h.b16 %v400
      %v1128 = vunpack.c.l.b16 %v401
      %v1129 = vunpack.c.h.b16 %v401
      %v1130 = vunpack.c.l.b16 %v402
      %v1131 = vunpack.c.h.b16 %v402
      %v1132 = vunpack.c.l.b16 %v403
      %v1133 = vunpack.c.h.b16 %v403
      %v1134 = vunpack.c.l.b16 %v404
      %v1135 = vunpack.c.h.b16 %v404
      %v1136 = vunpack.c.l.b16 %v405
      %v1137 = vunpack.c.h.b16 %v405
      %v1138 = vunpack.c.l.b16 %v406
      %v1139 = vunpack.c.h.b16 %v406
      %v1140 = vunpack.c.l.b16 %v407
      %v1141 = vunpack.c.h.b16 %v407
      %v1142 = vunpack.c.l.b16 %v408
      %v1143 = vunpack.c.h.b16 %v408
      %v1144 = vunpack.c.l.b16 %v409
      %v1145 = vunpack.c.h.b16 %v409
      %v1146 = vunpack.c.l.b16 %v410
      %v1147 = vunpack.c.h.b16 %v410
      %v1148 = vunpack.c.l.b16 %v411
      %v1149 = vunpack.c.h.b16 %v411
      %v1150 = vunpack.c.l.b16 %v412
      %v1151 = vunpack.c.h.b16 %v412
      %v1152 = vunpack.c.l.b16 %v413
      %v1153 = vunpack.c.h.b16 %v413
      %v1154 = vunpack.c.l.b16 %v414
      %v1155 = vunpack.c.h.b16 %v414
      %v1156 = vunpack.c.l.b16 %v415
      %v1157 = vunpack.c.h.b16 %v415
      %v1158 = vunpack.c.l.b16 %v416
      %v1159 = vunpack.c.h.b16 %v416
      %v1160 = vunpack.c.l.b16 %v417
      %v1161 = vunpack.c.h.b16 %v417
      %v1162 = vunpack.c.l.b16 %v418
      %v1163 = vunpack.c.h.b16 %v418
      %v1164 = vunpack.c.l.b16 %v419
      %v1165 = vunpack.c.h.b16 %v419
      %v1166 = vunpack.c.l.b16 %v420
      %v1167 = vunpack.c.h.b16 %v420
      %v1168 = vunpack.c.l.b16 %v421
      %v1169 = vunpack.c.h.b16 %v421
      %v1170 = vunpack.c.l.b16 %v422
      %v1171 = vunpack.c.h.b16 %v422
      %v1172 = vunpack.c.l.b16 %v423
      %v1173 = vunpack.c.h.b16 %v423
      %v1174 = vunpack.c.l.b16 %v424
      %v1175 = vunpack.c.h.b16 %v424
      %v1176 = vunpack.c.l.b16 %v425
      %v1177 = vunpack.c.h.b16 %v425
      %v1178 = vunpack.c.l.b16 %v426
      %v1179 = vunpack.c.h.b16 %v426
      %v1180 = vunpack.c.l.b16 %v427
      %v1181 = vunpack.c.h.b16 %v427
      %v1182 = vunpack.c.l.b16 %v428
      %v1183 = vunpack.c.h.b16 %v428
      %v1184 = vunpack.c.l.b16 %v429
      %v1185 = vunpack.c.h.b16 %v429
      %v1186 = vunpack.c.l.b16 %v430
      %v1187 = vunpack.c.h.b16 %v430
      %v1188 = vunpack.c.l.b16 %v431
      %v1189 = vunpack.c.h.b16 %v431
      %v1190 = vunpack.c.l.b16 %v432
      %v1191 = vunpack.c.h.b16 %v432
      %v1192 = vunpack.c.l.b16 %v433
      %v1193 = vunpack.c.h.b16 %v433
      %v1194 = vunpack.c.l.b16 %v434
      %v1195 = vunpack.c.h.b16 %v434
      %v1196 = vunpack.c.l.b16 %v435
      %v1197 = vunpack.c.h.b16 %v435
      %v1198 = vunpack.c.l.b16 %v436
      %v1199 = vunpack.c.h.b16 %v436
      %v1200 = vunpack.c.l.b16 %v437
      %v1201 = vunpack.c.h.b16 %v437
      %v1202 = vunpack.c.l.b16 %v438
      %v1203 = vunpack.c.h.b16 %v438
      %v1204 = vunpack.c.l.b16 %v439
      %v1205 = vunpack.c.h.b16 %v439
      %v1206 = vunpack.c.l.b16 %v440
      %v1207 = vunpack.c.h.b16 %v440
      %v1208 = vunpack.c.l.b16 %v441
      %v1209 = vunpack.c.h.b16 %v441
      %v1210 = vunpack.c.l.b16 %v442
      %v1211 = vunpack.c.h.b16 %v442
      %v1212 = vunpack.c.l.b16 %v443
      %v1213 = vunpack.c.h.b16 %v443
      %v1214 = vunpack.c.l.b16 %v444
      %v1215 = vunpack.c.h.b16 %v444
      %v1216 = vunpack.c.l.b16 %v445
      %v1217 = vunpack.c.h.b16 %v445
      %v1218 = vunpack.c.l.b16 %v446
      %v1219 = vunpack.c.h.b16 %v446
      %v1220 = vunpack.c.l.b16 %v447
      %v1221 = vunpack.c.h.b16 %v447
      %v1222 = vunpack.c.l.b16 %v448
      %v1223 = vunpack.c.h.b16 %v448
      %v1224 = vunpack.c.l.b16 %v449
      %v1225 = vunpack.c.h.b16 %v449
      %v1226 = vunpack.c.l.b16 %v450
      %v1227 = vunpack.c.h.b16 %v450
      %v1228 = vunpack.c.l.b16 %v451
      %v1229 = vunpack.c.h.b16 %v451
      %v1230 = vpack.c.b16 %v726, %v718
      %v1231 = vpack.c.b16 %v727, %v719
      %v1232 = vpack.c.b16 %v728, %v720
      %v1233 = vpack.c.b16 %v729, %v721
      %v1234 = vpack.c.b16 %v730, %v722
      %v1235 = vpack.c.b16 %v731, %v723
      %v1236 = vpack.c.b16 %v732, %v724
      %v1237 = vpack.c.b16 %v733, %v725
      %v1238 = vpack.c.b16 %v742, %v734
      %v1239 = vpack.c.b16 %v743, %v735
      %v1240 = vpack.c.b16 %v744, %v736
      %v1241 = vpack.c.b16 %v745, %v737
      %v1242 = vpack.c.b16 %v746, %v738
      %v1243 = vpack.c.b16 %v747, %v739
      %v1244 = vpack.c.b16 %v748, %v740
      %v1245 = vpack.c.b16 %v749, %v741
      %v1246 = vpack.c.b16 %v758, %v750
      %v1247 = vpack.c.b16 %v759, %v751
      %v1248 = vpack.c.b16 %v760, %v752
      %v1249 = vpack.c.b16 %v761, %v753
      %v1250 = vpack.c.b16 %v762, %v754
      %v1251 = vpack.c.b16 %v763, %v755
      %v1252 = vpack.c.b16 %v764, %v756
      %v1253 = vpack.c.b16 %v765, %v757
      %v1254 = vpack.c.b16 %v774, %v766
      %v1255 = vpack.c.b16 %v775, %v767
      %v1256 = vpack.c.b16 %v776, %v768
      %v1257 = vpack.c.b16 %v777, %v769
      %v1258 = vpack.c.b16 %v778, %v770
      %v1259 = vpack.c.b16 %v779, %v771
      %v1260 = vpack.c.b16 %v780, %v772
      %v1261 = vpack.c.b16 %v781, %v773
      %v1262 = vpack.c.b16 %v790, %v782
      %v1263 = vpack.c.b16 %v791, %v783
      %v1264 = vpack.c.b16 %v792, %v784
      %v1265 = vpack.c.b16 %v793, %v785
      %v1266 = vpack.c.b16 %v794, %v786
      %v1267 = vpack.c.b16 %v795, %v787
      %v1268 = vpack.c.b16 %v796, %v788
      %v1269 = vpack.c.b16 %v797, %v789
      %v1270 = vpack.c.b16 %v806, %v798
      %v1271 = vpack.c.b16 %v807, %v799
      %v1272 = vpack.c.b16 %v808, %v800
      %v1273 = vpack.c.b16 %v809, %v801
      %v1274 = vpack.c.b16 %v810, %v802
      %v1275 = vpack.c.b16 %v811, %v803
      %v1276 = vpack.c.b16 %v812, %v804
      %v1277 = vpack.c.b16 %v813, %v805
      %v1278 = vpack.c.b16 %v822, %v814
      %v1279 = vpack.c.b16 %v823, %v815
      %v1280 = vpack.c.b16 %v824, %v816
      %v1281 = vpack.c.b16 %v825, %v817
      %v1282 = vpack.c.b16 %v826, %v818
      %v1283 = vpack.c.b16 %v827, %v819
      %v1284 = vpack.c.b16 %v828, %v820
      %v1285 = vpack.c.b16 %v829, %v821
      %v1286 = vpack.c.b16 %v838, %v830
      %v1287 = vpack.c.b16 %v839, %v831
      %v1288 = vpack.c.b16 %v840, %v832
      %v1289 = vpack.c.b16 %v841, %v833
      %v1290 = vpack.c.b16 %v842, %v834
      %v1291 = vpack.c.b16 %v843, %v835
      %v1292 = vpack.c.b16 %v844, %v836
      %v1293 = vpack.c.b16 %v845, %v837
      %v1294 = vpack.c.b16 %v854, %v846
      %v1295 = vpack.c.b16 %v855, %v847
      %v1296 = vpack.c.b16 %v856, %v848
      %v1297 = vpack.c.b16 %v857, %v849
      %v1298 = vpack.c.b16 %v858, %v850
      %v1299 = vpack.c.b16 %v859, %v851
      %v1300 = vpack.c.b16 %v860, %v852
      %v1301 = vpack.c.b16 %v861, %v853
      %v1302 = vpack.c.b16 %v870, %v862
      %v1303 = vpack.c.b16 %v871, %v863
      %v1304 = vpack.c.b16 %v872, %v864
      %v1305 = vpack.c.b16 %v873, %v865
      %v1306 = vpack.c.b16 %v874, %v866
      %v1307 = vpack.c.b16 %v875, %v867
      %v1308 = vpack.c.b16 %v876, %v868
      %v1309 = vpack.c.b16 %v877, %v869
      %v1310 = vpack.c.b16 %v886, %v878
      %v1311 = vpack.c.b16 %v887, %v879
      %v1312 = vpack.c.b16 %v888, %v880
      %v1313 = vpack.c.b16 %v889, %v881
      %v1314 = vpack.c.b16 %v890, %v882
      %v1315 = vpack.c.b16 %v891, %v883
      %v1316 = vpack.c.b16 %v892, %v884
      %v1317 = vpack.c.b16 %v893, %v885
      %v1318 = vpack.c.b16 %v902, %v894
      %v1319 = vpack.c.b16 %v903, %v895
      %v1320 = vpack.c.b16 %v904, %v896
      %v1321 = vpack.c.b16 %v905, %v897
      %v1322 = vpack.c.b16 %v906, %v898
      %v1323 = vpack.c.b16 %v907, %v899
      %v1324 = vpack.c.b16 %v908, %v900
      %v1325 = vpack.c.b16 %v909, %v901
      %v1326 = vpack.c.b16 %v918, %v910
      %v1327 = vpack.c.b16 %v919, %v911
      %v1328 = vpack.c.b16 %v920, %v912
      %v1329 = vpack.c.b16 %v921, %v913
      %v1330 = vpack.c.b16 %v922, %v914
      %v1331 = vpack.c.b16 %v923, %v915
      %v1332 = vpack.c.b16 %v924, %v916
      %v1333 = vpack.c.b16 %v925, %v917
      %v1334 = vpack.c.b16 %v934, %v926
      %v1335 = vpack.c.b16 %v935, %v927
      %v1336 = vpack.c.b16 %v936, %v928
      %v1337 = vpack.c.b16 %v937, %v929
      %v1338 = vpack.c.b16 %v938, %v930
      %v1339 = vpack.c.b16 %v939, %v931
      %v1340 = vpack.c.b16 %v940, %v932
      %v1341 = vpack.c.b16 %v941, %v933
      %v1342 = vpack.c.b16 %v950, %v942
      %v1343 = vpack.c.b16 %v951, %v943
      %v1344 = vpack.c.b16 %v952, %v944
      %v1345 = vpack.c.b16 %v953, %v945
      %v1346 = vpack.c.b16 %v954, %v946
      %v1347 = vpack.c.b16 %v955, %v947
      %v1348 = vpack.c.b16 %v956, %v948
      %v1349 = vpack.c.b16 %v957, %v949
      %v1350 = vpack.c.b16 %v966, %v958
      %v1351 = vpack.c.b16 %v967, %v959
      %v1352 = vpack.c.b16 %v968, %v960
      %v1353 = vpack.c.b16 %v969, %v961
      %v1354 = vpack.c.b16 %v970, %v962
      %v1355 = vpack.c.b16 %v971, %v963
      %v1356 = vpack.c.b16 %v972, %v964
      %v1357 = vpack.c.b16 %v973, %v965
      %v1358 = vpack.c.b16 %v982, %v974
      %v1359 = vpack.c.b16 %v983, %v975
      %v1360 = vpack.c.b16 %v984, %v976
      %v1361 = vpack.c.b16 %v985, %v977
      %v1362 = vpack.c.b16 %v986, %v978
      %v1363 = vpack.c.b16 %v987, %v979
      %v1364 = vpack.c.b16 %v988, %v980
      %v1365 = vpack.c.b16 %v989, %v981
      %v1366 = vpack.c.b16 %v998, %v990
      %v1367 = vpack.c.b16 %v999, %v991
      %v1368 = vpack.c.b16 %v1000, %v992
      %v1369 = vpack.c.b16 %v1001, %v993
      %v1370 = vpack.c.b16 %v1002, %v994
      %v1371 = vpack.c.b16 %v1003, %v995
      %v1372 = vpack.c.b16 %v1004, %v996
      %v1373 = vpack.c.b16 %v1005, %v997
      %v1374 = vpack.c.b16 %v1014, %v1006
      %v1375 = vpack.c.b16 %v1015, %v1007
      %v1376 = vpack.c.b16 %v1016, %v1008
      %v1377 = vpack.c.b16 %v1017, %v1009
      %v1378 = vpack.c.b16 %v1018, %v1010
      %v1379 = vpack.c.b16 %v1019, %v1011
      %v1380 = vpack.c.b16 %v1020, %v1012
      %v1381 = vpack.c.b16 %v1021, %v1013
      %v1382 = vpack.c.b16 %v1030, %v1022
      %v1383 = vpack.c.b16 %v1031, %v1023
      %v1384 = vpack.c.b16 %v1032, %v1024
      %v1385 = vpack.c.b16 %v1033, %v1025
      %v1386 = vpack.c.b16 %v1034, %v1026
      %v1387 = vpack.c.b16 %v1035, %v1027
      %v1388 = vpack.c.b16 %v1036, %v1028
      %v1389 = vpack.c.b16 %v1037, %v1029
      %v1390 = vpack.c.b16 %v1046, %v1038
      %v1391 = vpack.c.b16 %v1047, %v1039
      %v1392 = vpack.c.b16 %v1048, %v1040
      %v1393 = vpack.c.b16 %v1049, %v1041
      %v1394 = vpack.c.b16 %v1050, %v1042
      %v1395 = vpack.c.b16 %v1051, %v1043
      %v1396 = vpack.c.b16 %v1052, %v1044
      %v1397 = vpack.c.b16 %v1053, %v1045
      %v1398 = vpack.c.b16 %v1062, %v1054
      %v1399 = vpack.c.b16 %v1063, %v1055
      %v1400 = vpack.c.b16 %v1064, %v1056
      %v1401 = vpack.c.b16 %v1065, %v1057
      %v1402 = vpack.c.b16 %v1066, %v1058
      %v1403 = vpack.c.b16 %v1067, %v1059
      %v1404 = vpack.c.b16 %v1068, %v1060
      %v1405 = vpack.c.b16 %v1069, %v1061
      %v1406 = vpack.c.b16 %v1078, %v1070
      %v1407 = vpack.c.b16 %v1079, %v1071
      %v1408 = vpack.c.b16 %v1080, %v1072
      %v1409 = vpack.c.b16 %v1081, %v1073
      %v1410 = vpack.c.b16 %v1082, %v1074
      %v1411 = vpack.c.b16 %v1083, %v1075
      %v1412 = vpack.c.b16 %v1084, %v1076
      %v1413 = vpack.c.b16 %v1085, %v1077
      %v1414 = vpack.c.b16 %v1094, %v1086
      %v1415 = vpack.c.b16 %v1095, %v1087
      %v1416 = vpack.c.b16 %v1096, %v1088
      %v1417 = vpack.c.b16 %v1097, %v1089
      %v1418 = vpack.c.b16 %v1098, %v1090
      %v1419 = vpack.c.b16 %v1099, %v1091
      %v1420 = vpack.c.b16 %v1100, %v1092
      %v1421 = vpack.c.b16 %v1101, %v1093
      %v1422 = vpack.c.b16 %v1110, %v1102
      %v1423 = vpack.c.b16 %v1111, %v1103
      %v1424 = vpack.c.b16 %v1112, %v1104
      %v1425 = vpack.c.b16 %v1113, %v1105
      %v1426 = vpack.c.b16 %v1114, %v1106
      %v1427 = vpack.c.b16 %v1115, %v1107
      %v1428 = vpack.c.b16 %v1116, %v1108
      %v1429 = vpack.c.b16 %v1117, %v1109
      %v1430 = vpack.c.b16 %v1126, %v1118
      %v1431 = vpack.c.b16 %v1127, %v1119
      %v1432 = vpack.c.b16 %v1128, %v1120
      %v1433 = vpack.c.b16 %v1129, %v1121
      %v1434 = vpack.c.b16 %v1130, %v1122
      %v1435 = vpack.c.b16 %v1131, %v1123
      %v1436 = vpack.c.b16 %v1132, %v1124
      %v1437 = vpack.c.b16 %v1133, %v1125
      %v1438 = vpack.c.b16 %v1142, %v1134
      %v1439 = vpack.c.b16 %v1143, %v1135
      %v1440 = vpack.c.b16 %v1144, %v1136
      %v1441 = vpack.c.b16 %v1145, %v1137
      %v1442 = vpack.c.b16 %v1146, %v1138
      %v1443 = vpack.c.b16 %v1147, %v1139
      %v1444 = vpack.c.b16 %v1148, %v1140
      %v1445 = vpack.c.b16 %v1149, %v1141
      %v1446 = vpack.c.b16 %v1158, %v1150
      %v1447 = vpack.c.b16 %v1159, %v1151
      %v1448 = vpack.c.b16 %v1160, %v1152
      %v1449 = vpack.c.b16 %v1161, %v1153
      %v1450 = vpack.c.b16 %v1162, %v1154
      %v1451 = vpack.c.b16 %v1163, %v1155
      %v1452 = vpack.c.b16 %v1164, %v1156
      %v1453 = vpack.c.b16 %v1165, %v1157
      %v1454 = vpack.c.b16 %v1174, %v1166
      %v1455 = vpack.c.b16 %v1175, %v1167
      %v1456 = vpack.c.b16 %v1176, %v1168
      %v1457 = vpack.c.b16 %v1177, %v1169
      %v1458 = vpack.c.b16 %v1178, %v1170
      %v1459 = vpack.c.b16 %v1179, %v1171
      %v1460 = vpack.c.b16 %v1180, %v1172
      %v1461 = vpack.c.b16 %v1181, %v1173
      %v1462 = vpack.c.b16 %v1190, %v1182
      %v1463 = vpack.c.b16 %v1191, %v1183
      %v1464 = vpack.c.b16 %v1192, %v1184
      %v1465 = vpack.c.b16 %v1193, %v1185
      %v1466 = vpack.c.b16 %v1194, %v1186
      %v1467 = vpack.c.b16 %v1195, %v1187
      %v1468 = vpack.c.b16 %v1196, %v1188
      %v1469 = vpack.c.b16 %v1197, %v1189
      %v1470 = vpack.c.b16 %v1206, %v1198
      %v1471 = vpack.c.b16 %v1207, %v1199
      %v1472 = vpack.c.b16 %v1208, %v1200
      %v1473 = vpack.c.b16 %v1209, %v1201
      %v1474 = vpack.c.b16 %v1210, %v1202
      %v1475 = vpack.c.b16 %v1211, %v1203
      %v1476 = vpack.c.b16 %v1212, %v1204
      %v1477 = vpack.c.b16 %v1213, %v1205
      %v1478 = vpack.c.b16 %v1222, %v1214
      %v1479 = vpack.c.b16 %v1223, %v1215
      %v1480 = vpack.c.b16 %v1224, %v1216
      %v1481 = vpack.c.b16 %v1225, %v1217
      %v1482 = vpack.c.b16 %v1226, %v1218
      %v1483 = vpack.c.b16 %v1227, %v1219
      %v1484 = vpack.c.b16 %v1228, %v1220
      %v1485 = vpack.c.b16 %v1229, %v1221
      %1742 = vmatpush.bf16.msra.mxu0 %v1286
      %1743 = vmatpush.bf16.msra.mxu0 %v1278
      %1744 = vmatpush.bf16.msra.mxu0 %v1270
      %1745 = vmatpush.bf16.msra.mxu0 %v1262
      %1746 = vmatpush.bf16.msra.mxu0 %v1254
      %1747 = vmatpush.bf16.msra.mxu0 %v1246
      %1748 = vmatpush.bf16.msra.mxu0 %v1238
      %1749 = vmatpush.bf16.msra.mxu0 %v1230
      %1750 = vmatmul.bf16.gmra.mxu0 %v454
      %v1751 = vpop.f32.mrf.mxu0
      %v1752 = vadd.f32 0.0, %v1751
      %v1753 = vpop.f32.mrf.mxu0
      %1754 = vdwg.mxu0
      %1755 = vmatpush.bf16.msra.mxu0 %v1350
      %1756 = vmatpush.bf16.msra.mxu0 %v1342
      %1757 = vmatpush.bf16.msra.mxu0 %v1334
      %1758 = vmatpush.bf16.msra.mxu0 %v1326
      %1759 = vmatpush.bf16.msra.mxu0 %v1318
      %1760 = vmatpush.bf16.msra.mxu0 %v1310
      %1761 = vmatpush.bf16.msra.mxu0 %v1302
      %1762 = vmatpush.bf16.msra.mxu0 %v1294
      %1763 = vmatmul.bf16.gmra.mxu0 %v455
      %v1764 = vpop.f32.mrf.mxu0
      %v1765 = vadd.f32 %v1752, %v1764
      %v1766 = vpop.f32.mrf.mxu0
      %1767 = vdwg.mxu0
      %1768 = vmatpush.bf16.msra.mxu0 %v1414
      %1769 = vmatpush.bf16.msra.mxu0 %v1406
      %1770 = vmatpush.bf16.msra.mxu0 %v1398
      %1771 = vmatpush.bf16.msra.mxu0 %v1390
      %1772 = vmatpush.bf16.msra.mxu0 %v1382
      %1773 = vmatpush.bf16.msra.mxu0 %v1374
      %1774 = vmatpush.bf16.msra.mxu0 %v1366
      %1775 = vmatpush.bf16.msra.mxu0 %v1358
      %1776 = vmatmul.bf16.gmra.mxu0 %v456
      %v1777 = vpop.f32.mrf.mxu0
      %v1778 = vadd.f32 %v1765, %v1777
      %v1779 = vpop.f32.mrf.mxu0
      %1780 = vdwg.mxu0
      %1781 = vmatpush.bf16.msra.mxu0 %v1478
      %1782 = vmatpush.bf16.msra.mxu0 %v1470
      %1783 = vmatpush.bf16.msra.mxu0 %v1462
      %1784 = vmatpush.bf16.msra.mxu0 %v1454
      %1785 = vmatpush.bf16.msra.mxu0 %v1446
      %1786 = vmatpush.bf16.msra.mxu0 %v1438
      %1787 = vmatpush.bf16.msra.mxu0 %v1430
      %1788 = vmatpush.bf16.msra.mxu0 %v1422
      %1789 = vmatmul.bf16.gmra.mxu0 %v457
      %v1790 = vpop.f32.mrf.mxu0
      %v1791 = vadd.f32 %v1778, %v1790
      %v1792 = vpop.f32.mrf.mxu0
      %1793 = vdwg.mxu0
      %1794 = vmatpush.bf16.msra.mxu0 %v1287
      %1795 = vmatpush.bf16.msra.mxu0 %v1279
      %1796 = vmatpush.bf16.msra.mxu0 %v1271
      %1797 = vmatpush.bf16.msra.mxu0 %v1263
      %1798 = vmatpush.bf16.msra.mxu0 %v1255
      %1799 = vmatpush.bf16.msra.mxu0 %v1247
      %1800 = vmatpush.bf16.msra.mxu0 %v1239
      %1801 = vmatpush.bf16.msra.mxu0 %v1231
      %1802 = vmatmul.bf16.gmra.mxu0 %v454
      %v1803 = vpop.f32.mrf.mxu0
      %v1804 = vadd.f32 0.0, %v1803
      %v1805 = vpop.f32.mrf.mxu0
      %1806 = vdwg.mxu0
      %1807 = vmatpush.bf16.msra.mxu0 %v1351
      %1808 = vmatpush.bf16.msra.mxu0 %v1343
      %1809 = vmatpush.bf16.msra.mxu0 %v1335
      %1810 = vmatpush.bf16.msra.mxu0 %v1327
      %1811 = vmatpush.bf16.msra.mxu0 %v1319
      %1812 = vmatpush.bf16.msra.mxu0 %v1311
      %1813 = vmatpush.bf16.msra.mxu0 %v1303
      %1814 = vmatpush.bf16.msra.mxu0 %v1295
      %1815 = vmatmul.bf16.gmra.mxu0 %v455
      %v1816 = vpop.f32.mrf.mxu0
      %v1817 = vadd.f32 %v1804, %v1816
      %v1818 = vpop.f32.mrf.mxu0
      %1819 = vdwg.mxu0
      %1820 = vmatpush.bf16.msra.mxu0 %v1415
      %1821 = vmatpush.bf16.msra.mxu0 %v1407
      %1822 = vmatpush.bf16.msra.mxu0 %v1399
      %1823 = vmatpush.bf16.msra.mxu0 %v1391
      %1824 = vmatpush.bf16.msra.mxu0 %v1383
      %1825 = vmatpush.bf16.msra.mxu0 %v1375
      %1826 = vmatpush.bf16.msra.mxu0 %v1367
      %1827 = vmatpush.bf16.msra.mxu0 %v1359
      %1828 = vmatmul.bf16.gmra.mxu0 %v456
      %v1829 = vpop.f32.mrf.mxu0
      %v1830 = vadd.f32 %v1817, %v1829
      %v1831 = vpop.f32.mrf.mxu0
      %1832 = vdwg.mxu0
      %1833 = vmatpush.bf16.msra.mxu0 %v1479
      %1834 = vmatpush.bf16.msra.mxu0 %v1471
      %1835 = vmatpush.bf16.msra.mxu0 %v1463
      %1836 = vmatpush.bf16.msra.mxu0 %v1455
      %1837 = vmatpush.bf16.msra.mxu0 %v1447
      %1838 = vmatpush.bf16.msra.mxu0 %v1439
      %1839 = vmatpush.bf16.msra.mxu0 %v1431
      %1840 = vmatpush.bf16.msra.mxu0 %v1423
      %1841 = vmatmul.bf16.gmra.mxu0 %v457
      %v1842 = vpop.f32.mrf.mxu0
      %v1843 = vadd.f32 %v1830, %v1842
      %v1844 = vpop.f32.mrf.mxu0
      %1845 = vdwg.mxu0
      %1846 = vmatpush.bf16.msra.mxu0 %v1288
      %1847 = vmatpush.bf16.msra.mxu0 %v1280
      %1848 = vmatpush.bf16.msra.mxu0 %v1272
      %1849 = vmatpush.bf16.msra.mxu0 %v1264
      %1850 = vmatpush.bf16.msra.mxu0 %v1256
      %1851 = vmatpush.bf16.msra.mxu0 %v1248
      %1852 = vmatpush.bf16.msra.mxu0 %v1240
      %1853 = vmatpush.bf16.msra.mxu0 %v1232
      %1854 = vmatmul.bf16.gmra.mxu0 %v454
      %v1855 = vpop.f32.mrf.mxu0
      %v1856 = vadd.f32 0.0, %v1855
      %v1857 = vpop.f32.mrf.mxu0
      %1858 = vdwg.mxu0
      %1859 = vmatpush.bf16.msra.mxu0 %v1352
      %1860 = vmatpush.bf16.msra.mxu0 %v1344
      %1861 = vmatpush.bf16.msra.mxu0 %v1336
      %1862 = vmatpush.bf16.msra.mxu0 %v1328
      %1863 = vmatpush.bf16.msra.mxu0 %v1320
      %1864 = vmatpush.bf16.msra.mxu0 %v1312
      %1865 = vmatpush.bf16.msra.mxu0 %v1304
      %1866 = vmatpush.bf16.msra.mxu0 %v1296
      %1867 = vmatmul.bf16.gmra.mxu0 %v455
      %v1868 = vpop.f32.mrf.mxu0
      %v1869 = vadd.f32 %v1856, %v1868
      %v1870 = vpop.f32.mrf.mxu0
      %1871 = vdwg.mxu0
      %1872 = vmatpush.bf16.msra.mxu0 %v1416
      %1873 = vmatpush.bf16.msra.mxu0 %v1408
      %1874 = vmatpush.bf16.msra.mxu0 %v1400
      %1875 = vmatpush.bf16.msra.mxu0 %v1392
      %1876 = vmatpush.bf16.msra.mxu0 %v1384
      %1877 = vmatpush.bf16.msra.mxu0 %v1376
      %1878 = vmatpush.bf16.msra.mxu0 %v1368
      %1879 = vmatpush.bf16.msra.mxu0 %v1360
      %1880 = vmatmul.bf16.gmra.mxu0 %v456
      %v1881 = vpop.f32.mrf.mxu0
      %v1882 = vadd.f32 %v1869, %v1881
      %v1883 = vpop.f32.mrf.mxu0
      %1884 = vdwg.mxu0
      %1885 = vmatpush.bf16.msra.mxu0 %v1480
      %1886 = vmatpush.bf16.msra.mxu0 %v1472
      %1887 = vmatpush.bf16.msra.mxu0 %v1464
      %1888 = vmatpush.bf16.msra.mxu0 %v1456
      %1889 = vmatpush.bf16.msra.mxu0 %v1448
      %1890 = vmatpush.bf16.msra.mxu0 %v1440
      %1891 = vmatpush.bf16.msra.mxu0 %v1432
      %1892 = vmatpush.bf16.msra.mxu0 %v1424
      %1893 = vmatmul.bf16.gmra.mxu0 %v457
      %v1894 = vpop.f32.mrf.mxu0
      %v1895 = vadd.f32 %v1882, %v1894
      %v1896 = vpop.f32.mrf.mxu0
      %1897 = vdwg.mxu0
      %1898 = vmatpush.bf16.msra.mxu0 %v1289
      %1899 = vmatpush.bf16.msra.mxu0 %v1281
      %1900 = vmatpush.bf16.msra.mxu0 %v1273
      %1901 = vmatpush.bf16.msra.mxu0 %v1265
      %1902 = vmatpush.bf16.msra.mxu0 %v1257
      %1903 = vmatpush.bf16.msra.mxu0 %v1249
      %1904 = vmatpush.bf16.msra.mxu0 %v1241
      %1905 = vmatpush.bf16.msra.mxu0 %v1233
      %1906 = vmatmul.bf16.gmra.mxu0 %v454
      %v1907 = vpop.f32.mrf.mxu0
      %v1908 = vadd.f32 0.0, %v1907
      %v1909 = vpop.f32.mrf.mxu0
      %1910 = vdwg.mxu0
      %1911 = vmatpush.bf16.msra.mxu0 %v1353
      %1912 = vmatpush.bf16.msra.mxu0 %v1345
      %1913 = vmatpush.bf16.msra.mxu0 %v1337
      %1914 = vmatpush.bf16.msra.mxu0 %v1329
      %1915 = vmatpush.bf16.msra.mxu0 %v1321
      %1916 = vmatpush.bf16.msra.mxu0 %v1313
      %1917 = vmatpush.bf16.msra.mxu0 %v1305
      %1918 = vmatpush.bf16.msra.mxu0 %v1297
      %1919 = vmatmul.bf16.gmra.mxu0 %v455
      %v1920 = vpop.f32.mrf.mxu0
      %v1921 = vadd.f32 %v1908, %v1920
      %v1922 = vpop.f32.mrf.mxu0
      %1923 = vdwg.mxu0
      %1924 = vmatpush.bf16.msra.mxu0 %v1417
      %1925 = vmatpush.bf16.msra.mxu0 %v1409
      %1926 = vmatpush.bf16.msra.mxu0 %v1401
      %1927 = vmatpush.bf16.msra.mxu0 %v1393
      %1928 = vmatpush.bf16.msra.mxu0 %v1385
      %1929 = vmatpush.bf16.msra.mxu0 %v1377
      %1930 = vmatpush.bf16.msra.mxu0 %v1369
      %1931 = vmatpush.bf16.msra.mxu0 %v1361
      %1932 = vmatmul.bf16.gmra.mxu0 %v456
      %v1933 = vpop.f32.mrf.mxu0
      %v1934 = vadd.f32 %v1921, %v1933
      %v1935 = vpop.f32.mrf.mxu0
      %1936 = vdwg.mxu0
      %1937 = vmatpush.bf16.msra.mxu0 %v1481
      %1938 = vmatpush.bf16.msra.mxu0 %v1473
      %1939 = vmatpush.bf16.msra.mxu0 %v1465
      %1940 = vmatpush.bf16.msra.mxu0 %v1457
      %1941 = vmatpush.bf16.msra.mxu0 %v1449
      %1942 = vmatpush.bf16.msra.mxu0 %v1441
      %1943 = vmatpush.bf16.msra.mxu0 %v1433
      %1944 = vmatpush.bf16.msra.mxu0 %v1425
      %1945 = vmatmul.bf16.gmra.mxu0 %v457
      %v1946 = vpop.f32.mrf.mxu0
      %v1947 = vadd.f32 %v1934, %v1946
      %v1948 = vpop.f32.mrf.mxu0
      %1949 = vdwg.mxu0
      %1950 = vmatpush.bf16.msra.mxu0 %v1290
      %1951 = vmatpush.bf16.msra.mxu0 %v1282
      %1952 = vmatpush.bf16.msra.mxu0 %v1274
      %1953 = vmatpush.bf16.msra.mxu0 %v1266
      %1954 = vmatpush.bf16.msra.mxu0 %v1258
      %1955 = vmatpush.bf16.msra.mxu0 %v1250
      %1956 = vmatpush.bf16.msra.mxu0 %v1242
      %1957 = vmatpush.bf16.msra.mxu0 %v1234
      %1958 = vmatmul.bf16.gmra.mxu0 %v454
      %v1959 = vpop.f32.mrf.mxu0
      %v1960 = vadd.f32 0.0, %v1959
      %v1961 = vpop.f32.mrf.mxu0
      %1962 = vdwg.mxu0
      %1963 = vmatpush.bf16.msra.mxu0 %v1354
      %1964 = vmatpush.bf16.msra.mxu0 %v1346
      %1965 = vmatpush.bf16.msra.mxu0 %v1338
      %1966 = vmatpush.bf16.msra.mxu0 %v1330
      %1967 = vmatpush.bf16.msra.mxu0 %v1322
      %1968 = vmatpush.bf16.msra.mxu0 %v1314
      %1969 = vmatpush.bf16.msra.mxu0 %v1306
      %1970 = vmatpush.bf16.msra.mxu0 %v1298
      %1971 = vmatmul.bf16.gmra.mxu0 %v455
      %v1972 = vpop.f32.mrf.mxu0
      %v1973 = vadd.f32 %v1960, %v1972
      %v1974 = vpop.f32.mrf.mxu0
      %1975 = vdwg.mxu0
      %1976 = vmatpush.bf16.msra.mxu0 %v1418
      %1977 = vmatpush.bf16.msra.mxu0 %v1410
      %1978 = vmatpush.bf16.msra.mxu0 %v1402
      %1979 = vmatpush.bf16.msra.mxu0 %v1394
      %1980 = vmatpush.bf16.msra.mxu0 %v1386
      %1981 = vmatpush.bf16.msra.mxu0 %v1378
      %1982 = vmatpush.bf16.msra.mxu0 %v1370
      %1983 = vmatpush.bf16.msra.mxu0 %v1362
      %1984 = vmatmul.bf16.gmra.mxu0 %v456
      %v1985 = vpop.f32.mrf.mxu0
      %v1986 = vadd.f32 %v1973, %v1985
      %v1987 = vpop.f32.mrf.mxu0
      %1988 = vdwg.mxu0
      %1989 = vmatpush.bf16.msra.mxu0 %v1482
      %1990 = vmatpush.bf16.msra.mxu0 %v1474
      %1991 = vmatpush.bf16.msra.mxu0 %v1466
      %1992 = vmatpush.bf16.msra.mxu0 %v1458
      %1993 = vmatpush.bf16.msra.mxu0 %v1450
      %1994 = vmatpush.bf16.msra.mxu0 %v1442
      %1995 = vmatpush.bf16.msra.mxu0 %v1434
      %1996 = vmatpush.bf16.msra.mxu0 %v1426
      %1997 = vmatmul.bf16.gmra.mxu0 %v457
      %v1998 = vpop.f32.mrf.mxu0
      %v1999 = vadd.f32 %v1986, %v1998
      %v2000 = vpop.f32.mrf.mxu0
      %2001 = vdwg.mxu0
      %2002 = vmatpush.bf16.msra.mxu0 %v1291
      %2003 = vmatpush.bf16.msra.mxu0 %v1283
      %2004 = vmatpush.bf16.msra.mxu0 %v1275
      %2005 = vmatpush.bf16.msra.mxu0 %v1267
      %2006 = vmatpush.bf16.msra.mxu0 %v1259
      %2007 = vmatpush.bf16.msra.mxu0 %v1251
      %2008 = vmatpush.bf16.msra.mxu0 %v1243
      %2009 = vmatpush.bf16.msra.mxu0 %v1235
      %2010 = vmatmul.bf16.gmra.mxu0 %v454
      %v2011 = vpop.f32.mrf.mxu0
      %v2012 = vadd.f32 0.0, %v2011
      %v2013 = vpop.f32.mrf.mxu0
      %2014 = vdwg.mxu0
      %2015 = vmatpush.bf16.msra.mxu0 %v1355
      %2016 = vmatpush.bf16.msra.mxu0 %v1347
      %2017 = vmatpush.bf16.msra.mxu0 %v1339
      %2018 = vmatpush.bf16.msra.mxu0 %v1331
      %2019 = vmatpush.bf16.msra.mxu0 %v1323
      %2020 = vmatpush.bf16.msra.mxu0 %v1315
      %2021 = vmatpush.bf16.msra.mxu0 %v1307
      %2022 = vmatpush.bf16.msra.mxu0 %v1299
      %2023 = vmatmul.bf16.gmra.mxu0 %v455
      %v2024 = vpop.f32.mrf.mxu0
      %v2025 = vadd.f32 %v2012, %v2024
      %v2026 = vpop.f32.mrf.mxu0
      %2027 = vdwg.mxu0
      %2028 = vmatpush.bf16.msra.mxu0 %v1419
      %2029 = vmatpush.bf16.msra.mxu0 %v1411
      %2030 = vmatpush.bf16.msra.mxu0 %v1403
      %2031 = vmatpush.bf16.msra.mxu0 %v1395
      %2032 = vmatpush.bf16.msra.mxu0 %v1387
      %2033 = vmatpush.bf16.msra.mxu0 %v1379
      %2034 = vmatpush.bf16.msra.mxu0 %v1371
      %2035 = vmatpush.bf16.msra.mxu0 %v1363
      %2036 = vmatmul.bf16.gmra.mxu0 %v456
      %v2037 = vpop.f32.mrf.mxu0
      %v2038 = vadd.f32 %v2025, %v2037
      %v2039 = vpop.f32.mrf.mxu0
      %2040 = vdwg.mxu0
      %2041 = vmatpush.bf16.msra.mxu0 %v1483
      %2042 = vmatpush.bf16.msra.mxu0 %v1475
      %2043 = vmatpush.bf16.msra.mxu0 %v1467
      %2044 = vmatpush.bf16.msra.mxu0 %v1459
      %2045 = vmatpush.bf16.msra.mxu0 %v1451
      %2046 = vmatpush.bf16.msra.mxu0 %v1443
      %2047 = vmatpush.bf16.msra.mxu0 %v1435
      %2048 = vmatpush.bf16.msra.mxu0 %v1427
      %2049 = vmatmul.bf16.gmra.mxu0 %v457
      %v2050 = vpop.f32.mrf.mxu0
      %v2051 = vadd.f32 %v2038, %v2050
      %v2052 = vpop.f32.mrf.mxu0
      %2053 = vdwg.mxu0
      %2054 = vmatpush.bf16.msra.mxu0 %v1292
      %2055 = vmatpush.bf16.msra.mxu0 %v1284
      %2056 = vmatpush.bf16.msra.mxu0 %v1276
      %2057 = vmatpush.bf16.msra.mxu0 %v1268
      %2058 = vmatpush.bf16.msra.mxu0 %v1260
      %2059 = vmatpush.bf16.msra.mxu0 %v1252
      %2060 = vmatpush.bf16.msra.mxu0 %v1244
      %2061 = vmatpush.bf16.msra.mxu0 %v1236
      %2062 = vmatmul.bf16.gmra.mxu0 %v454
      %v2063 = vpop.f32.mrf.mxu0
      %v2064 = vadd.f32 0.0, %v2063
      %v2065 = vpop.f32.mrf.mxu0
      %2066 = vdwg.mxu0
      %2067 = vmatpush.bf16.msra.mxu0 %v1356
      %2068 = vmatpush.bf16.msra.mxu0 %v1348
      %2069 = vmatpush.bf16.msra.mxu0 %v1340
      %2070 = vmatpush.bf16.msra.mxu0 %v1332
      %2071 = vmatpush.bf16.msra.mxu0 %v1324
      %2072 = vmatpush.bf16.msra.mxu0 %v1316
      %2073 = vmatpush.bf16.msra.mxu0 %v1308
      %2074 = vmatpush.bf16.msra.mxu0 %v1300
      %2075 = vmatmul.bf16.gmra.mxu0 %v455
      %v2076 = vpop.f32.mrf.mxu0
      %v2077 = vadd.f32 %v2064, %v2076
      %v2078 = vpop.f32.mrf.mxu0
      %2079 = vdwg.mxu0
      %2080 = vmatpush.bf16.msra.mxu0 %v1420
      %2081 = vmatpush.bf16.msra.mxu0 %v1412
      %2082 = vmatpush.bf16.msra.mxu0 %v1404
      %2083 = vmatpush.bf16.msra.mxu0 %v1396
      %2084 = vmatpush.bf16.msra.mxu0 %v1388
      %2085 = vmatpush.bf16.msra.mxu0 %v1380
      %2086 = vmatpush.bf16.msra.mxu0 %v1372
      %2087 = vmatpush.bf16.msra.mxu0 %v1364
      %2088 = vmatmul.bf16.gmra.mxu0 %v456
      %v2089 = vpop.f32.mrf.mxu0
      %v2090 = vadd.f32 %v2077, %v2089
      %v2091 = vpop.f32.mrf.mxu0
      %2092 = vdwg.mxu0
      %2093 = vmatpush.bf16.msra.mxu0 %v1484
      %2094 = vmatpush.bf16.msra.mxu0 %v1476
      %2095 = vmatpush.bf16.msra.mxu0 %v1468
      %2096 = vmatpush.bf16.msra.mxu0 %v1460
      %2097 = vmatpush.bf16.msra.mxu0 %v1452
      %2098 = vmatpush.bf16.msra.mxu0 %v1444
      %2099 = vmatpush.bf16.msra.mxu0 %v1436
      %2100 = vmatpush.bf16.msra.mxu0 %v1428
      %2101 = vmatmul.bf16.gmra.mxu0 %v457
      %v2102 = vpop.f32.mrf.mxu0
      %v2103 = vadd.f32 %v2090, %v2102
      %v2104 = vpop.f32.mrf.mxu0
      %2105 = vdwg.mxu0
      %2106 = vmatpush.bf16.msra.mxu0 %v1293
      %2107 = vmatpush.bf16.msra.mxu0 %v1285
      %2108 = vmatpush.bf16.msra.mxu0 %v1277
      %2109 = vmatpush.bf16.msra.mxu0 %v1269
      %2110 = vmatpush.bf16.msra.mxu0 %v1261
      %2111 = vmatpush.bf16.msra.mxu0 %v1253
      %2112 = vmatpush.bf16.msra.mxu0 %v1245
      %2113 = vmatpush.bf16.msra.mxu0 %v1237
      %2114 = vmatmul.bf16.gmra.mxu0 %v454
      %v2115 = vpop.f32.mrf.mxu0
      %v2116 = vadd.f32 0.0, %v2115
      %v2117 = vpop.f32.mrf.mxu0
      %2118 = vdwg.mxu0
      %2119 = vmatpush.bf16.msra.mxu0 %v1357
      %2120 = vmatpush.bf16.msra.mxu0 %v1349
      %2121 = vmatpush.bf16.msra.mxu0 %v1341
      %2122 = vmatpush.bf16.msra.mxu0 %v1333
      %2123 = vmatpush.bf16.msra.mxu0 %v1325
      %2124 = vmatpush.bf16.msra.mxu0 %v1317
      %2125 = vmatpush.bf16.msra.mxu0 %v1309
      %2126 = vmatpush.bf16.msra.mxu0 %v1301
      %2127 = vmatmul.bf16.gmra.mxu0 %v455
      %v2128 = vpop.f32.mrf.mxu0
      %v2129 = vadd.f32 %v2116, %v2128
      %v2130 = vpop.f32.mrf.mxu0
      %2131 = vdwg.mxu0
      %2132 = vmatpush.bf16.msra.mxu0 %v1421
      %2133 = vmatpush.bf16.msra.mxu0 %v1413
      %2134 = vmatpush.bf16.msra.mxu0 %v1405
      %2135 = vmatpush.bf16.msra.mxu0 %v1397
      %2136 = vmatpush.bf16.msra.mxu0 %v1389
      %2137 = vmatpush.bf16.msra.mxu0 %v1381
      %2138 = vmatpush.bf16.msra.mxu0 %v1373
      %2139 = vmatpush.bf16.msra.mxu0 %v1365
      %2140 = vmatmul.bf16.gmra.mxu0 %v456
      %v2141 = vpop.f32.mrf.mxu0
      %v2142 = vadd.f32 %v2129, %v2141
      %v2143 = vpop.f32.mrf.mxu0
      %2144 = vdwg.mxu0
      %2145 = vmatpush.bf16.msra.mxu0 %v1485
      %2146 = vmatpush.bf16.msra.mxu0 %v1477
      %2147 = vmatpush.bf16.msra.mxu0 %v1469
      %2148 = vmatpush.bf16.msra.mxu0 %v1461
      %2149 = vmatpush.bf16.msra.mxu0 %v1453
      %2150 = vmatpush.bf16.msra.mxu0 %v1445
      %2151 = vmatpush.bf16.msra.mxu0 %v1437
      %2152 = vmatpush.bf16.msra.mxu0 %v1429
      %2153 = vmatmul.bf16.gmra.mxu0 %v457
      %v2154 = vpop.f32.mrf.mxu0
      %v2155 = vadd.f32 %v2142, %v2154
      %v2156 = vpop.f32.mrf.mxu0
      %2157 = vdwg.mxu0
      %v2166 = vrot.slane %v1843, 6
      %v2167 = vrot.slane %v1895, 4
      %v2168 = vrot.slane %v1947, 2
      %v2169 = vrot.slane %v2051, 6
      %v2170 = vrot.slane %v2103, 4
      %v2171 = vrot.slane %v2155, 2
      %vm2172 = vcmask 1041408
      %v2173 = vsel %vm2172, %v1791, %v2166
      %vm2174 = vcmask 1045508
      %v2175 = vsel %vm2174, %v2167, %v2168
      %vm2176 = vcmask 1043456
      %v2177 = vsel %vm2176, %v2173, %v2175
      %v2178 = vsel %vm2172, %v1999, %v2169
      %v2179 = vsel %vm2174, %v2170, %v2171
      %v2180 = vsel %vm2176, %v2178, %v2179
      %v2183 = vadd.f32 %v193, %v2177
      %v2184 = vadd.f32 %v194, %v2180
      %2185 = vst [vmem:[#allocation2] sm:$0xff] %v2183
      %vm2186 = vcmask 1043458
      %vm2187 = vmor %vm2186, %vm2172
      %vm2188 = vmor %vm2174, %vm2187
      %vm2189 = vcmask 850950
      %vm2190 = vmor %vm2189, %vm2188
      %2191 = vst.msk [vmem:[#allocation2 + $0x8] sm:$0xff] %vm2190, %v2184
      %p2192 = scmp.eq.s32.totalorder %s14, 1
      // Predicated region
      $region37: #{forward.9} parent=31 // pred_check
        %p2193 = pneg %p2192
      $region38: #{forward.9} parent=31 // pred_check_branch
        %2195 = sbr.rel (%p2193) target = $region40
      $region39: #{forward.9} parent=31 // pred_region
        %v2196 = vld [vmem:[#allocation2] sm:$0xff]
        %v2197 = vld [vmem:[#allocation2 + $0x8] sm:$0xff]
        %v2198 = vld [vmem:[%s2] sm:$0xff]
        %v2200 = vperm.slane %v2198, 0
        %v2201 = vperm.slane %v2198, 1
        %v2202 = vperm.slane %v2198, 2
        %v2203 = vperm.slane %v2198, 3
        %v2204 = vperm.slane %v2198, 4
        %v2205 = vperm.slane %v2198, 5
        %v2206 = vperm.slane %v2198, 6
        %v2207 = vperm.slane %v2198, 7
        %v2208 = vrot.slane %v2201, 6
        %v2209 = vrot.slane %v2202, 4
        %v2210 = vrot.slane %v2203, 2
        %v2211 = vrot.slane %v2205, 6
        %v2212 = vrot.slane %v2206, 4
        %v2213 = vrot.slane %v2207, 2
        %v2214 = vsel %vm2172, %v2200, %v2208
        %v2215 = vsel %vm2174, %v2209, %v2210
        %v2216 = vsel %vm2176, %v2214, %v2215
        %v2217 = vsel %vm2172, %v2204, %v2211
        %v2218 = vsel %vm2174, %v2212, %v2213
        %v2219 = vsel %vm2176, %v2217, %v2218
        %v2222 = vadd.f32 %v2196, %v2216
        %v2223 = vadd.f32 %v2197, %v2219
        %v2224 = vmax.f32 %v2222, 0.0
        %v2225 = vmax.f32 %v2223, 0.0
        %2226 = vst [vmem:[%s3] sm:$0xff] %v2224
        %2227 = vst.msk [vmem:[%s3 + $0x8] sm:$0xff] %vm2190, %v2225
      $region40: #{forward.9} parent=31 // pred_fallthru
        _
      // Predicated region
      $region41: #{forward.9} parent=31 // pred_check
        %p2228 = pneg %p100
      $region42: #{forward.9} parent=31 // pred_check_branch
        %2230 = sbr.rel (%p2228) target = $region44
      $region43: #{forward.9} parent=31 // pred_region
        _
      $region44: #{forward.9} parent=31 // pred_fallthru
        _
      // Predicated region
      $region45: #{forward.9} parent=31 // pred_check
        %p2231 = pneg %p100
      $region46: #{forward.9} parent=31 // pred_check_branch
        %2233 = sbr.rel (%p2231) target = $region48
      $region47: #{forward.9} parent=31 // pred_region
        _
      $region48: #{forward.9} parent=31 // pred_fallthru
        _
    $region32: #{forward.9} parent=5 // pred_fallthru
      _
    %p2234 = scmp.le.s32.totalorder 2, %s9
    // Predicated region
    $region49: #{forward.9} parent=5 // pred_check
      %p2235 = pneg %p2234
    $region50: #{forward.9} parent=5 // pred_check_branch
      %2237 = sbr.rel (%p2235) target = $region52
    $region51: #{forward.9} parent=5 // pred_region
      %s2238 = ssub.s32 %s9, 2
    $region52: #{forward.9} parent=5 // pred_fallthru
      _
  $region6: #{forward.9} parent=0 // loop_footer
    %s13 = sadd.s32 1, %s9
  $region7: #{forward.9} parent=0 // loop_footer_branch
    %8 = sbr.rel target = $region3
  $region8: #{forward.9} parent=0 // loop_exit
    _

// kernel: forward.10
$region0: #{forward.10}
  #allocation0 [shape = 'u32[]', space=smem, size = 0x4, offset = 0x4, fixed_abs, tag = 'smem constant byte address 0x4 - core index']
  #allocation1 [shape = 'u32[72,128]{1,0:T(1,128)}', space=vmem, size = 0x9000, scoped, tag = 'internal scratch']
  #allocation2 [shape = 'f32[2,512]{1,0:T(2,128)}', space=vmem, size = 0x1000, scoped, tag = 'scratch operand']
  %s0 = inlined_call_operand.vmem [shape: bf16[2,1024], index: 0, kind: input, shape index: {}]
  %s1 = inlined_call_operand.vmem [shape: bf16[1024,512], index: 1, kind: input, shape index: {}]
  %s2 = inlined_call_operand.vmem [shape: f32[1,512], index: 2, kind: input, shape index: {}]
  %s3 = inlined_call_operand.vmem [shape: f32[2,512], index: 3, kind: output, shape index: {}]
  %s4 = sld [smem:[#allocation0]]
  $region53: #{forward.10} parent=0
    _
  %s6 = ssub.s32 1, %s4
  %s7 = scalar_select 0, %s6, %s4
  loop: start=0, step=1, limit=4
  $region2: #{forward.10} parent=0 // loop_pre_header
    _
  $region3: #{forward.10} parent=0 // loop_header
    %s9 = sphi 0, %s13
    %p10 = scmp.ge.s32.totalorder %s9, 4
    %s19 = sphi 0, %s21
    %s22 = sphi 0, %s19
    %s23 = sphi 0, %s22
    %s39 = sphi 0, %s23
    %s45 = sphi 0, %s47
    %s48 = sphi 0, %s45
    %s49 = sphi 0, %s48
    %s65 = sphi 0, %s49
    %s69 = sphi 0, %s69
    %s71 = sphi 0, %s69
    %s72 = sphi 0, %s71
    %s86 = sphi 0, %s72
    %s90 = sphi 0, %s90
    %s92 = sphi 0, %s90
    %s93 = sphi 0, %s92
    %s107 = sphi 0, %s93
  $region4: #{forward.10} parent=0 // loop_header_branch
    %12 = sbr.rel (%p10) target = $region8
  $region5: #{forward.10} parent=0 // loop_body
    %s14 = ssub.s32 %s9, 1
    %s15 = ssub.s32 %s9, 2
    %s16 = sadd.s32 %s9, 1
    %s17 = ssub.s32 %s9, %s16
    %p18 = scmp.eq.s32.totalorder %s17, 0
    %s20 = sadd.s32 %s19, 1
    %s21 = scalar_select %p18, %s19, %s20
    %p24 = pneg %p18
    %p25 = scmp.eq.s32.totalorder %s9, 1
    %p26 = por %p24, %p25
    %p27 = scmp.ne.s32.totalorder %s19, %s22
    %p28 = scmp.eq.s32.totalorder %s9, 0
    %p29 = por %p27, %p28
    %p30 = scmp.ne.s32.totalorder %s19, %s22
    %p31 = scmp.eq.s32.totalorder %s14, 1
    %p32 = por %p30, %p31
    %p33 = scmp.ne.s32.totalorder %s22, %s23
    %p34 = scmp.eq.s32.totalorder %s14, 0
    %p35 = por %p33, %p34
    %p36 = scmp.ne.s32.totalorder %s22, %s23
    %p37 = scmp.eq.s32.totalorder %s15, 1
    %p38 = por %p36, %p37
    %p40 = scmp.ne.s32.totalorder %s23, %s39
    %p41 = scmp.eq.s32.totalorder %s15, 0
    %p42 = por %p40, %p41
    %s43 = ssub.s32 %s9, %s16
    %p44 = scmp.eq.s32.totalorder %s43, 0
    %s46 = sadd.s32 %s45, 1
    %s47 = scalar_select %p44, %s45, %s46
    %p50 = pneg %p44
    %p51 = scmp.eq.s32.totalorder %s9, 1
    %p52 = por %p50, %p51
    %p53 = scmp.ne.s32.totalorder %s45, %s48
    %p54 = scmp.eq.s32.totalorder %s9, 0
    %p55 = por %p53, %p54
    %p56 = scmp.ne.s32.totalorder %s45, %s48
    %p57 = scmp.eq.s32.totalorder %s14, 1
    %p58 = por %p56, %p57
    %p59 = scmp.ne.s32.totalorder %s48, %s49
    %p60 = scmp.eq.s32.totalorder %s14, 0
    %p61 = por %p59, %p60
    %p62 = scmp.ne.s32.totalorder %s48, %s49
    %p63 = scmp.eq.s32.totalorder %s15, 1
    %p64 = por %p62, %p63
    %p66 = scmp.ne.s32.totalorder %s49, %s65
    %p67 = scmp.eq.s32.totalorder %s15, 0
    %p68 = por %p66, %p67
    %s70 = sadd.s32 %s69, 1
    %p73 = scmp.eq.s32.totalorder %s9, 1
    %p74 = scmp.ne.s32.totalorder %s69, %s71
    %p75 = scmp.eq.s32.totalorder %s9, 0
    %p76 = por %p74, %p75
    %p77 = scmp.ne.s32.totalorder %s69, %s71
    %p78 = scmp.eq.s32.totalorder %s14, 1
    %p79 = por %p77, %p78
    %p80 = scmp.ne.s32.totalorder %s71, %s72
    %p81 = scmp.eq.s32.totalorder %s14, 0
    %p82 = por %p80, %p81
    %p83 = scmp.ne.s32.totalorder %s71, %s72
    %p84 = scmp.eq.s32.totalorder %s15, 1
    %p85 = por %p83, %p84
    %p87 = scmp.ne.s32.totalorder %s72, %s86
    %p88 = scmp.eq.s32.totalorder %s15, 0
    %p89 = por %p87, %p88
    %s91 = sadd.s32 %s90, 1
    %p94 = scmp.eq.s32.totalorder %s9, 1
    %p95 = scmp.ne.s32.totalorder %s90, %s92
    %p96 = scmp.eq.s32.totalorder %s9, 0
    %p97 = por %p95, %p96
    %p98 = scmp.ne.s32.totalorder %s90, %s92
    %p99 = scmp.eq.s32.totalorder %s14, 1
    %p100 = por %p98, %p99
    %p101 = scmp.ne.s32.totalorder %s92, %s93
    %p102 = scmp.eq.s32.totalorder %s14, 0
    %p103 = por %p101, %p102
    %p104 = scmp.ne.s32.totalorder %s92, %s93
    %p105 = scmp.eq.s32.totalorder %s15, 1
    %p106 = por %p104, %p105
    %p108 = scmp.ne.s32.totalorder %s93, %s107
    %p109 = scmp.eq.s32.totalorder %s15, 0
    %p110 = por %p108, %p109
    %p111 = scmp.le.s32.totalorder 1, %s9
    %p112 = scmp.lt.s32.totalorder %s9, 3
    %p113 = pnand %p111, %p112
    %p114 = pneg %p113
    // Predicated region
    $region9: #{forward.10} parent=5 // pred_check
      _
    $region10: #{forward.10} parent=5 // pred_check_branch
      %116 = sbr.rel (%p113) target = $region12
    $region11: #{forward.10} parent=5 // pred_region
      %s117 = ssub.s32 %s9, 1
      // Predicated region
      $region13: #{forward.10} parent=11 // pred_check
        %p118 = pneg %p82
      $region14: #{forward.10} parent=11 // pred_check_branch
        %120 = sbr.rel (%p118) target = $region16
      $region15: #{forward.10} parent=11 // pred_region
        _
      $region16: #{forward.10} parent=11 // pred_fallthru
        _
    $region12: #{forward.10} parent=5 // pred_fallthru
      _
    %p121 = scmp.lt.s32.totalorder %s9, 2
    // Predicated region
    $region17: #{forward.10} parent=5 // pred_check
      %p122 = pneg %p121
    $region18: #{forward.10} parent=5 // pred_check_branch
      %124 = sbr.rel (%p122) target = $region20
    $region19: #{forward.10} parent=5 // pred_region
      // Predicated region
      $region21: #{forward.10} parent=19 // pred_check
        %p125 = pneg %p29
      $region22: #{forward.10} parent=19 // pred_check_branch
        %127 = sbr.rel (%p125) target = $region24
      $region23: #{forward.10} parent=19 // pred_region
        %s128 = smul.u32 4, %s9
        %p129 = scmp.lt.s32.totalorder %s128, 7
        %s130 = scalar_select %p129, %s128, 7
        %s131 = scalar_lea.vmem %s0, %s130
        %s132 = smul.u32 4, %s9
      $region24: #{forward.10} parent=19 // pred_fallthru
        _
      // Predicated region
      $region25: #{forward.10} parent=19 // pred_check
        %p133 = pneg %p55
      $region26: #{forward.10} parent=19 // pred_check_branch
        %135 = sbr.rel (%p133) target = $region28
      $region27: #{forward.10} parent=19 // pred_region
        %s136 = smul.u32 64, %s9
        %p137 = scmp.lt.s32.totalorder %s136, 127
        %s138 = scalar_select %p137, %s136, 127
        %s139 = smul.addr %s138, 4
        %s140 = smul.addr %s139, 4
        %s141 = scalar_lea.vmem %s1, %s140
        %s142 = smul.u32 64, %s9
      $region28: #{forward.10} parent=19 // pred_fallthru
        _
    $region20: #{forward.10} parent=5 // pred_fallthru
      _
    %p143 = scmp.le.s32.totalorder 1, %s9
    %p144 = scmp.lt.s32.totalorder %s9, 3
    %p145 = pnand %p143, %p144
    %p146 = pneg %p145
    // Predicated region
    $region29: #{forward.10} parent=5 // pred_check
      _
    $region30: #{forward.10} parent=5 // pred_check_branch
      %148 = sbr.rel (%p145) target = $region32
    $region31: #{forward.10} parent=5 // pred_region
      %s149 = ssub.s32 %s9, 1
      %s150 = smul.u32 4, %s14
      %p151 = scmp.lt.s32.totalorder %s150, 7
      %s152 = scalar_select %p151, %s150, 7
      %s153 = scalar_lea.vmem %s0, %s152
      %p154 = pneg %p35
      %p155 = pneg %p32
      %s156 = smul.u32 64, %s14
      %p157 = scmp.lt.s32.totalorder %s156, 127
      %s158 = scalar_select %p157, %s156, 127
      %s159 = smul.addr %s158, 4
      %s160 = smul.addr %s159, 4
      %s161 = scalar_lea.vmem %s1, %s160
      %p162 = pneg %p61
      %p163 = pneg %p58
      %p164 = pneg %p82
      %p165 = pneg %p79
      %p166 = pneg %p103
      %p167 = pneg %p100
      %s168 = smul.u32 4, %s14
      %p169 = scmp.lt.s32.totalorder %s168, 7
      %s170 = scalar_select %p169, %s168, 7
      %s171 = scalar_lea.vmem %s0, %s170
      %s172 = smul.u32 4, %s14
      %s173 = smul.u32 64, %s14
      %p174 = scmp.lt.s32.totalorder %s173, 127
      %s175 = scalar_select %p174, %s173, 127
      %s176 = smul.addr %s175, 4
      %s177 = smul.addr %s176, 4
      %s178 = scalar_lea.vmem %s1, %s177
      %s179 = smul.u32 64, %s14
      %p180 = scmp.eq.s32.totalorder %s14, 0
      // Predicated region
      $region33: #{forward.10} parent=31 // pred_check
        %p181 = pneg %p180
      $region34: #{forward.10} parent=31 // pred_check_branch
        %183 = sbr.rel (%p181) target = $region36
      $region35: #{forward.10} parent=31 // pred_region
        %184 = vst [vmem:[#allocation2] sm:$0xff] 0.0
      $region36: #{forward.10} parent=31 // pred_fallthru
        _
      %v185 = vld [vmem:[#allocation2] sm:$0xff]
      %v186 = vld [vmem:[%s171] sm:$0xf]
      %v187 = vld [vmem:[%s178] sm:$0xff]
      %v188 = vld [vmem:[%s178 + $0x8] sm:$0xff]
      %v189 = vld [vmem:[%s178 + $0x10] sm:$0xff]
      %v190 = vld [vmem:[%s178 + $0x18] sm:$0xff]
      %v191 = vld [vmem:[%s178 + $0x20] sm:$0xff]
      %v192 = vld [vmem:[%s178 + $0x28] sm:$0xff]
      %v193 = vld [vmem:[%s178 + $0x30] sm:$0xff]
      %v194 = vld [vmem:[%s178 + $0x38] sm:$0xff]
      %v195 = vld [vmem:[%s178 + $0x40] sm:$0xff]
      %v196 = vld [vmem:[%s178 + $0x48] sm:$0xff]
      %v197 = vld [vmem:[%s178 + $0x50] sm:$0xff]
      %v198 = vld [vmem:[%s178 + $0x58] sm:$0xff]
      %v199 = vld [vmem:[%s178 + $0x60] sm:$0xff]
      %v200 = vld [vmem:[%s178 + $0x68] sm:$0xff]
      %v201 = vld [vmem:[%s178 + $0x70] sm:$0xff]
      %v202 = vld [vmem:[%s178 + $0x78] sm:$0xff]
      %v203 = vld [vmem:[%s178 + $0x80] sm:$0xff]
      %v204 = vld [vmem:[%s178 + $0x88] sm:$0xff]
      %v205 = vld [vmem:[%s178 + $0x90] sm:$0xff]
      %v206 = vld [vmem:[%s178 + $0x98] sm:$0xff]
      %v207 = vld [vmem:[%s178 + $0xa0] sm:$0xff]
      %v208 = vld [vmem:[%s178 + $0xa8] sm:$0xff]
      %v209 = vld [vmem:[%s178 + $0xb0] sm:$0xff]
      %v210 = vld [vmem:[%s178 + $0xb8] sm:$0xff]
      %v211 = vld [vmem:[%s178 + $0xc0] sm:$0xff]
      %v212 = vld [vmem:[%s178 + $0xc8] sm:$0xff]
      %v213 = vld [vmem:[%s178 + $0xd0] sm:$0xff]
      %v214 = vld [vmem:[%s178 + $0xd8] sm:$0xff]
      %v215 = vld [vmem:[%s178 + $0xe0] sm:$0xff]
      %v216 = vld [vmem:[%s178 + $0xe8] sm:$0xff]
      %v217 = vld [vmem:[%s178 + $0xf0] sm:$0xff]
      %v218 = vld [vmem:[%s178 + $0xf8] sm:$0xff]
      %v219 = vld [vmem:[%s178 + $0x100] sm:$0xff]
      %v220 = vld [vmem:[%s178 + $0x108] sm:$0xff]
      %v221 = vld [vmem:[%s178 + $0x110] sm:$0xff]
      %v222 = vld [vmem:[%s178 + $0x118] sm:$0xff]
      %v223 = vld [vmem:[%s178 + $0x120] sm:$0xff]
      %v224 = vld [vmem:[%s178 + $0x128] sm:$0xff]
      %v225 = vld [vmem:[%s178 + $0x130] sm:$0xff]
      %v226 = vld [vmem:[%s178 + $0x138] sm:$0xff]
      %v227 = vld [vmem:[%s178 + $0x140] sm:$0xff]
      %v228 = vld [vmem:[%s178 + $0x148] sm:$0xff]
      %v229 = vld [vmem:[%s178 + $0x150] sm:$0xff]
      %v230 = vld [vmem:[%s178 + $0x158] sm:$0xff]
      %v231 = vld [vmem:[%s178 + $0x160] sm:$0xff]
      %v232 = vld [vmem:[%s178 + $0x168] sm:$0xff]
      %v233 = vld [vmem:[%s178 + $0x170] sm:$0xff]
      %v234 = vld [vmem:[%s178 + $0x178] sm:$0xff]
      %v235 = vld [vmem:[%s178 + $0x180] sm:$0xff]
      %v236 = vld [vmem:[%s178 + $0x188] sm:$0xff]
      %v237 = vld [vmem:[%s178 + $0x190] sm:$0xff]
      %v238 = vld [vmem:[%s178 + $0x198] sm:$0xff]
      %v239 = vld [vmem:[%s178 + $0x1a0] sm:$0xff]
      %v240 = vld [vmem:[%s178 + $0x1a8] sm:$0xff]
      %v241 = vld [vmem:[%s178 + $0x1b0] sm:$0xff]
      %v242 = vld [vmem:[%s178 + $0x1b8] sm:$0xff]
      %v243 = vld [vmem:[%s178 + $0x1c0] sm:$0xff]
      %v244 = vld [vmem:[%s178 + $0x1c8] sm:$0xff]
      %v245 = vld [vmem:[%s178 + $0x1d0] sm:$0xff]
      %v246 = vld [vmem:[%s178 + $0x1d8] sm:$0xff]
      %v247 = vld [vmem:[%s178 + $0x1e0] sm:$0xff]
      %v248 = vld [vmem:[%s178 + $0x1e8] sm:$0xff]
      %v249 = vld [vmem:[%s178 + $0x1f0] sm:$0xff]
      %v250 = vld [vmem:[%s178 + $0x1f8] sm:$0xff]
      %v251 = vld [vmem:[%s178 + $0x200] sm:$0xff]
      %v252 = vld [vmem:[%s178 + $0x208] sm:$0xff]
      %v253 = vld [vmem:[%s178 + $0x210] sm:$0xff]
      %v254 = vld [vmem:[%s178 + $0x218] sm:$0xff]
      %v255 = vld [vmem:[%s178 + $0x220] sm:$0xff]
      %v256 = vld [vmem:[%s178 + $0x228] sm:$0xff]
      %v257 = vld [vmem:[%s178 + $0x230] sm:$0xff]
      %v258 = vld [vmem:[%s178 + $0x238] sm:$0xff]
      %v259 = vld [vmem:[%s178 + $0x240] sm:$0xff]
      %v260 = vld [vmem:[%s178 + $0x248] sm:$0xff]
      %v261 = vld [vmem:[%s178 + $0x250] sm:$0xff]
      %v262 = vld [vmem:[%s178 + $0x258] sm:$0xff]
      %v263 = vld [vmem:[%s178 + $0x260] sm:$0xff]
      %v264 = vld [vmem:[%s178 + $0x268] sm:$0xff]
      %v265 = vld [vmem:[%s178 + $0x270] sm:$0xff]
      %v266 = vld [vmem:[%s178 + $0x278] sm:$0xff]
      %v267 = vld [vmem:[%s178 + $0x280] sm:$0xff]
      %v268 = vld [vmem:[%s178 + $0x288] sm:$0xff]
      %v269 = vld [vmem:[%s178 + $0x290] sm:$0xff]
      %v270 = vld [vmem:[%s178 + $0x298] sm:$0xff]
      %v271 = vld [vmem:[%s178 + $0x2a0] sm:$0xff]
      %v272 = vld [vmem:[%s178 + $0x2a8] sm:$0xff]
      %v273 = vld [vmem:[%s178 + $0x2b0] sm:$0xff]
      %v274 = vld [vmem:[%s178 + $0x2b8] sm:$0xff]
      %v275 = vld [vmem:[%s178 + $0x2c0] sm:$0xff]
      %v276 = vld [vmem:[%s178 + $0x2c8] sm:$0xff]
      %v277 = vld [vmem:[%s178 + $0x2d0] sm:$0xff]
      %v278 = vld [vmem:[%s178 + $0x2d8] sm:$0xff]
      %v279 = vld [vmem:[%s178 + $0x2e0] sm:$0xff]
      %v280 = vld [vmem:[%s178 + $0x2e8] sm:$0xff]
      %v281 = vld [vmem:[%s178 + $0x2f0] sm:$0xff]
      %v282 = vld [vmem:[%s178 + $0x2f8] sm:$0xff]
      %v283 = vld [vmem:[%s178 + $0x300] sm:$0xff]
      %v284 = vld [vmem:[%s178 + $0x308] sm:$0xff]
      %v285 = vld [vmem:[%s178 + $0x310] sm:$0xff]
      %v286 = vld [vmem:[%s178 + $0x318] sm:$0xff]
      %v287 = vld [vmem:[%s178 + $0x320] sm:$0xff]
      %v288 = vld [vmem:[%s178 + $0x328] sm:$0xff]
      %v289 = vld [vmem:[%s178 + $0x330] sm:$0xff]
      %v290 = vld [vmem:[%s178 + $0x338] sm:$0xff]
      %v291 = vld [vmem:[%s178 + $0x340] sm:$0xff]
      %v292 = vld [vmem:[%s178 + $0x348] sm:$0xff]
      %v293 = vld [vmem:[%s178 + $0x350] sm:$0xff]
      %v294 = vld [vmem:[%s178 + $0x358] sm:$0xff]
      %v295 = vld [vmem:[%s178 + $0x360] sm:$0xff]
      %v296 = vld [vmem:[%s178 + $0x368] sm:$0xff]
      %v297 = vld [vmem:[%s178 + $0x370] sm:$0xff]
      %v298 = vld [vmem:[%s178 + $0x378] sm:$0xff]
      %v299 = vld [vmem:[%s178 + $0x380] sm:$0xff]
      %v300 = vld [vmem:[%s178 + $0x388] sm:$0xff]
      %v301 = vld [vmem:[%s178 + $0x390] sm:$0xff]
      %v302 = vld [vmem:[%s178 + $0x398] sm:$0xff]
      %v303 = vld [vmem:[%s178 + $0x3a0] sm:$0xff]
      %v304 = vld [vmem:[%s178 + $0x3a8] sm:$0xff]
      %v305 = vld [vmem:[%s178 + $0x3b0] sm:$0xff]
      %v306 = vld [vmem:[%s178 + $0x3b8] sm:$0xff]
      %v307 = vld [vmem:[%s178 + $0x3c0] sm:$0xff]
      %v308 = vld [vmem:[%s178 + $0x3c8] sm:$0xff]
      %v309 = vld [vmem:[%s178 + $0x3d0] sm:$0xff]
      %v310 = vld [vmem:[%s178 + $0x3d8] sm:$0xff]
      %v311 = vld [vmem:[%s178 + $0x3e0] sm:$0xff]
      %v312 = vld [vmem:[%s178 + $0x3e8] sm:$0xff]
      %v313 = vld [vmem:[%s178 + $0x3f0] sm:$0xff]
      %v314 = vld [vmem:[%s178 + $0x3f8] sm:$0xff]
      %316 = vst [vmem:[#allocation1] ss:$9 sm:$0xff] %v186
      %v317 = vld [vmem:[#allocation1] sm:$0xff]
      %v318 = vld [vmem:[#allocation1 + $0x9] sm:$0xff]
      %v319 = vld [vmem:[#allocation1 + $0x12] sm:$0xff]
      %v320 = vld [vmem:[#allocation1 + $0x1b] sm:$0xff]
      %v453 = vunpack.c.l.b16 %v187
      %v454 = vunpack.c.h.b16 %v187
      %v455 = vunpack.c.l.b16 %v188
      %v456 = vunpack.c.h.b16 %v188
      %v457 = vunpack.c.l.b16 %v189
      %v458 = vunpack.c.h.b16 %v189
      %v459 = vunpack.c.l.b16 %v190
      %v460 = vunpack.c.h.b16 %v190
      %v461 = vunpack.c.l.b16 %v191
      %v462 = vunpack.c.h.b16 %v191
      %v463 = vunpack.c.l.b16 %v192
      %v464 = vunpack.c.h.b16 %v192
      %v465 = vunpack.c.l.b16 %v193
      %v466 = vunpack.c.h.b16 %v193
      %v467 = vunpack.c.l.b16 %v194
      %v468 = vunpack.c.h.b16 %v194
      %v469 = vunpack.c.l.b16 %v195
      %v470 = vunpack.c.h.b16 %v195
      %v471 = vunpack.c.l.b16 %v196
      %v472 = vunpack.c.h.b16 %v196
      %v473 = vunpack.c.l.b16 %v197
      %v474 = vunpack.c.h.b16 %v197
      %v475 = vunpack.c.l.b16 %v198
      %v476 = vunpack.c.h.b16 %v198
      %v477 = vunpack.c.l.b16 %v199
      %v478 = vunpack.c.h.b16 %v199
      %v479 = vunpack.c.l.b16 %v200
      %v480 = vunpack.c.h.b16 %v200
      %v481 = vunpack.c.l.b16 %v201
      %v482 = vunpack.c.h.b16 %v201
      %v483 = vunpack.c.l.b16 %v202
      %v484 = vunpack.c.h.b16 %v202
      %v485 = vunpack.c.l.b16 %v203
      %v486 = vunpack.c.h.b16 %v203
      %v487 = vunpack.c.l.b16 %v204
      %v488 = vunpack.c.h.b16 %v204
      %v489 = vunpack.c.l.b16 %v205
      %v490 = vunpack.c.h.b16 %v205
      %v491 = vunpack.c.l.b16 %v206
      %v492 = vunpack.c.h.b16 %v206
      %v493 = vunpack.c.l.b16 %v207
      %v494 = vunpack.c.h.b16 %v207
      %v495 = vunpack.c.l.b16 %v208
      %v496 = vunpack.c.h.b16 %v208
      %v497 = vunpack.c.l.b16 %v209
      %v498 = vunpack.c.h.b16 %v209
      %v499 = vunpack.c.l.b16 %v210
      %v500 = vunpack.c.h.b16 %v210
      %v501 = vunpack.c.l.b16 %v211
      %v502 = vunpack.c.h.b16 %v211
      %v503 = vunpack.c.l.b16 %v212
      %v504 = vunpack.c.h.b16 %v212
      %v505 = vunpack.c.l.b16 %v213
      %v506 = vunpack.c.h.b16 %v213
      %v507 = vunpack.c.l.b16 %v214
      %v508 = vunpack.c.h.b16 %v214
      %v509 = vunpack.c.l.b16 %v215
      %v510 = vunpack.c.h.b16 %v215
      %v511 = vunpack.c.l.b16 %v216
      %v512 = vunpack.c.h.b16 %v216
      %v513 = vunpack.c.l.b16 %v217
      %v514 = vunpack.c.h.b16 %v217
      %v515 = vunpack.c.l.b16 %v218
      %v516 = vunpack.c.h.b16 %v218
      %v517 = vunpack.c.l.b16 %v219
      %v518 = vunpack.c.h.b16 %v219
      %v519 = vunpack.c.l.b16 %v220
      %v520 = vunpack.c.h.b16 %v220
      %v521 = vunpack.c.l.b16 %v221
      %v522 = vunpack.c.h.b16 %v221
      %v523 = vunpack.c.l.b16 %v222
      %v524 = vunpack.c.h.b16 %v222
      %v525 = vunpack.c.l.b16 %v223
      %v526 = vunpack.c.h.b16 %v223
      %v527 = vunpack.c.l.b16 %v224
      %v528 = vunpack.c.h.b16 %v224
      %v529 = vunpack.c.l.b16 %v225
      %v530 = vunpack.c.h.b16 %v225
      %v531 = vunpack.c.l.b16 %v226
      %v532 = vunpack.c.h.b16 %v226
      %v533 = vunpack.c.l.b16 %v227
      %v534 = vunpack.c.h.b16 %v227
      %v535 = vunpack.c.l.b16 %v228
      %v536 = vunpack.c.h.b16 %v228
      %v537 = vunpack.c.l.b16 %v229
      %v538 = vunpack.c.h.b16 %v229
      %v539 = vunpack.c.l.b16 %v230
      %v540 = vunpack.c.h.b16 %v230
      %v541 = vunpack.c.l.b16 %v231
      %v542 = vunpack.c.h.b16 %v231
      %v543 = vunpack.c.l.b16 %v232
      %v544 = vunpack.c.h.b16 %v232
      %v545 = vunpack.c.l.b16 %v233
      %v546 = vunpack.c.h.b16 %v233
      %v547 = vunpack.c.l.b16 %v234
      %v548 = vunpack.c.h.b16 %v234
      %v549 = vunpack.c.l.b16 %v235
      %v550 = vunpack.c.h.b16 %v235
      %v551 = vunpack.c.l.b16 %v236
      %v552 = vunpack.c.h.b16 %v236
      %v553 = vunpack.c.l.b16 %v237
      %v554 = vunpack.c.h.b16 %v237
      %v555 = vunpack.c.l.b16 %v238
      %v556 = vunpack.c.h.b16 %v238
      %v557 = vunpack.c.l.b16 %v239
      %v558 = vunpack.c.h.b16 %v239
      %v559 = vunpack.c.l.b16 %v240
      %v560 = vunpack.c.h.b16 %v240
      %v561 = vunpack.c.l.b16 %v241
      %v562 = vunpack.c.h.b16 %v241
      %v563 = vunpack.c.l.b16 %v242
      %v564 = vunpack.c.h.b16 %v242
      %v565 = vunpack.c.l.b16 %v243
      %v566 = vunpack.c.h.b16 %v243
      %v567 = vunpack.c.l.b16 %v244
      %v568 = vunpack.c.h.b16 %v244
      %v569 = vunpack.c.l.b16 %v245
      %v570 = vunpack.c.h.b16 %v245
      %v571 = vunpack.c.l.b16 %v246
      %v572 = vunpack.c.h.b16 %v246
      %v573 = vunpack.c.l.b16 %v247
      %v574 = vunpack.c.h.b16 %v247
      %v575 = vunpack.c.l.b16 %v248
      %v576 = vunpack.c.h.b16 %v248
      %v577 = vunpack.c.l.b16 %v249
      %v578 = vunpack.c.h.b16 %v249
      %v579 = vunpack.c.l.b16 %v250
      %v580 = vunpack.c.h.b16 %v250
      %v581 = vunpack.c.l.b16 %v251
      %v582 = vunpack.c.h.b16 %v251
      %v583 = vunpack.c.l.b16 %v252
      %v584 = vunpack.c.h.b16 %v252
      %v585 = vunpack.c.l.b16 %v253
      %v586 = vunpack.c.h.b16 %v253
      %v587 = vunpack.c.l.b16 %v254
      %v588 = vunpack.c.h.b16 %v254
      %v589 = vunpack.c.l.b16 %v255
      %v590 = vunpack.c.h.b16 %v255
      %v591 = vunpack.c.l.b16 %v256
      %v592 = vunpack.c.h.b16 %v256
      %v593 = vunpack.c.l.b16 %v257
      %v594 = vunpack.c.h.b16 %v257
      %v595 = vunpack.c.l.b16 %v258
      %v596 = vunpack.c.h.b16 %v258
      %v597 = vunpack.c.l.b16 %v259
      %v598 = vunpack.c.h.b16 %v259
      %v599 = vunpack.c.l.b16 %v260
      %v600 = vunpack.c.h.b16 %v260
      %v601 = vunpack.c.l.b16 %v261
      %v602 = vunpack.c.h.b16 %v261
      %v603 = vunpack.c.l.b16 %v262
      %v604 = vunpack.c.h.b16 %v262
      %v605 = vunpack.c.l.b16 %v263
      %v606 = vunpack.c.h.b16 %v263
      %v607 = vunpack.c.l.b16 %v264
      %v608 = vunpack.c.h.b16 %v264
      %v609 = vunpack.c.l.b16 %v265
      %v610 = vunpack.c.h.b16 %v265
      %v611 = vunpack.c.l.b16 %v266
      %v612 = vunpack.c.h.b16 %v266
      %v613 = vunpack.c.l.b16 %v267
      %v614 = vunpack.c.h.b16 %v267
      %v615 = vunpack.c.l.b16 %v268
      %v616 = vunpack.c.h.b16 %v268
      %v617 = vunpack.c.l.b16 %v269
      %v618 = vunpack.c.h.b16 %v269
      %v619 = vunpack.c.l.b16 %v270
      %v620 = vunpack.c.h.b16 %v270
      %v621 = vunpack.c.l.b16 %v271
      %v622 = vunpack.c.h.b16 %v271
      %v623 = vunpack.c.l.b16 %v272
      %v624 = vunpack.c.h.b16 %v272
      %v625 = vunpack.c.l.b16 %v273
      %v626 = vunpack.c.h.b16 %v273
      %v627 = vunpack.c.l.b16 %v274
      %v628 = vunpack.c.h.b16 %v274
      %v629 = vunpack.c.l.b16 %v275
      %v630 = vunpack.c.h.b16 %v275
      %v631 = vunpack.c.l.b16 %v276
      %v632 = vunpack.c.h.b16 %v276
      %v633 = vunpack.c.l.b16 %v277
      %v634 = vunpack.c.h.b16 %v277
      %v635 = vunpack.c.l.b16 %v278
      %v636 = vunpack.c.h.b16 %v278
      %v637 = vunpack.c.l.b16 %v279
      %v638 = vunpack.c.h.b16 %v279
      %v639 = vunpack.c.l.b16 %v280
      %v640 = vunpack.c.h.b16 %v280
      %v641 = vunpack.c.l.b16 %v281
      %v642 = vunpack.c.h.b16 %v281
      %v643 = vunpack.c.l.b16 %v282
      %v644 = vunpack.c.h.b16 %v282
      %v645 = vunpack.c.l.b16 %v283
      %v646 = vunpack.c.h.b16 %v283
      %v647 = vunpack.c.l.b16 %v284
      %v648 = vunpack.c.h.b16 %v284
      %v649 = vunpack.c.l.b16 %v285
      %v650 = vunpack.c.h.b16 %v285
      %v651 = vunpack.c.l.b16 %v286
      %v652 = vunpack.c.h.b16 %v286
      %v653 = vunpack.c.l.b16 %v287
      %v654 = vunpack.c.h.b16 %v287
      %v655 = vunpack.c.l.b16 %v288
      %v656 = vunpack.c.h.b16 %v288
      %v657 = vunpack.c.l.b16 %v289
      %v658 = vunpack.c.h.b16 %v289
      %v659 = vunpack.c.l.b16 %v290
      %v660 = vunpack.c.h.b16 %v290
      %v661 = vunpack.c.l.b16 %v291
      %v662 = vunpack.c.h.b16 %v291
      %v663 = vunpack.c.l.b16 %v292
      %v664 = vunpack.c.h.b16 %v292
      %v665 = vunpack.c.l.b16 %v293
      %v666 = vunpack.c.h.b16 %v293
      %v667 = vunpack.c.l.b16 %v294
      %v668 = vunpack.c.h.b16 %v294
      %v669 = vunpack.c.l.b16 %v295
      %v670 = vunpack.c.h.b16 %v295
      %v671 = vunpack.c.l.b16 %v296
      %v672 = vunpack.c.h.b16 %v296
      %v673 = vunpack.c.l.b16 %v297
      %v674 = vunpack.c.h.b16 %v297
      %v675 = vunpack.c.l.b16 %v298
      %v676 = vunpack.c.h.b16 %v298
      %v677 = vunpack.c.l.b16 %v299
      %v678 = vunpack.c.h.b16 %v299
      %v679 = vunpack.c.l.b16 %v300
      %v680 = vunpack.c.h.b16 %v300
      %v681 = vunpack.c.l.b16 %v301
      %v682 = vunpack.c.h.b16 %v301
      %v683 = vunpack.c.l.b16 %v302
      %v684 = vunpack.c.h.b16 %v302
      %v685 = vunpack.c.l.b16 %v303
      %v686 = vunpack.c.h.b16 %v303
      %v687 = vunpack.c.l.b16 %v304
      %v688 = vunpack.c.h.b16 %v304
      %v689 = vunpack.c.l.b16 %v305
      %v690 = vunpack.c.h.b16 %v305
      %v691 = vunpack.c.l.b16 %v306
      %v692 = vunpack.c.h.b16 %v306
      %v693 = vunpack.c.l.b16 %v307
      %v694 = vunpack.c.h.b16 %v307
      %v695 = vunpack.c.l.b16 %v308
      %v696 = vunpack.c.h.b16 %v308
      %v697 = vunpack.c.l.b16 %v309
      %v698 = vunpack.c.h.b16 %v309
      %v699 = vunpack.c.l.b16 %v310
      %v700 = vunpack.c.h.b16 %v310
      %v701 = vunpack.c.l.b16 %v311
      %v702 = vunpack.c.h.b16 %v311
      %v703 = vunpack.c.l.b16 %v312
      %v704 = vunpack.c.h.b16 %v312
      %v705 = vunpack.c.l.b16 %v313
      %v706 = vunpack.c.h.b16 %v313
      %v707 = vunpack.c.l.b16 %v314
      %v708 = vunpack.c.h.b16 %v314
      %v709 = vpack.c.b16 %v457, %v453
      %v710 = vpack.c.b16 %v458, %v454
      %v711 = vpack.c.b16 %v459, %v455
      %v712 = vpack.c.b16 %v460, %v456
      %v713 = vpack.c.b16 %v465, %v461
      %v714 = vpack.c.b16 %v466, %v462
      %v715 = vpack.c.b16 %v467, %v463
      %v716 = vpack.c.b16 %v468, %v464
      %v717 = vpack.c.b16 %v473, %v469
      %v718 = vpack.c.b16 %v474, %v470
      %v719 = vpack.c.b16 %v475, %v471
      %v720 = vpack.c.b16 %v476, %v472
      %v721 = vpack.c.b16 %v481, %v477
      %v722 = vpack.c.b16 %v482, %v478
      %v723 = vpack.c.b16 %v483, %v479
      %v724 = vpack.c.b16 %v484, %v480
      %v725 = vpack.c.b16 %v489, %v485
      %v726 = vpack.c.b16 %v490, %v486
      %v727 = vpack.c.b16 %v491, %v487
      %v728 = vpack.c.b16 %v492, %v488
      %v729 = vpack.c.b16 %v497, %v493
      %v730 = vpack.c.b16 %v498, %v494
      %v731 = vpack.c.b16 %v499, %v495
      %v732 = vpack.c.b16 %v500, %v496
      %v733 = vpack.c.b16 %v505, %v501
      %v734 = vpack.c.b16 %v506, %v502
      %v735 = vpack.c.b16 %v507, %v503
      %v736 = vpack.c.b16 %v508, %v504
      %v737 = vpack.c.b16 %v513, %v509
      %v738 = vpack.c.b16 %v514, %v510
      %v739 = vpack.c.b16 %v515, %v511
      %v740 = vpack.c.b16 %v516, %v512
      %v741 = vpack.c.b16 %v521, %v517
      %v742 = vpack.c.b16 %v522, %v518
      %v743 = vpack.c.b16 %v523, %v519
      %v744 = vpack.c.b16 %v524, %v520
      %v745 = vpack.c.b16 %v529, %v525
      %v746 = vpack.c.b16 %v530, %v526
      %v747 = vpack.c.b16 %v531, %v527
      %v748 = vpack.c.b16 %v532, %v528
      %v749 = vpack.c.b16 %v537, %v533
      %v750 = vpack.c.b16 %v538, %v534
      %v751 = vpack.c.b16 %v539, %v535
      %v752 = vpack.c.b16 %v540, %v536
      %v753 = vpack.c.b16 %v545, %v541
      %v754 = vpack.c.b16 %v546, %v542
      %v755 = vpack.c.b16 %v547, %v543
      %v756 = vpack.c.b16 %v548, %v544
      %v757 = vpack.c.b16 %v553, %v549
      %v758 = vpack.c.b16 %v554, %v550
      %v759 = vpack.c.b16 %v555, %v551
      %v760 = vpack.c.b16 %v556, %v552
      %v761 = vpack.c.b16 %v561, %v557
      %v762 = vpack.c.b16 %v562, %v558
      %v763 = vpack.c.b16 %v563, %v559
      %v764 = vpack.c.b16 %v564, %v560
      %v765 = vpack.c.b16 %v569, %v565
      %v766 = vpack.c.b16 %v570, %v566
      %v767 = vpack.c.b16 %v571, %v567
      %v768 = vpack.c.b16 %v572, %v568
      %v769 = vpack.c.b16 %v577, %v573
      %v770 = vpack.c.b16 %v578, %v574
      %v771 = vpack.c.b16 %v579, %v575
      %v772 = vpack.c.b16 %v580, %v576
      %v773 = vpack.c.b16 %v585, %v581
      %v774 = vpack.c.b16 %v586, %v582
      %v775 = vpack.c.b16 %v587, %v583
      %v776 = vpack.c.b16 %v588, %v584
      %v777 = vpack.c.b16 %v593, %v589
      %v778 = vpack.c.b16 %v594, %v590
      %v779 = vpack.c.b16 %v595, %v591
      %v780 = vpack.c.b16 %v596, %v592
      %v781 = vpack.c.b16 %v601, %v597
      %v782 = vpack.c.b16 %v602, %v598
      %v783 = vpack.c.b16 %v603, %v599
      %v784 = vpack.c.b16 %v604, %v600
      %v785 = vpack.c.b16 %v609, %v605
      %v786 = vpack.c.b16 %v610, %v606
      %v787 = vpack.c.b16 %v611, %v607
      %v788 = vpack.c.b16 %v612, %v608
      %v789 = vpack.c.b16 %v617, %v613
      %v790 = vpack.c.b16 %v618, %v614
      %v791 = vpack.c.b16 %v619, %v615
      %v792 = vpack.c.b16 %v620, %v616
      %v793 = vpack.c.b16 %v625, %v621
      %v794 = vpack.c.b16 %v626, %v622
      %v795 = vpack.c.b16 %v627, %v623
      %v796 = vpack.c.b16 %v628, %v624
      %v797 = vpack.c.b16 %v633, %v629
      %v798 = vpack.c.b16 %v634, %v630
      %v799 = vpack.c.b16 %v635, %v631
      %v800 = vpack.c.b16 %v636, %v632
      %v801 = vpack.c.b16 %v641, %v637
      %v802 = vpack.c.b16 %v642, %v638
      %v803 = vpack.c.b16 %v643, %v639
      %v804 = vpack.c.b16 %v644, %v640
      %v805 = vpack.c.b16 %v649, %v645
      %v806 = vpack.c.b16 %v650, %v646
      %v807 = vpack.c.b16 %v651, %v647
      %v808 = vpack.c.b16 %v652, %v648
      %v809 = vpack.c.b16 %v657, %v653
      %v810 = vpack.c.b16 %v658, %v654
      %v811 = vpack.c.b16 %v659, %v655
      %v812 = vpack.c.b16 %v660, %v656
      %v813 = vpack.c.b16 %v665, %v661
      %v814 = vpack.c.b16 %v666, %v662
      %v815 = vpack.c.b16 %v667, %v663
      %v816 = vpack.c.b16 %v668, %v664
      %v817 = vpack.c.b16 %v673, %v669
      %v818 = vpack.c.b16 %v674, %v670
      %v819 = vpack.c.b16 %v675, %v671
      %v820 = vpack.c.b16 %v676, %v672
      %v821 = vpack.c.b16 %v681, %v677
      %v822 = vpack.c.b16 %v682, %v678
      %v823 = vpack.c.b16 %v683, %v679
      %v824 = vpack.c.b16 %v684, %v680
      %v825 = vpack.c.b16 %v689, %v685
      %v826 = vpack.c.b16 %v690, %v686
      %v827 = vpack.c.b16 %v691, %v687
      %v828 = vpack.c.b16 %v692, %v688
      %v829 = vpack.c.b16 %v697, %v693
      %v830 = vpack.c.b16 %v698, %v694
      %v831 = vpack.c.b16 %v699, %v695
      %v832 = vpack.c.b16 %v700, %v696
      %v833 = vpack.c.b16 %v705, %v701
      %v834 = vpack.c.b16 %v706, %v702
      %v835 = vpack.c.b16 %v707, %v703
      %v836 = vpack.c.b16 %v708, %v704
      %965 = vmatpush.bf16.msra.mxu0 %v737
      %966 = vmatpush.bf16.msra.mxu0 %v733
      %967 = vmatpush.bf16.msra.mxu0 %v729
      %968 = vmatpush.bf16.msra.mxu0 %v725
      %969 = vmatpush.bf16.msra.mxu0 %v721
      %970 = vmatpush.bf16.msra.mxu0 %v717
      %971 = vmatpush.bf16.msra.mxu0 %v713
      %972 = vmatpush.bf16.msra.mxu0 %v709
      %973 = vmatmul.bf16.gmra.mxu0 %v317
      %v974 = vpop.f32.mrf.mxu0
      %v975 = vadd.f32 0.0, %v974
      %v976 = vpop.f32.mrf.mxu0
      %977 = vdwg.mxu0
      %978 = vmatpush.bf16.msra.mxu0 %v769
      %979 = vmatpush.bf16.msra.mxu0 %v765
      %980 = vmatpush.bf16.msra.mxu0 %v761
      %981 = vmatpush.bf16.msra.mxu0 %v757
      %982 = vmatpush.bf16.msra.mxu0 %v753
      %983 = vmatpush.bf16.msra.mxu0 %v749
      %984 = vmatpush.bf16.msra.mxu0 %v745
      %985 = vmatpush.bf16.msra.mxu0 %v741
      %986 = vmatmul.bf16.gmra.mxu0 %v318
      %v987 = vpop.f32.mrf.mxu0
      %v988 = vadd.f32 %v975, %v987
      %v989 = vpop.f32.mrf.mxu0
      %990 = vdwg.mxu0
      %991 = vmatpush.bf16.msra.mxu0 %v801
      %992 = vmatpush.bf16.msra.mxu0 %v797
      %993 = vmatpush.bf16.msra.mxu0 %v793
      %994 = vmatpush.bf16.msra.mxu0 %v789
      %995 = vmatpush.bf16.msra.mxu0 %v785
      %996 = vmatpush.bf16.msra.mxu0 %v781
      %997 = vmatpush.bf16.msra.mxu0 %v777
      %998 = vmatpush.bf16.msra.mxu0 %v773
      %999 = vmatmul.bf16.gmra.mxu0 %v319
      %v1000 = vpop.f32.mrf.mxu0
      %v1001 = vadd.f32 %v988, %v1000
      %v1002 = vpop.f32.mrf.mxu0
      %1003 = vdwg.mxu0
      %1004 = vmatpush.bf16.msra.mxu0 %v833
      %1005 = vmatpush.bf16.msra.mxu0 %v829
      %1006 = vmatpush.bf16.msra.mxu0 %v825
      %1007 = vmatpush.bf16.msra.mxu0 %v821
      %1008 = vmatpush.bf16.msra.mxu0 %v817
      %1009 = vmatpush.bf16.msra.mxu0 %v813
      %1010 = vmatpush.bf16.msra.mxu0 %v809
      %1011 = vmatpush.bf16.msra.mxu0 %v805
      %1012 = vmatmul.bf16.gmra.mxu0 %v320
      %v1013 = vpop.f32.mrf.mxu0
      %v1014 = vadd.f32 %v1001, %v1013
      %v1015 = vpop.f32.mrf.mxu0
      %1016 = vdwg.mxu0
      %1017 = vmatpush.bf16.msra.mxu0 %v738
      %1018 = vmatpush.bf16.msra.mxu0 %v734
      %1019 = vmatpush.bf16.msra.mxu0 %v730
      %1020 = vmatpush.bf16.msra.mxu0 %v726
      %1021 = vmatpush.bf16.msra.mxu0 %v722
      %1022 = vmatpush.bf16.msra.mxu0 %v718
      %1023 = vmatpush.bf16.msra.mxu0 %v714
      %1024 = vmatpush.bf16.msra.mxu0 %v710
      %1025 = vmatmul.bf16.gmra.mxu0 %v317
      %v1026 = vpop.f32.mrf.mxu0
      %v1027 = vadd.f32 0.0, %v1026
      %v1028 = vpop.f32.mrf.mxu0
      %1029 = vdwg.mxu0
      %1030 = vmatpush.bf16.msra.mxu0 %v770
      %1031 = vmatpush.bf16.msra.mxu0 %v766
      %1032 = vmatpush.bf16.msra.mxu0 %v762
      %1033 = vmatpush.bf16.msra.mxu0 %v758
      %1034 = vmatpush.bf16.msra.mxu0 %v754
      %1035 = vmatpush.bf16.msra.mxu0 %v750
      %1036 = vmatpush.bf16.msra.mxu0 %v746
      %1037 = vmatpush.bf16.msra.mxu0 %v742
      %1038 = vmatmul.bf16.gmra.mxu0 %v318
      %v1039 = vpop.f32.mrf.mxu0
      %v1040 = vadd.f32 %v1027, %v1039
      %v1041 = vpop.f32.mrf.mxu0
      %1042 = vdwg.mxu0
      %1043 = vmatpush.bf16.msra.mxu0 %v802
      %1044 = vmatpush.bf16.msra.mxu0 %v798
      %1045 = vmatpush.bf16.msra.mxu0 %v794
      %1046 = vmatpush.bf16.msra.mxu0 %v790
      %1047 = vmatpush.bf16.msra.mxu0 %v786
      %1048 = vmatpush.bf16.msra.mxu0 %v782
      %1049 = vmatpush.bf16.msra.mxu0 %v778
      %1050 = vmatpush.bf16.msra.mxu0 %v774
      %1051 = vmatmul.bf16.gmra.mxu0 %v319
      %v1052 = vpop.f32.mrf.mxu0
      %v1053 = vadd.f32 %v1040, %v1052
      %v1054 = vpop.f32.mrf.mxu0
      %1055 = vdwg.mxu0
      %1056 = vmatpush.bf16.msra.mxu0 %v834
      %1057 = vmatpush.bf16.msra.mxu0 %v830
      %1058 = vmatpush.bf16.msra.mxu0 %v826
      %1059 = vmatpush.bf16.msra.mxu0 %v822
      %1060 = vmatpush.bf16.msra.mxu0 %v818
      %1061 = vmatpush.bf16.msra.mxu0 %v814
      %1062 = vmatpush.bf16.msra.mxu0 %v810
      %1063 = vmatpush.bf16.msra.mxu0 %v806
      %1064 = vmatmul.bf16.gmra.mxu0 %v320
      %v1065 = vpop.f32.mrf.mxu0
      %v1066 = vadd.f32 %v1053, %v1065
      %v1067 = vpop.f32.mrf.mxu0
      %1068 = vdwg.mxu0
      %1069 = vmatpush.bf16.msra.mxu0 %v739
      %1070 = vmatpush.bf16.msra.mxu0 %v735
      %1071 = vmatpush.bf16.msra.mxu0 %v731
      %1072 = vmatpush.bf16.msra.mxu0 %v727
      %1073 = vmatpush.bf16.msra.mxu0 %v723
      %1074 = vmatpush.bf16.msra.mxu0 %v719
      %1075 = vmatpush.bf16.msra.mxu0 %v715
      %1076 = vmatpush.bf16.msra.mxu0 %v711
      %1077 = vmatmul.bf16.gmra.mxu0 %v317
      %v1078 = vpop.f32.mrf.mxu0
      %v1079 = vadd.f32 0.0, %v1078
      %v1080 = vpop.f32.mrf.mxu0
      %1081 = vdwg.mxu0
      %1082 = vmatpush.bf16.msra.mxu0 %v771
      %1083 = vmatpush.bf16.msra.mxu0 %v767
      %1084 = vmatpush.bf16.msra.mxu0 %v763
      %1085 = vmatpush.bf16.msra.mxu0 %v759
      %1086 = vmatpush.bf16.msra.mxu0 %v755
      %1087 = vmatpush.bf16.msra.mxu0 %v751
      %1088 = vmatpush.bf16.msra.mxu0 %v747
      %1089 = vmatpush.bf16.msra.mxu0 %v743
      %1090 = vmatmul.bf16.gmra.mxu0 %v318
      %v1091 = vpop.f32.mrf.mxu0
      %v1092 = vadd.f32 %v1079, %v1091
      %v1093 = vpop.f32.mrf.mxu0
      %1094 = vdwg.mxu0
      %1095 = vmatpush.bf16.msra.mxu0 %v803
      %1096 = vmatpush.bf16.msra.mxu0 %v799
      %1097 = vmatpush.bf16.msra.mxu0 %v795
      %1098 = vmatpush.bf16.msra.mxu0 %v791
      %1099 = vmatpush.bf16.msra.mxu0 %v787
      %1100 = vmatpush.bf16.msra.mxu0 %v783
      %1101 = vmatpush.bf16.msra.mxu0 %v779
      %1102 = vmatpush.bf16.msra.mxu0 %v775
      %1103 = vmatmul.bf16.gmra.mxu0 %v319
      %v1104 = vpop.f32.mrf.mxu0
      %v1105 = vadd.f32 %v1092, %v1104
      %v1106 = vpop.f32.mrf.mxu0
      %1107 = vdwg.mxu0
      %1108 = vmatpush.bf16.msra.mxu0 %v835
      %1109 = vmatpush.bf16.msra.mxu0 %v831
      %1110 = vmatpush.bf16.msra.mxu0 %v827
      %1111 = vmatpush.bf16.msra.mxu0 %v823
      %1112 = vmatpush.bf16.msra.mxu0 %v819
      %1113 = vmatpush.bf16.msra.mxu0 %v815
      %1114 = vmatpush.bf16.msra.mxu0 %v811
      %1115 = vmatpush.bf16.msra.mxu0 %v807
      %1116 = vmatmul.bf16.gmra.mxu0 %v320
      %v1117 = vpop.f32.mrf.mxu0
      %v1118 = vadd.f32 %v1105, %v1117
      %v1119 = vpop.f32.mrf.mxu0
      %1120 = vdwg.mxu0
      %1121 = vmatpush.bf16.msra.mxu0 %v740
      %1122 = vmatpush.bf16.msra.mxu0 %v736
      %1123 = vmatpush.bf16.msra.mxu0 %v732
      %1124 = vmatpush.bf16.msra.mxu0 %v728
      %1125 = vmatpush.bf16.msra.mxu0 %v724
      %1126 = vmatpush.bf16.msra.mxu0 %v720
      %1127 = vmatpush.bf16.msra.mxu0 %v716
      %1128 = vmatpush.bf16.msra.mxu0 %v712
      %1129 = vmatmul.bf16.gmra.mxu0 %v317
      %v1130 = vpop.f32.mrf.mxu0
      %v1131 = vadd.f32 0.0, %v1130
      %v1132 = vpop.f32.mrf.mxu0
      %1133 = vdwg.mxu0
      %1134 = vmatpush.bf16.msra.mxu0 %v772
      %1135 = vmatpush.bf16.msra.mxu0 %v768
      %1136 = vmatpush.bf16.msra.mxu0 %v764
      %1137 = vmatpush.bf16.msra.mxu0 %v760
      %1138 = vmatpush.bf16.msra.mxu0 %v756
      %1139 = vmatpush.bf16.msra.mxu0 %v752
      %1140 = vmatpush.bf16.msra.mxu0 %v748
      %1141 = vmatpush.bf16.msra.mxu0 %v744
      %1142 = vmatmul.bf16.gmra.mxu0 %v318
      %v1143 = vpop.f32.mrf.mxu0
      %v1144 = vadd.f32 %v1131, %v1143
      %v1145 = vpop.f32.mrf.mxu0
      %1146 = vdwg.mxu0
      %1147 = vmatpush.bf16.msra.mxu0 %v804
      %1148 = vmatpush.bf16.msra.mxu0 %v800
      %1149 = vmatpush.bf16.msra.mxu0 %v796
      %1150 = vmatpush.bf16.msra.mxu0 %v792
      %1151 = vmatpush.bf16.msra.mxu0 %v788
      %1152 = vmatpush.bf16.msra.mxu0 %v784
      %1153 = vmatpush.bf16.msra.mxu0 %v780
      %1154 = vmatpush.bf16.msra.mxu0 %v776
      %1155 = vmatmul.bf16.gmra.mxu0 %v319
      %v1156 = vpop.f32.mrf.mxu0
      %v1157 = vadd.f32 %v1144, %v1156
      %v1158 = vpop.f32.mrf.mxu0
      %1159 = vdwg.mxu0
      %1160 = vmatpush.bf16.msra.mxu0 %v836
      %1161 = vmatpush.bf16.msra.mxu0 %v832
      %1162 = vmatpush.bf16.msra.mxu0 %v828
      %1163 = vmatpush.bf16.msra.mxu0 %v824
      %1164 = vmatpush.bf16.msra.mxu0 %v820
      %1165 = vmatpush.bf16.msra.mxu0 %v816
      %1166 = vmatpush.bf16.msra.mxu0 %v812
      %1167 = vmatpush.bf16.msra.mxu0 %v808
      %1168 = vmatmul.bf16.gmra.mxu0 %v320
      %v1169 = vpop.f32.mrf.mxu0
      %v1170 = vadd.f32 %v1157, %v1169
      %v1171 = vpop.f32.mrf.mxu0
      %1172 = vdwg.mxu0
      %v1177 = vrot.slane %v1066, 6
      %v1178 = vrot.slane %v1118, 4
      %v1179 = vrot.slane %v1170, 2
      %vm1180 = vcmask 1041408
      %v1181 = vsel %vm1180, %v1014, %v1177
      %vm1182 = vcmask 1045508
      %v1183 = vsel %vm1182, %v1178, %v1179
      %vm1184 = vcmask 1043456
      %v1185 = vsel %vm1184, %v1181, %v1183
      %v1187 = vadd.f32 %v185, %v1185
      %1188 = vst [vmem:[#allocation2] sm:$0xff] %v1187
      %p1189 = scmp.eq.s32.totalorder %s14, 1
      // Predicated region
      $region37: #{forward.10} parent=31 // pred_check
        %p1190 = pneg %p1189
      $region38: #{forward.10} parent=31 // pred_check_branch
        %1192 = sbr.rel (%p1190) target = $region40
      $region39: #{forward.10} parent=31 // pred_region
        %v1193 = vld [vmem:[#allocation2] sm:$0xff]
        %v1194 = vld [vmem:[%s2] sm:$0xf]
        %v1196 = vperm.slane %v1194, 0
        %v1197 = vperm.slane %v1194, 1
        %v1198 = vperm.slane %v1194, 2
        %v1199 = vperm.slane %v1194, 3
        %v1200 = vrot.slane %v1197, 6
        %v1201 = vrot.slane %v1198, 4
        %v1202 = vrot.slane %v1199, 2
        %v1203 = vsel %vm1180, %v1196, %v1200
        %v1204 = vsel %vm1182, %v1201, %v1202
        %v1205 = vsel %vm1184, %v1203, %v1204
        %v1207 = vadd.f32 %v1193, %v1205
        %v1208 = vmax.f32 %v1207, 0.0
        %1209 = vst [vmem:[%s3] sm:$0xff] %v1208
      $region40: #{forward.10} parent=31 // pred_fallthru
        _
      // Predicated region
      $region41: #{forward.10} parent=31 // pred_check
        %p1210 = pneg %p100
      $region42: #{forward.10} parent=31 // pred_check_branch
        %1212 = sbr.rel (%p1210) target = $region44
      $region43: #{forward.10} parent=31 // pred_region
        _
      $region44: #{forward.10} parent=31 // pred_fallthru
        _
      // Predicated region
      $region45: #{forward.10} parent=31 // pred_check
        %p1213 = pneg %p100
      $region46: #{forward.10} parent=31 // pred_check_branch
        %1215 = sbr.rel (%p1213) target = $region48
      $region47: #{forward.10} parent=31 // pred_region
        _
      $region48: #{forward.10} parent=31 // pred_fallthru
        _
    $region32: #{forward.10} parent=5 // pred_fallthru
      _
    %p1216 = scmp.le.s32.totalorder 2, %s9
    // Predicated region
    $region49: #{forward.10} parent=5 // pred_check
      %p1217 = pneg %p1216
    $region50: #{forward.10} parent=5 // pred_check_branch
      %1219 = sbr.rel (%p1217) target = $region52
    $region51: #{forward.10} parent=5 // pred_region
      %s1220 = ssub.s32 %s9, 2
    $region52: #{forward.10} parent=5 // pred_fallthru
      _
  $region6: #{forward.10} parent=0 // loop_footer
    %s13 = sadd.s32 1, %s9
  $region7: #{forward.10} parent=0 // loop_footer_branch
    %8 = sbr.rel target = $region3
  $region8: #{forward.10} parent=0 // loop_exit
    _

// kernel: forward.11
$region0: #{forward.11}
  #allocation0 [shape = 'u32[]', space=smem, size = 0x4, offset = 0x4, fixed_abs, tag = 'smem constant byte address 0x4 - core index']
  #allocation1 [shape = 'u32[72,128]{1,0:T(1,128)}', space=vmem, size = 0x9000, scoped, tag = 'internal scratch']
  #allocation2 [shape = 'f32[2,4]{1,0:T(2,128)}', space=vmem, size = 0x400, scoped, tag = 'scratch operand']
  %s0 = inlined_call_operand.vmem [shape: bf16[2,512], index: 0, kind: input, shape index: {}]
  %s1 = inlined_call_operand.vmem [shape: bf16[512,4], index: 1, kind: input, shape index: {}]
  %s2 = inlined_call_operand.vmem [shape: f32[1,4], index: 2, kind: input, shape index: {}]
  %s3 = inlined_call_operand.hbm [shape: f32[2,4], index: 3, kind: output, shape index: {}]
  %s4 = sld [smem:[#allocation0]]
  $region30: #{forward.11} parent=0
    _
  %s6 = ssub.s32 1, %s4
  %s7 = scalar_select 0, %s6, %s4
  $region1: #{forward.11} parent=0
    #allocation3 [shape = 'u8[1024]{0}', space=vmem, size = 0x400, scoped, tag = 'output window, operand 0, single buffered']
    #allocation4 [shape = 's32[1]{0}', space=sflag, size = 0x4, scoped, tag = 'scoped memory for forward.11']
    %8 = vsyncpa [#allocation4], 0
    // Predicated region
    $region2: #{forward.11} parent=1 // pred_check
      _
    $region3: #{forward.11} parent=1 // pred_check_branch
      %10 = sbr.rel (0) target = $region5
    $region4: #{forward.11} parent=1 // pred_region
      _
    $region5: #{forward.11} parent=1 // pred_fallthru
      _
    // Predicated region
    $region6: #{forward.11} parent=1 // pred_check
      _
    $region7: #{forward.11} parent=1 // pred_check_branch
      %12 = sbr.rel (0) target = $region9
    $region8: #{forward.11} parent=1 // pred_region
      _
    $region9: #{forward.11} parent=1 // pred_fallthru
      _
    // Predicated region
    $region10: #{forward.11} parent=1 // pred_check
      _
    $region11: #{forward.11} parent=1 // pred_check_branch
      %14 = sbr.rel (0) target = $region13
    $region12: #{forward.11} parent=1 // pred_region
      _
    $region13: #{forward.11} parent=1 // pred_fallthru
      _
    %p15 = scmp.eq.s32.totalorder 0, 0
    // Predicated region
    $region14: #{forward.11} parent=1 // pred_check
      %p16 = pneg %p15
    $region15: #{forward.11} parent=1 // pred_check_branch
      %18 = sbr.rel (%p16) target = $region17
    $region16: #{forward.11} parent=1 // pred_region
      %vm19 = vcmask 25600
      %20 = vst.msk [vmem:[#allocation2] sm:$0x3] %vm19, 0.0
    $region17: #{forward.11} parent=1 // pred_fallthru
      _
    %v21 = vld [vmem:[#allocation2] sm:$0x3]
    %v22 = vld [vmem:[%s0] sm:$0xf]
    %v23 = vld [vmem:[%s1] sm:$0xf]
    %v24 = vld [vmem:[%s1 + $0x4] sm:$0xf]
    %v25 = vld [vmem:[%s1 + $0x8] sm:$0xf]
    %v26 = vld [vmem:[%s1 + $0xc] sm:$0xf]
    %v27 = vld [vmem:[%s1 + $0x10] sm:$0xf]
    %v28 = vld [vmem:[%s1 + $0x14] sm:$0xf]
    %v29 = vld [vmem:[%s1 + $0x18] sm:$0xf]
    %v30 = vld [vmem:[%s1 + $0x1c] sm:$0xf]
    %v31 = vld [vmem:[%s1 + $0x20] sm:$0xf]
    %v32 = vld [vmem:[%s1 + $0x24] sm:$0xf]
    %v33 = vld [vmem:[%s1 + $0x28] sm:$0xf]
    %v34 = vld [vmem:[%s1 + $0x2c] sm:$0xf]
    %v35 = vld [vmem:[%s1 + $0x30] sm:$0xf]
    %v36 = vld [vmem:[%s1 + $0x34] sm:$0xf]
    %v37 = vld [vmem:[%s1 + $0x38] sm:$0xf]
    %v38 = vld [vmem:[%s1 + $0x3c] sm:$0xf]
    %v39 = vld [vmem:[%s1 + $0x40] sm:$0xf]
    %v40 = vld [vmem:[%s1 + $0x44] sm:$0xf]
    %v41 = vld [vmem:[%s1 + $0x48] sm:$0xf]
    %v42 = vld [vmem:[%s1 + $0x4c] sm:$0xf]
    %v43 = vld [vmem:[%s1 + $0x50] sm:$0xf]
    %v44 = vld [vmem:[%s1 + $0x54] sm:$0xf]
    %v45 = vld [vmem:[%s1 + $0x58] sm:$0xf]
    %v46 = vld [vmem:[%s1 + $0x5c] sm:$0xf]
    %v47 = vld [vmem:[%s1 + $0x60] sm:$0xf]
    %v48 = vld [vmem:[%s1 + $0x64] sm:$0xf]
    %v49 = vld [vmem:[%s1 + $0x68] sm:$0xf]
    %v50 = vld [vmem:[%s1 + $0x6c] sm:$0xf]
    %v51 = vld [vmem:[%s1 + $0x70] sm:$0xf]
    %v52 = vld [vmem:[%s1 + $0x74] sm:$0xf]
    %v53 = vld [vmem:[%s1 + $0x78] sm:$0xf]
    %v54 = vld [vmem:[%s1 + $0x7c] sm:$0xf]
    %v55 = vld [vmem:[%s1 + $0x80] sm:$0xf]
    %v56 = vld [vmem:[%s1 + $0x84] sm:$0xf]
    %v57 = vld [vmem:[%s1 + $0x88] sm:$0xf]
    %v58 = vld [vmem:[%s1 + $0x8c] sm:$0xf]
    %v59 = vld [vmem:[%s1 + $0x90] sm:$0xf]
    %v60 = vld [vmem:[%s1 + $0x94] sm:$0xf]
    %v61 = vld [vmem:[%s1 + $0x98] sm:$0xf]
    %v62 = vld [vmem:[%s1 + $0x9c] sm:$0xf]
    %v63 = vld [vmem:[%s1 + $0xa0] sm:$0xf]
    %v64 = vld [vmem:[%s1 + $0xa4] sm:$0xf]
    %v65 = vld [vmem:[%s1 + $0xa8] sm:$0xf]
    %v66 = vld [vmem:[%s1 + $0xac] sm:$0xf]
    %v67 = vld [vmem:[%s1 + $0xb0] sm:$0xf]
    %v68 = vld [vmem:[%s1 + $0xb4] sm:$0xf]
    %v69 = vld [vmem:[%s1 + $0xb8] sm:$0xf]
    %v70 = vld [vmem:[%s1 + $0xbc] sm:$0xf]
    %v71 = vld [vmem:[%s1 + $0xc0] sm:$0xf]
    %v72 = vld [vmem:[%s1 + $0xc4] sm:$0xf]
    %v73 = vld [vmem:[%s1 + $0xc8] sm:$0xf]
    %v74 = vld [vmem:[%s1 + $0xcc] sm:$0xf]
    %v75 = vld [vmem:[%s1 + $0xd0] sm:$0xf]
    %v76 = vld [vmem:[%s1 + $0xd4] sm:$0xf]
    %v77 = vld [vmem:[%s1 + $0xd8] sm:$0xf]
    %v78 = vld [vmem:[%s1 + $0xdc] sm:$0xf]
    %v79 = vld [vmem:[%s1 + $0xe0] sm:$0xf]
    %v80 = vld [vmem:[%s1 + $0xe4] sm:$0xf]
    %v81 = vld [vmem:[%s1 + $0xe8] sm:$0xf]
    %v82 = vld [vmem:[%s1 + $0xec] sm:$0xf]
    %v83 = vld [vmem:[%s1 + $0xf0] sm:$0xf]
    %v84 = vld [vmem:[%s1 + $0xf4] sm:$0xf]
    %v85 = vld [vmem:[%s1 + $0xf8] sm:$0xf]
    %v86 = vld [vmem:[%s1 + $0xfc] sm:$0xf]
    %88 = vst [vmem:[#allocation1] ss:$9 sm:$0xff] %v22
    %v89 = vld [vmem:[#allocation1] sm:$0xff]
    %v90 = vld [vmem:[#allocation1 + $0x9] sm:$0xff]
    %v91 = vld [vmem:[#allocation1 + $0x12] sm:$0xff]
    %v92 = vld [vmem:[#allocation1 + $0x1b] sm:$0xff]
    %v161 = vunpack.c.l.b16 %v23
    %v162 = vunpack.c.l.b16 %v24
    %v163 = vunpack.c.l.b16 %v25
    %v164 = vunpack.c.l.b16 %v26
    %v165 = vunpack.c.l.b16 %v27
    %v166 = vunpack.c.l.b16 %v28
    %v167 = vunpack.c.l.b16 %v29
    %v168 = vunpack.c.l.b16 %v30
    %v169 = vunpack.c.l.b16 %v31
    %v170 = vunpack.c.l.b16 %v32
    %v171 = vunpack.c.l.b16 %v33
    %v172 = vunpack.c.l.b16 %v34
    %v173 = vunpack.c.l.b16 %v35
    %v174 = vunpack.c.l.b16 %v36
    %v175 = vunpack.c.l.b16 %v37
    %v176 = vunpack.c.l.b16 %v38
    %v177 = vunpack.c.l.b16 %v39
    %v178 = vunpack.c.l.b16 %v40
    %v179 = vunpack.c.l.b16 %v41
    %v180 = vunpack.c.l.b16 %v42
    %v181 = vunpack.c.l.b16 %v43
    %v182 = vunpack.c.l.b16 %v44
    %v183 = vunpack.c.l.b16 %v45
    %v184 = vunpack.c.l.b16 %v46
    %v185 = vunpack.c.l.b16 %v47
    %v186 = vunpack.c.l.b16 %v48
    %v187 = vunpack.c.l.b16 %v49
    %v188 = vunpack.c.l.b16 %v50
    %v189 = vunpack.c.l.b16 %v51
    %v190 = vunpack.c.l.b16 %v52
    %v191 = vunpack.c.l.b16 %v53
    %v192 = vunpack.c.l.b16 %v54
    %v193 = vunpack.c.l.b16 %v55
    %v194 = vunpack.c.l.b16 %v56
    %v195 = vunpack.c.l.b16 %v57
    %v196 = vunpack.c.l.b16 %v58
    %v197 = vunpack.c.l.b16 %v59
    %v198 = vunpack.c.l.b16 %v60
    %v199 = vunpack.c.l.b16 %v61
    %v200 = vunpack.c.l.b16 %v62
    %v201 = vunpack.c.l.b16 %v63
    %v202 = vunpack.c.l.b16 %v64
    %v203 = vunpack.c.l.b16 %v65
    %v204 = vunpack.c.l.b16 %v66
    %v205 = vunpack.c.l.b16 %v67
    %v206 = vunpack.c.l.b16 %v68
    %v207 = vunpack.c.l.b16 %v69
    %v208 = vunpack.c.l.b16 %v70
    %v209 = vunpack.c.l.b16 %v71
    %v210 = vunpack.c.l.b16 %v72
    %v211 = vunpack.c.l.b16 %v73
    %v212 = vunpack.c.l.b16 %v74
    %v213 = vunpack.c.l.b16 %v75
    %v214 = vunpack.c.l.b16 %v76
    %v215 = vunpack.c.l.b16 %v77
    %v216 = vunpack.c.l.b16 %v78
    %v217 = vunpack.c.l.b16 %v79
    %v218 = vunpack.c.l.b16 %v80
    %v219 = vunpack.c.l.b16 %v81
    %v220 = vunpack.c.l.b16 %v82
    %v221 = vunpack.c.l.b16 %v83
    %v222 = vunpack.c.l.b16 %v84
    %v223 = vunpack.c.l.b16 %v85
    %v224 = vunpack.c.l.b16 %v86
    %v225 = vpack.c.b16 %v162, %v161
    %v226 = vpack.c.b16 %v164, %v163
    %v227 = vpack.c.b16 %v166, %v165
    %v228 = vpack.c.b16 %v168, %v167
    %v229 = vpack.c.b16 %v170, %v169
    %v230 = vpack.c.b16 %v172, %v171
    %v231 = vpack.c.b16 %v174, %v173
    %v232 = vpack.c.b16 %v176, %v175
    %v233 = vpack.c.b16 %v178, %v177
    %v234 = vpack.c.b16 %v180, %v179
    %v235 = vpack.c.b16 %v182, %v181
    %v236 = vpack.c.b16 %v184, %v183
    %v237 = vpack.c.b16 %v186, %v185
    %v238 = vpack.c.b16 %v188, %v187
    %v239 = vpack.c.b16 %v190, %v189
    %v240 = vpack.c.b16 %v192, %v191
    %v241 = vpack.c.b16 %v194, %v193
    %v242 = vpack.c.b16 %v196, %v195
    %v243 = vpack.c.b16 %v198, %v197
    %v244 = vpack.c.b16 %v200, %v199
    %v245 = vpack.c.b16 %v202, %v201
    %v246 = vpack.c.b16 %v204, %v203
    %v247 = vpack.c.b16 %v206, %v205
    %v248 = vpack.c.b16 %v208, %v207
    %v249 = vpack.c.b16 %v210, %v209
    %v250 = vpack.c.b16 %v212, %v211
    %v251 = vpack.c.b16 %v214, %v213
    %v252 = vpack.c.b16 %v216, %v215
    %v253 = vpack.c.b16 %v218, %v217
    %v254 = vpack.c.b16 %v220, %v219
    %v255 = vpack.c.b16 %v222, %v221
    %v256 = vpack.c.b16 %v224, %v223
    %289 = vmatpush.bf16.msra.mxu0 %v232
    %290 = vmatpush.bf16.msra.mxu0 %v231
    %291 = vmatpush.bf16.msra.mxu0 %v230
    %292 = vmatpush.bf16.msra.mxu0 %v229
    %293 = vmatpush.bf16.msra.mxu0 %v228
    %294 = vmatpush.bf16.msra.mxu0 %v227
    %295 = vmatpush.bf16.msra.mxu0 %v226
    %296 = vmatpush.bf16.msra.mxu0 %v225
    %297 = vmatmul.bf16.gmra.mxu0 %v89
    %v298 = vpop.f32.mrf.mxu0
    %v299 = vadd.f32 0.0, %v298
    %v300 = vpop.f32.mrf.mxu0
    %301 = vdwg.mxu0
    %302 = vmatpush.bf16.msra.mxu0 %v240
    %303 = vmatpush.bf16.msra.mxu0 %v239
    %304 = vmatpush.bf16.msra.mxu0 %v238
    %305 = vmatpush.bf16.msra.mxu0 %v237
    %306 = vmatpush.bf16.msra.mxu0 %v236
    %307 = vmatpush.bf16.msra.mxu0 %v235
    %308 = vmatpush.bf16.msra.mxu0 %v234
    %309 = vmatpush.bf16.msra.mxu0 %v233
    %310 = vmatmul.bf16.gmra.mxu0 %v90
    %v311 = vpop.f32.mrf.mxu0
    %v312 = vadd.f32 %v299, %v311
    %v313 = vpop.f32.mrf.mxu0
    %314 = vdwg.mxu0
    %315 = vmatpush.bf16.msra.mxu0 %v248
    %316 = vmatpush.bf16.msra.mxu0 %v247
    %317 = vmatpush.bf16.msra.mxu0 %v246
    %318 = vmatpush.bf16.msra.mxu0 %v245
    %319 = vmatpush.bf16.msra.mxu0 %v244
    %320 = vmatpush.bf16.msra.mxu0 %v243
    %321 = vmatpush.bf16.msra.mxu0 %v242
    %322 = vmatpush.bf16.msra.mxu0 %v241
    %323 = vmatmul.bf16.gmra.mxu0 %v91
    %v324 = vpop.f32.mrf.mxu0
    %v325 = vadd.f32 %v312, %v324
    %v326 = vpop.f32.mrf.mxu0
    %327 = vdwg.mxu0
    %328 = vmatpush.bf16.msra.mxu0 %v256
    %329 = vmatpush.bf16.msra.mxu0 %v255
    %330 = vmatpush.bf16.msra.mxu0 %v254
    %331 = vmatpush.bf16.msra.mxu0 %v253
    %332 = vmatpush.bf16.msra.mxu0 %v252
    %333 = vmatpush.bf16.msra.mxu0 %v251
    %334 = vmatpush.bf16.msra.mxu0 %v250
    %335 = vmatpush.bf16.msra.mxu0 %v249
    %336 = vmatmul.bf16.gmra.mxu0 %v92
    %v337 = vpop.f32.mrf.mxu0
    %v338 = vadd.f32 %v325, %v337
    %v339 = vpop.f32.mrf.mxu0
    %340 = vdwg.mxu0
    %v341 = vadd.f32 %v21, %v338
    %vm342 = vcmask 25600
    %343 = vst.msk [vmem:[#allocation2] sm:$0x3] %vm342, %v341
    // Predicated region
    $region18: #{forward.11} parent=1 // pred_check
      %p344 = pneg %p15
    $region19: #{forward.11} parent=1 // pred_check_branch
      %346 = sbr.rel (%p344) target = $region21
    $region20: #{forward.11} parent=1 // pred_region
      %v347 = vld [vmem:[#allocation2] sm:$0x3]
      %v348 = vld [vmem:[%s2] sm:$0x1]
      %v350 = vperm.slane %v348, 0
      %v352 = vadd.f32 %v347, %v350
      %353 = vst.msk [vmem:[#allocation3] sm:$0x3] %vm342, %v352
    $region21: #{forward.11} parent=1 // pred_fallthru
      _
    // Predicated region
    $region22: #{forward.11} parent=1 // pred_check
      _
    $region23: #{forward.11} parent=1 // pred_check_branch
      %355 = sbr.rel (0) target = $region25
    $region24: #{forward.11} parent=1 // pred_region
      %357 = vsyncadd [#allocation4], 0
      %s359 = sshll.u32 [#allocation3], 4
      %s360 = int_to_ptr.vmem [resolvable:$true] %s359
      %s361 = sshll.u32 %s3, 4
      %s362 = int_to_ptr.hbm [resolvable:$true] %s361
      %364 = dma.vmem_to_hbm [thread:$0]  %s360, 32, %s362, [#allocation4]
    $region25: #{forward.11} parent=1 // pred_fallthru
      _
    // Predicated region
    $region26: #{forward.11} parent=1 // pred_check
      _
    $region27: #{forward.11} parent=1 // pred_check_branch
      %366 = sbr.rel (0) target = $region29
    $region28: #{forward.11} parent=1 // pred_region
      %368 = dma.done [#allocation4], 32
    $region29: #{forward.11} parent=1 // pred_fallthru
      _
    %369 = vsyncpa [#allocation4], 1

</llo_original>
